<compile_context>
chip_gen: v7x
topology: tpu7x:2x2x1
jax: 0.10.0
libtpu: 0.0.40
codegen_flags: <defaults>
</compile_context>

<pallas_src>
import numpy as np
import jax
import jax.numpy as jnp
from jax.experimental import pallas as pl
from jax.experimental.pallas import tpu as pltpu

# ---- model hyperparameters (small, consistent with Block.__init__) ----
N_EMBD = 32          # n_embd
BLOCK_SIZE = 8       # block_size == T
N_HEAD = 4           # n_head
HEAD_SIZE = N_EMBD // N_HEAD
EPS = 1e-5           # nn.LayerNorm default eps
# parallel=False path (SequentialMultiHeadAttention) -> per-head K/Q/V projections.
# TODO(synk): dropout is omitted (identity), matching eval-mode semantics.


def _layernorm(x, gamma, beta):
    mu = jnp.mean(x, axis=-1, keepdims=True)
    var = jnp.mean((x - mu) ** 2, axis=-1, keepdims=True)
    return (x - mu) * jax.lax.rsqrt(var + EPS) * gamma + beta


def block_kernel(x_ref, wqkv_ref, wproj_ref, bproj_ref,
                 ln1g_ref, ln1b_ref, ln2g_ref, ln2b_ref,
                 w1_ref, b1_ref, w2_ref, b2_ref, out_ref):
    x3 = x_ref[...]                                   # (NB, T, C) batch block
    NB, T, C = x3.shape
    H, HS = N_HEAD, HEAD_SIZE
    x2 = x3.reshape(NB * T, C)                        # merge leading dims (layout no-op)

    # Hoist every small parameter read once (JAX does not CSE broadcasts).
    wqkv = wqkv_ref[...]
    wproj = wproj_ref[...]
    bproj = bproj_ref[...]
    g1 = ln1g_ref[...]
    be1 = ln1b_ref[...]
    g2 = ln2g_ref[...]
    be2 = ln2b_ref[...]
    w1 = w1_ref[...]
    b1 = b1_ref[...]
    w2 = w2_ref[...]
    b2 = b2_ref[...]

    # ---------------- x + sa(ln1(x)) ----------------
    xn = _layernorm(x2, g1, be1)                      # (NB*T, C)

    # One wide fused Q/K/V matmul for all heads: (NB*T, C) @ (C, 3C).
    qkv = jnp.dot(xn, wqkv, preferred_element_type=jnp.float32)
    qkv3 = qkv.reshape(NB, T, 3 * C)                  # split leading dim (layout no-op)

    # Additive causal bias, built once; broadcasts over batch & heads for free.
    rows = jax.lax.broadcasted_iota(jnp.int32, (T, T), 0)
    cols = jax.lax.broadcasted_iota(jnp.int32, (T, T), 1)
    causal_bias = jnp.where(rows >= cols, 0.0, -1e30).astype(jnp.float32)

    scale = 1.0 / (HS ** 0.5)
    sa = jnp.zeros((NB * T, C), jnp.float32)
    for h in range(H):                                # static unroll over 4 heads
        q = qkv3[:, :, h * HS:(h + 1) * HS]                       # (NB, T, HS)
        k = qkv3[:, :, C + h * HS:C + (h + 1) * HS]
        v = qkv3[:, :, 2 * C + h * HS:2 * C + (h + 1) * HS]
        att = jnp.einsum('bqd,bkd->bqk', q, k,
                         preferred_element_type=jnp.float32) * scale + causal_bias
        att = att - jnp.max(att, axis=-1, keepdims=True)
        p = jnp.exp(att)
        p = p * pl.reciprocal(jnp.sum(p, axis=-1, keepdims=True), approx=False)
        o = jnp.einsum('bqk,bkd->bqd', p, v,
                       preferred_element_type=jnp.float32)        # (NB, T, HS)
        # Fold this head's slice of the output projection (no concatenate).
        sa = sa + jnp.dot(o.reshape(NB * T, HS),
                          wproj[h * HS:(h + 1) * HS, :],
                          preferred_element_type=jnp.float32)
    x1 = x2 + sa + bproj                              # residual 1, (NB*T, C)

    # ---------------- x + ffwd(ln2(x)) ----------------
    xn2 = _layernorm(x1, g2, be2)
    hid = jnp.maximum(jnp.dot(xn2, w1, preferred_element_type=jnp.float32) + b1, 0.0)
    ff = jnp.dot(hid, w2, preferred_element_type=jnp.float32) + b2

    out_ref[...] = (x1 + ff).reshape(NB, T, C).astype(out_ref.dtype)


def block_forward(x, params, batch_block=128):
    """params = [wq, wk, wv, wproj, bproj, ln1g, ln1b, ln2g, ln2b, w1, b1, w2, b2]."""
    (wq, wk, wv, wproj, bproj, ln1g, ln1b, ln2g, ln2b, w1, b1, w2, b2) = params
    B, T, C = x.shape
    H, _, HS = wq.shape

    # Fuse per-head Q/K/V projections into one (C, 3C) weight (done once, host side).
    def heads_to_cols(w):                 # (H, C, HS) -> (C, H*HS), head-major columns
        return jnp.transpose(w, (1, 0, 2)).reshape(C, H * HS)
    wqkv = jnp.concatenate(
        [heads_to_cols(wq), heads_to_cols(wk), heads_to_cols(wv)], axis=1)

    # Batch-block the grid: big blocks amortize the ~0.35us per-step overhead,
    # but keep >=2 "parallel" steps (when B > 1) so both v7x TensorCores are used.
    if B > 1:
        n_steps = max(2, -(-B // batch_block))
    else:
        n_steps = 1
    bb = -(-B // n_steps)                 # per-step batch block
    Bp = n_steps * bb
    xp = jnp.pad(x, ((0, Bp - B), (0, 0), (0, 0))) if Bp != B else x

    kernel_params = [wqkv, wproj, bproj, ln1g, ln1b, ln2g, ln2b, w1, b1, w2, b2]

    def full_spec(a):
        # whole-array block, same block every grid step (stays resident in VMEM)
        return pl.BlockSpec(a.shape, lambda b, n=a.ndim: (0,) * n)

    in_specs = ([pl.BlockSpec((bb, T, C), lambda b: (b, 0, 0))]
                + [full_spec(p) for p in kernel_params])

    out = pl.pallas_call(
        block_kernel,
        out_shape=jax.ShapeDtypeStruct((Bp, T, C), x.dtype),
        grid=(n_steps,),
        in_specs=in_specs,
        out_specs=pl.BlockSpec((bb, T, C), lambda b: (b, 0, 0)),
        compiler_params=pltpu.CompilerParams(dimension_semantics=("parallel",)),
    )(xp, *kernel_params)

    return out[:B] if Bp != B else out


def ref_forward(x, wq, wk, wv, wproj, bproj, ln1g, ln1b, ln2g, ln2b, w1, b1, w2, b2):
    """Pure-JAX reference for correctness checking."""
    def ln(z, g, bta):
        mu = z.mean(-1, keepdims=True)
        var = ((z - mu) ** 2).mean(-1, keepdims=True)
        return (z - mu) / jnp.sqrt(var + EPS) * g + bta

    B, T, C = x.shape
    xn = ln(x, ln1g, ln1b)
    q = jnp.einsum('btc,hcd->bhtd', xn, wq)
    k = jnp.einsum('btc,hcd->bhtd', xn, wk)
    v = jnp.einsum('btc,hcd->bhtd', xn, wv)
    att = jnp.einsum('bhtd,bhsd->bhts', q, k) * (HEAD_SIZE ** -0.5)
    mask = jnp.tril(jnp.ones((T, T), bool))
    att = jnp.where(mask, att, -jnp.inf)
    p = jax.nn.softmax(att, axis=-1)
    o = jnp.einsum('bhts,bhsd->bhtd', p, v)
    o = o.transpose(0, 2, 1, 3).reshape(B, T, C)
    x1 = x + o @ wproj + bproj
    xn2 = ln(x1, ln2g, ln2b)
    ff = jnp.maximum(xn2 @ w1 + b1, 0.0) @ w2 + b2
    return x1 + ff


if __name__ == "__main__":
    B, T, C, H, HS = 5, BLOCK_SIZE, N_EMBD, N_HEAD, HEAD_SIZE
    key = jax.random.PRNGKey(0)
    ks = jax.random.split(key, 10)

    x = jax.random.normal(ks[0], (B, T, C), jnp.float32)

    def init(k, shape, scale=0.1):
        return jax.random.normal(k, shape, jnp.float32) * scale

    # SequentialMultiHeadAttention params (per-head K/Q/V, no bias) + proj (with bias)
    wq = init(ks[1], (H, C, HS))
    wk = init(ks[2], (H, C, HS))
    wv = init(ks[3], (H, C, HS))
    wproj = init(ks[4], (C, C))
    bproj = init(ks[5], (1, C))
    # LayerNorms (PyTorch default init: gamma=1, beta=0)
    ln1g = jnp.ones((1, C), jnp.float32)
    ln1b = jnp.zeros((1, C), jnp.float32)
    ln2g = jnp.ones((1, C), jnp.float32)
    ln2b = jnp.zeros((1, C), jnp.float32)
    # FeedForward: Linear(C, 4C) -> ReLU -> Linear(4C, C)
    w1 = init(ks[6], (C, 4 * C))
    b1 = init(ks[7], (1, 4 * C))
    w2 = init(ks[8], (4 * C, C))
    b2 = init(ks[9], (1, C))

    params = [wq, wk, wv, wproj, bproj, ln1g, ln1b, ln2g, ln2b, w1, b1, w2, b2]

    out = block_forward(x, params)
    out = jax.block_until_ready(out)

    ref = ref_forward(x, *params)
    np.testing.assert_allclose(np.asarray(out), np.asarray(ref), rtol=1e-5, atol=1e-5)

    print("KERNEL_OK")
</pallas_src>

<mosaic_0001>
module attributes {stable_mosaic.version = 11 : i64} {
  func.func @block_kernel(%arg0: i32, %arg1: memref<3x8x32xf32, #tpu.memory_space<vmem>>, %arg2: memref<32x96xf32, #tpu.memory_space<vmem>>, %arg3: memref<32x32xf32, #tpu.memory_space<vmem>>, %arg4: memref<1x32xf32, #tpu.memory_space<vmem>>, %arg5: memref<1x32xf32, #tpu.memory_space<vmem>>, %arg6: memref<1x32xf32, #tpu.memory_space<vmem>>, %arg7: memref<1x32xf32, #tpu.memory_space<vmem>>, %arg8: memref<1x32xf32, #tpu.memory_space<vmem>>, %arg9: memref<32x128xf32, #tpu.memory_space<vmem>>, %arg10: memref<1x128xf32, #tpu.memory_space<vmem>>, %arg11: memref<128x32xf32, #tpu.memory_space<vmem>>, %arg12: memref<1x32xf32, #tpu.memory_space<vmem>>, %arg13: memref<3x8x32xf32, #tpu.memory_space<vmem>>) attributes {dimension_semantics = [#tpu.dimension_semantics<parallel>], iteration_bounds = array<i64: 2>, scalar_prefetch = 0 : i64, scratch_operands = 0 : i64, tpu.core_type = #tpu.core_type<tc>, window_params = [{transform_indices = @transform_0, window_bounds = array<i64: 3, 8, 32>}, {pipeline_mode = #tpu.pipeline_mode<synchronous>, transform_indices = @transform_1, window_bounds = array<i64: 32, 96>}, {pipeline_mode = #tpu.pipeline_mode<synchronous>, transform_indices = @transform_2, window_bounds = array<i64: 32, 32>}, {pipeline_mode = #tpu.pipeline_mode<synchronous>, transform_indices = @transform_3, window_bounds = array<i64: 1, 32>}, {pipeline_mode = #tpu.pipeline_mode<synchronous>, transform_indices = @transform_4, window_bounds = array<i64: 1, 32>}, {pipeline_mode = #tpu.pipeline_mode<synchronous>, transform_indices = @transform_5, window_bounds = array<i64: 1, 32>}, {pipeline_mode = #tpu.pipeline_mode<synchronous>, transform_indices = @transform_6, window_bounds = array<i64: 1, 32>}, {pipeline_mode = #tpu.pipeline_mode<synchronous>, transform_indices = @transform_7, window_bounds = array<i64: 1, 32>}, {pipeline_mode = #tpu.pipeline_mode<synchronous>, transform_indices = @transform_8, window_bounds = array<i64: 32, 128>}, {pipeline_mode = #tpu.pipeline_mode<synchronous>, transform_indices = @transform_9, window_bounds = array<i64: 1, 128>}, {pipeline_mode = #tpu.pipeline_mode<synchronous>, transform_indices = @transform_10, window_bounds = array<i64: 128, 32>}, {pipeline_mode = #tpu.pipeline_mode<synchronous>, transform_indices = @transform_11, window_bounds = array<i64: 1, 32>}, {transform_indices = @transform_12, window_bounds = array<i64: 3, 8, 32>}]} {
    %c0 = arith.constant 0 : index
    %c0_0 = arith.constant 0 : index
    %c0_1 = arith.constant 0 : index
    %0 = vector.load %arg1[%c0, %c0_0, %c0_1] : memref<3x8x32xf32, #tpu.memory_space<vmem>>, vector<3x8x32xf32>
    %1 = vector.shape_cast %0 : vector<3x8x32xf32> to vector<24x32xf32>
    %c0_2 = arith.constant 0 : index
    %c0_3 = arith.constant 0 : index
    %2 = vector.load %arg2[%c0_2, %c0_3] : memref<32x96xf32, #tpu.memory_space<vmem>>, vector<32x96xf32>
    %c0_4 = arith.constant 0 : index
    %c0_5 = arith.constant 0 : index
    %3 = vector.load %arg3[%c0_4, %c0_5] : memref<32x32xf32, #tpu.memory_space<vmem>>, vector<32x32xf32>
    %c0_6 = arith.constant 0 : index
    %c0_7 = arith.constant 0 : index
    %4 = vector.load %arg4[%c0_6, %c0_7] : memref<1x32xf32, #tpu.memory_space<vmem>>, vector<1x32xf32>
    %c0_8 = arith.constant 0 : index
    %c0_9 = arith.constant 0 : index
    %5 = vector.load %arg5[%c0_8, %c0_9] : memref<1x32xf32, #tpu.memory_space<vmem>>, vector<1x32xf32>
    %c0_10 = arith.constant 0 : index
    %c0_11 = arith.constant 0 : index
    %6 = vector.load %arg6[%c0_10, %c0_11] : memref<1x32xf32, #tpu.memory_space<vmem>>, vector<1x32xf32>
    %c0_12 = arith.constant 0 : index
    %c0_13 = arith.constant 0 : index
    %7 = vector.load %arg7[%c0_12, %c0_13] : memref<1x32xf32, #tpu.memory_space<vmem>>, vector<1x32xf32>
    %c0_14 = arith.constant 0 : index
    %c0_15 = arith.constant 0 : index
    %8 = vector.load %arg8[%c0_14, %c0_15] : memref<1x32xf32, #tpu.memory_space<vmem>>, vector<1x32xf32>
    %c0_16 = arith.constant 0 : index
    %c0_17 = arith.constant 0 : index
    %9 = vector.load %arg9[%c0_16, %c0_17] : memref<32x128xf32, #tpu.memory_space<vmem>>, vector<32x128xf32>
    %c0_18 = arith.constant 0 : index
    %c0_19 = arith.constant 0 : index
    %10 = vector.load %arg10[%c0_18, %c0_19] : memref<1x128xf32, #tpu.memory_space<vmem>>, vector<1x128xf32>
    %c0_20 = arith.constant 0 : index
    %c0_21 = arith.constant 0 : index
    %11 = vector.load %arg11[%c0_20, %c0_21] : memref<128x32xf32, #tpu.memory_space<vmem>>, vector<128x32xf32>
    %c0_22 = arith.constant 0 : index
    %c0_23 = arith.constant 0 : index
    %12 = vector.load %arg12[%c0_22, %c0_23] : memref<1x32xf32, #tpu.memory_space<vmem>>, vector<1x32xf32>
    %cst = arith.constant dense<0.000000e+00> : vector<24xf32>
    %13 = vector.multi_reduction <add>, %1, %cst [1] : vector<24x32xf32> to vector<24xf32>
    %14 = vector.shape_cast %13 : vector<24xf32> to vector<24x1xf32>
    %cst_24 = arith.constant 3.200000e+01 : f32
    %15 = vector.broadcast %cst_24 : f32 to vector<24x1xf32>
    %16 = arith.divf %14, %15 : vector<24x1xf32>
    %17 = vector.broadcast %16 : vector<24x1xf32> to vector<24x32xf32>
    %18 = arith.subf %1, %17 : vector<24x32xf32>
    %19 = arith.mulf %18, %18 : vector<24x32xf32>
    %cst_25 = arith.constant dense<0.000000e+00> : vector<24xf32>
    %20 = vector.multi_reduction <add>, %19, %cst_25 [1] : vector<24x32xf32> to vector<24xf32>
    %21 = vector.shape_cast %20 : vector<24xf32> to vector<24x1xf32>
    %cst_26 = arith.constant 3.200000e+01 : f32
    %22 = vector.broadcast %cst_26 : f32 to vector<24x1xf32>
    %23 = arith.divf %21, %22 : vector<24x1xf32>
    %24 = vector.broadcast %16 : vector<24x1xf32> to vector<24x32xf32>
    %25 = arith.subf %1, %24 : vector<24x32xf32>
    %cst_27 = arith.constant 9.99999974E-6 : f32
    %26 = vector.broadcast %cst_27 : f32 to vector<24x1xf32>
    %27 = arith.addf %23, %26 : vector<24x1xf32>
    %28 = math.rsqrt %27 : vector<24x1xf32>
    %29 = vector.broadcast %28 : vector<24x1xf32> to vector<24x32xf32>
    %30 = arith.mulf %25, %29 : vector<24x32xf32>
    %31 = vector.broadcast %5 : vector<1x32xf32> to vector<24x32xf32>
    %32 = arith.mulf %30, %31 : vector<24x32xf32>
    %33 = vector.broadcast %6 : vector<1x32xf32> to vector<24x32xf32>
    %34 = arith.addf %32, %33 : vector<24x32xf32>
    %cst_28 = arith.constant dense<0.000000e+00> : vector<24x96xf32>
    %35 = tpu.matmul %34, %2, %cst_28 {dimension_numbers = #tpu.dot_dimension_numbers<[1], [0], [0], [1], [0, 0, 1, 1], [], []>} : vector<24x32xf32>, vector<32x96xf32>, vector<24x96xf32> -> vector<24x96xf32>
    %36 = vector.shape_cast %35 : vector<24x96xf32> to vector<3x8x96xf32>
    %37 = tpu.iota {dimensions = array<i32: 0>} : vector<8x8xi32>
    %38 = tpu.iota {dimensions = array<i32: 1>} : vector<8x8xi32>
    %39 = arith.cmpi sge, %37, %38 : vector<8x8xi32>
    %cst_29 = arith.constant 0.000000e+00 : f32
    %cst_30 = arith.constant -1.000000e+30 : f32
    %40 = vector.broadcast %cst_29 : f32 to vector<8x8xf32>
    %41 = vector.broadcast %cst_30 : f32 to vector<8x8xf32>
    %42 = arith.select %39, %40, %41 : vector<8x8xi1>, vector<8x8xf32>
    %cst_31 = arith.constant 0.000000e+00 : f32
    %43 = vector.broadcast %cst_31 : f32 to vector<24x32xf32>
    %44 = vector.extract_strided_slice %36 {offsets = [0, 0, 0], sizes = [3, 8, 8], strides = [1, 1, 1]} : vector<3x8x96xf32> to vector<3x8x8xf32>
    %45 = vector.extract_strided_slice %36 {offsets = [0, 0, 32], sizes = [3, 8, 8], strides = [1, 1, 1]} : vector<3x8x96xf32> to vector<3x8x8xf32>
    %46 = vector.extract_strided_slice %36 {offsets = [0, 0, 64], sizes = [3, 8, 8], strides = [1, 1, 1]} : vector<3x8x96xf32> to vector<3x8x8xf32>
    "tpu.trace_start"() <{level = 10 : i32, message = "bqd,bkd->bqk"}> : () -> ()
    %cst_32 = arith.constant dense<0.000000e+00> : vector<3x8x8xf32>
    %47 = tpu.matmul %44, %45, %cst_32 {dimension_numbers = #tpu.dot_dimension_numbers<[2], [2], [1], [1], [0, 0, 0, 1, 1, 1], [0], [0]>} : vector<3x8x8xf32>, vector<3x8x8xf32>, vector<3x8x8xf32> -> vector<3x8x8xf32>
    "tpu.trace_stop"() : () -> ()
    %cst_33 = arith.constant 0.353553385 : f32
    %48 = vector.broadcast %cst_33 : f32 to vector<3x8x8xf32>
    %49 = arith.mulf %47, %48 : vector<3x8x8xf32>
    %50 = vector.shape_cast %42 : vector<8x8xf32> to vector<1x8x8xf32>
    %51 = vector.broadcast %50 : vector<1x8x8xf32> to vector<3x8x8xf32>
    %52 = arith.addf %49, %51 : vector<3x8x8xf32>
    %cst_34 = arith.constant dense<0xFF800000> : vector<3x8xf32>
    %53 = vector.multi_reduction <maximumf>, %52, %cst_34 [2] : vector<3x8x8xf32> to vector<3x8xf32>
    %54 = vector.shape_cast %53 : vector<3x8xf32> to vector<3x8x1xf32>
    %55 = vector.broadcast %54 : vector<3x8x1xf32> to vector<3x8x8xf32>
    %56 = arith.subf %52, %55 : vector<3x8x8xf32>
    %57 = math.exp %56 : vector<3x8x8xf32>
    %cst_35 = arith.constant dense<0.000000e+00> : vector<3x8xf32>
    %58 = vector.multi_reduction <add>, %57, %cst_35 [2] : vector<3x8x8xf32> to vector<3x8xf32>
    %59 = vector.shape_cast %58 : vector<3x8xf32> to vector<3x8x1xf32>
    %60 = tpu.reciprocal %59 : vector<3x8x1xf32> -> vector<3x8x1xf32>
    %61 = vector.broadcast %60 : vector<3x8x1xf32> to vector<3x8x8xf32>
    %62 = arith.mulf %57, %61 : vector<3x8x8xf32>
    "tpu.trace_start"() <{level = 10 : i32, message = "bqk,bkd->bqd"}> : () -> ()
    %cst_36 = arith.constant dense<0.000000e+00> : vector<3x8x8xf32>
    %63 = tpu.matmul %62, %46, %cst_36 {dimension_numbers = #tpu.dot_dimension_numbers<[2], [1], [1], [2], [0, 0, 0, 1, 1, 2], [0], [0]>} : vector<3x8x8xf32>, vector<3x8x8xf32>, vector<3x8x8xf32> -> vector<3x8x8xf32>
    "tpu.trace_stop"() : () -> ()
    %64 = vector.shape_cast %63 : vector<3x8x8xf32> to vector<24x8xf32>
    %65 = vector.extract_strided_slice %3 {offsets = [0, 0], sizes = [8, 32], strides = [1, 1]} : vector<32x32xf32> to vector<8x32xf32>
    %cst_37 = arith.constant dense<0.000000e+00> : vector<24x32xf32>
    %66 = tpu.matmul %64, %65, %cst_37 {dimension_numbers = #tpu.dot_dimension_numbers<[1], [0], [0], [1], [0, 0, 1, 1], [], []>} : vector<24x8xf32>, vector<8x32xf32>, vector<24x32xf32> -> vector<24x32xf32>
    %67 = arith.addf %43, %66 : vector<24x32xf32>
    %68 = vector.extract_strided_slice %36 {offsets = [0, 0, 8], sizes = [3, 8, 8], strides = [1, 1, 1]} : vector<3x8x96xf32> to vector<3x8x8xf32>
    %69 = vector.extract_strided_slice %36 {offsets = [0, 0, 40], sizes = [3, 8, 8], strides = [1, 1, 1]} : vector<3x8x96xf32> to vector<3x8x8xf32>
    %70 = vector.extract_strided_slice %36 {offsets = [0, 0, 72], sizes = [3, 8, 8], strides = [1, 1, 1]} : vector<3x8x96xf32> to vector<3x8x8xf32>
    "tpu.trace_start"() <{level = 10 : i32, message = "bqd,bkd->bqk"}> : () -> ()
    %cst_38 = arith.constant dense<0.000000e+00> : vector<3x8x8xf32>
    %71 = tpu.matmul %68, %69, %cst_38 {dimension_numbers = #tpu.dot_dimension_numbers<[2], [2], [1], [1], [0, 0, 0, 1, 1, 1], [0], [0]>} : vector<3x8x8xf32>, vector<3x8x8xf32>, vector<3x8x8xf32> -> vector<3x8x8xf32>
    "tpu.trace_stop"() : () -> ()
    %cst_39 = arith.constant 0.353553385 : f32
    %72 = vector.broadcast %cst_39 : f32 to vector<3x8x8xf32>
    %73 = arith.mulf %71, %72 : vector<3x8x8xf32>
    %74 = vector.shape_cast %42 : vector<8x8xf32> to vector<1x8x8xf32>
    %75 = vector.broadcast %74 : vector<1x8x8xf32> to vector<3x8x8xf32>
    %76 = arith.addf %73, %75 : vector<3x8x8xf32>
    %cst_40 = arith.constant dense<0xFF800000> : vector<3x8xf32>
    %77 = vector.multi_reduction <maximumf>, %76, %cst_40 [2] : vector<3x8x8xf32> to vector<3x8xf32>
    %78 = vector.shape_cast %77 : vector<3x8xf32> to vector<3x8x1xf32>
    %79 = vector.broadcast %78 : vector<3x8x1xf32> to vector<3x8x8xf32>
    %80 = arith.subf %76, %79 : vector<3x8x8xf32>
    %81 = math.exp %80 : vector<3x8x8xf32>
    %cst_41 = arith.constant dense<0.000000e+00> : vector<3x8xf32>
    %82 = vector.multi_reduction <add>, %81, %cst_41 [2] : vector<3x8x8xf32> to vector<3x8xf32>
    %83 = vector.shape_cast %82 : vector<3x8xf32> to vector<3x8x1xf32>
    %84 = tpu.reciprocal %83 : vector<3x8x1xf32> -> vector<3x8x1xf32>
    %85 = vector.broadcast %84 : vector<3x8x1xf32> to vector<3x8x8xf32>
    %86 = arith.mulf %81, %85 : vector<3x8x8xf32>
    "tpu.trace_start"() <{level = 10 : i32, message = "bqk,bkd->bqd"}> : () -> ()
    %cst_42 = arith.constant dense<0.000000e+00> : vector<3x8x8xf32>
    %87 = tpu.matmul %86, %70, %cst_42 {dimension_numbers = #tpu.dot_dimension_numbers<[2], [1], [1], [2], [0, 0, 0, 1, 1, 2], [0], [0]>} : vector<3x8x8xf32>, vector<3x8x8xf32>, vector<3x8x8xf32> -> vector<3x8x8xf32>
    "tpu.trace_stop"() : () -> ()
    %88 = vector.shape_cast %87 : vector<3x8x8xf32> to vector<24x8xf32>
    %89 = vector.extract_strided_slice %3 {offsets = [8, 0], sizes = [8, 32], strides = [1, 1]} : vector<32x32xf32> to vector<8x32xf32>
    %cst_43 = arith.constant dense<0.000000e+00> : vector<24x32xf32>
    %90 = tpu.matmul %88, %89, %cst_43 {dimension_numbers = #tpu.dot_dimension_numbers<[1], [0], [0], [1], [0, 0, 1, 1], [], []>} : vector<24x8xf32>, vector<8x32xf32>, vector<24x32xf32> -> vector<24x32xf32>
    %91 = arith.addf %67, %90 : vector<24x32xf32>
    %92 = vector.extract_strided_slice %36 {offsets = [0, 0, 16], sizes = [3, 8, 8], strides = [1, 1, 1]} : vector<3x8x96xf32> to vector<3x8x8xf32>
    %93 = vector.extract_strided_slice %36 {offsets = [0, 0, 48], sizes = [3, 8, 8], strides = [1, 1, 1]} : vector<3x8x96xf32> to vector<3x8x8xf32>
    %94 = vector.extract_strided_slice %36 {offsets = [0, 0, 80], sizes = [3, 8, 8], strides = [1, 1, 1]} : vector<3x8x96xf32> to vector<3x8x8xf32>
    "tpu.trace_start"() <{level = 10 : i32, message = "bqd,bkd->bqk"}> : () -> ()
    %cst_44 = arith.constant dense<0.000000e+00> : vector<3x8x8xf32>
    %95 = tpu.matmul %92, %93, %cst_44 {dimension_numbers = #tpu.dot_dimension_numbers<[2], [2], [1], [1], [0, 0, 0, 1, 1, 1], [0], [0]>} : vector<3x8x8xf32>, vector<3x8x8xf32>, vector<3x8x8xf32> -> vector<3x8x8xf32>
    "tpu.trace_stop"() : () -> ()
    %cst_45 = arith.constant 0.353553385 : f32
    %96 = vector.broadcast %cst_45 : f32 to vector<3x8x8xf32>
    %97 = arith.mulf %95, %96 : vector<3x8x8xf32>
    %98 = vector.shape_cast %42 : vector<8x8xf32> to vector<1x8x8xf32>
    %99 = vector.broadcast %98 : vector<1x8x8xf32> to vector<3x8x8xf32>
    %100 = arith.addf %97, %99 : vector<3x8x8xf32>
    %cst_46 = arith.constant dense<0xFF800000> : vector<3x8xf32>
    %101 = vector.multi_reduction <maximumf>, %100, %cst_46 [2] : vector<3x8x8xf32> to vector<3x8xf32>
    %102 = vector.shape_cast %101 : vector<3x8xf32> to vector<3x8x1xf32>
    %103 = vector.broadcast %102 : vector<3x8x1xf32> to vector<3x8x8xf32>
    %104 = arith.subf %100, %103 : vector<3x8x8xf32>
    %105 = math.exp %104 : vector<3x8x8xf32>
    %cst_47 = arith.constant dense<0.000000e+00> : vector<3x8xf32>
    %106 = vector.multi_reduction <add>, %105, %cst_47 [2] : vector<3x8x8xf32> to vector<3x8xf32>
    %107 = vector.shape_cast %106 : vector<3x8xf32> to vector<3x8x1xf32>
    %108 = tpu.reciprocal %107 : vector<3x8x1xf32> -> vector<3x8x1xf32>
    %109 = vector.broadcast %108 : vector<3x8x1xf32> to vector<3x8x8xf32>
    %110 = arith.mulf %105, %109 : vector<3x8x8xf32>
    "tpu.trace_start"() <{level = 10 : i32, message = "bqk,bkd->bqd"}> : () -> ()
    %cst_48 = arith.constant dense<0.000000e+00> : vector<3x8x8xf32>
    %111 = tpu.matmul %110, %94, %cst_48 {dimension_numbers = #tpu.dot_dimension_numbers<[2], [1], [1], [2], [0, 0, 0, 1, 1, 2], [0], [0]>} : vector<3x8x8xf32>, vector<3x8x8xf32>, vector<3x8x8xf32> -> vector<3x8x8xf32>
    "tpu.trace_stop"() : () -> ()
    %112 = vector.shape_cast %111 : vector<3x8x8xf32> to vector<24x8xf32>
    %113 = vector.extract_strided_slice %3 {offsets = [16, 0], sizes = [8, 32], strides = [1, 1]} : vector<32x32xf32> to vector<8x32xf32>
    %cst_49 = arith.constant dense<0.000000e+00> : vector<24x32xf32>
    %114 = tpu.matmul %112, %113, %cst_49 {dimension_numbers = #tpu.dot_dimension_numbers<[1], [0], [0], [1], [0, 0, 1, 1], [], []>} : vector<24x8xf32>, vector<8x32xf32>, vector<24x32xf32> -> vector<24x32xf32>
    %115 = arith.addf %91, %114 : vector<24x32xf32>
    %116 = vector.extract_strided_slice %36 {offsets = [0, 0, 24], sizes = [3, 8, 8], strides = [1, 1, 1]} : vector<3x8x96xf32> to vector<3x8x8xf32>
    %117 = vector.extract_strided_slice %36 {offsets = [0, 0, 56], sizes = [3, 8, 8], strides = [1, 1, 1]} : vector<3x8x96xf32> to vector<3x8x8xf32>
    %118 = vector.extract_strided_slice %36 {offsets = [0, 0, 88], sizes = [3, 8, 8], strides = [1, 1, 1]} : vector<3x8x96xf32> to vector<3x8x8xf32>
    "tpu.trace_start"() <{level = 10 : i32, message = "bqd,bkd->bqk"}> : () -> ()
    %cst_50 = arith.constant dense<0.000000e+00> : vector<3x8x8xf32>
    %119 = tpu.matmul %116, %117, %cst_50 {dimension_numbers = #tpu.dot_dimension_numbers<[2], [2], [1], [1], [0, 0, 0, 1, 1, 1], [0], [0]>} : vector<3x8x8xf32>, vector<3x8x8xf32>, vector<3x8x8xf32> -> vector<3x8x8xf32>
    "tpu.trace_stop"() : () -> ()
    %cst_51 = arith.constant 0.353553385 : f32
    %120 = vector.broadcast %cst_51 : f32 to vector<3x8x8xf32>
    %121 = arith.mulf %119, %120 : vector<3x8x8xf32>
    %122 = vector.shape_cast %42 : vector<8x8xf32> to vector<1x8x8xf32>
    %123 = vector.broadcast %122 : vector<1x8x8xf32> to vector<3x8x8xf32>
    %124 = arith.addf %121, %123 : vector<3x8x8xf32>
    %cst_52 = arith.constant dense<0xFF800000> : vector<3x8xf32>
    %125 = vector.multi_reduction <maximumf>, %124, %cst_52 [2] : vector<3x8x8xf32> to vector<3x8xf32>
    %126 = vector.shape_cast %125 : vector<3x8xf32> to vector<3x8x1xf32>
    %127 = vector.broadcast %126 : vector<3x8x1xf32> to vector<3x8x8xf32>
    %128 = arith.subf %124, %127 : vector<3x8x8xf32>
    %129 = math.exp %128 : vector<3x8x8xf32>
    %cst_53 = arith.constant dense<0.000000e+00> : vector<3x8xf32>
    %130 = vector.multi_reduction <add>, %129, %cst_53 [2] : vector<3x8x8xf32> to vector<3x8xf32>
    %131 = vector.shape_cast %130 : vector<3x8xf32> to vector<3x8x1xf32>
    %132 = tpu.reciprocal %131 : vector<3x8x1xf32> -> vector<3x8x1xf32>
    %133 = vector.broadcast %132 : vector<3x8x1xf32> to vector<3x8x8xf32>
    %134 = arith.mulf %129, %133 : vector<3x8x8xf32>
    "tpu.trace_start"() <{level = 10 : i32, message = "bqk,bkd->bqd"}> : () -> ()
    %cst_54 = arith.constant dense<0.000000e+00> : vector<3x8x8xf32>
    %135 = tpu.matmul %134, %118, %cst_54 {dimension_numbers = #tpu.dot_dimension_numbers<[2], [1], [1], [2], [0, 0, 0, 1, 1, 2], [0], [0]>} : vector<3x8x8xf32>, vector<3x8x8xf32>, vector<3x8x8xf32> -> vector<3x8x8xf32>
    "tpu.trace_stop"() : () -> ()
    %136 = vector.shape_cast %135 : vector<3x8x8xf32> to vector<24x8xf32>
    %137 = vector.extract_strided_slice %3 {offsets = [24, 0], sizes = [8, 32], strides = [1, 1]} : vector<32x32xf32> to vector<8x32xf32>
    %cst_55 = arith.constant dense<0.000000e+00> : vector<24x32xf32>
    %138 = tpu.matmul %136, %137, %cst_55 {dimension_numbers = #tpu.dot_dimension_numbers<[1], [0], [0], [1], [0, 0, 1, 1], [], []>} : vector<24x8xf32>, vector<8x32xf32>, vector<24x32xf32> -> vector<24x32xf32>
    %139 = arith.addf %115, %138 : vector<24x32xf32>
    %140 = arith.addf %1, %139 : vector<24x32xf32>
    %141 = vector.broadcast %4 : vector<1x32xf32> to vector<24x32xf32>
    %142 = arith.addf %140, %141 : vector<24x32xf32>
    %cst_56 = arith.constant dense<0.000000e+00> : vector<24xf32>
    %143 = vector.multi_reduction <add>, %142, %cst_56 [1] : vector<24x32xf32> to vector<24xf32>
    %144 = vector.shape_cast %143 : vector<24xf32> to vector<24x1xf32>
    %cst_57 = arith.constant 3.200000e+01 : f32
    %145 = vector.broadcast %cst_57 : f32 to vector<24x1xf32>
    %146 = arith.divf %144, %145 : vector<24x1xf32>
    %147 = vector.broadcast %146 : vector<24x1xf32> to vector<24x32xf32>
    %148 = arith.subf %142, %147 : vector<24x32xf32>
    %149 = arith.mulf %148, %148 : vector<24x32xf32>
    %cst_58 = arith.constant dense<0.000000e+00> : vector<24xf32>
    %150 = vector.multi_reduction <add>, %149, %cst_58 [1] : vector<24x32xf32> to vector<24xf32>
    %151 = vector.shape_cast %150 : vector<24xf32> to vector<24x1xf32>
    %cst_59 = arith.constant 3.200000e+01 : f32
    %152 = vector.broadcast %cst_59 : f32 to vector<24x1xf32>
    %153 = arith.divf %151, %152 : vector<24x1xf32>
    %154 = vector.broadcast %146 : vector<24x1xf32> to vector<24x32xf32>
    %155 = arith.subf %142, %154 : vector<24x32xf32>
    %cst_60 = arith.constant 9.99999974E-6 : f32
    %156 = vector.broadcast %cst_60 : f32 to vector<24x1xf32>
    %157 = arith.addf %153, %156 : vector<24x1xf32>
    %158 = math.rsqrt %157 : vector<24x1xf32>
    %159 = vector.broadcast %158 : vector<24x1xf32> to vector<24x32xf32>
    %160 = arith.mulf %155, %159 : vector<24x32xf32>
    %161 = vector.broadcast %7 : vector<1x32xf32> to vector<24x32xf32>
    %162 = arith.mulf %160, %161 : vector<24x32xf32>
    %163 = vector.broadcast %8 : vector<1x32xf32> to vector<24x32xf32>
    %164 = arith.addf %162, %163 : vector<24x32xf32>
    %cst_61 = arith.constant dense<0.000000e+00> : vector<24x128xf32>
    %165 = tpu.matmul %164, %9, %cst_61 {dimension_numbers = #tpu.dot_dimension_numbers<[1], [0], [0], [1], [0, 0, 1, 1], [], []>} : vector<24x32xf32>, vector<32x128xf32>, vector<24x128xf32> -> vector<24x128xf32>
    %166 = vector.broadcast %10 : vector<1x128xf32> to vector<24x128xf32>
    %167 = arith.addf %165, %166 : vector<24x128xf32>
    %cst_62 = arith.constant 0.000000e+00 : f32
    %168 = vector.broadcast %cst_62 : f32 to vector<24x128xf32>
    %169 = arith.maximumf %167, %168 : vector<24x128xf32>
    %cst_63 = arith.constant dense<0.000000e+00> : vector<24x32xf32>
    %170 = tpu.matmul %169, %11, %cst_63 {dimension_numbers = #tpu.dot_dimension_numbers<[1], [0], [0], [1], [0, 0, 1, 1], [], []>} : vector<24x128xf32>, vector<128x32xf32>, vector<24x32xf32> -> vector<24x32xf32>
    %171 = vector.broadcast %12 : vector<1x32xf32> to vector<24x32xf32>
    %172 = arith.addf %170, %171 : vector<24x32xf32>
    %173 = arith.addf %142, %172 : vector<24x32xf32>
    %174 = vector.shape_cast %173 : vector<24x32xf32> to vector<3x8x32xf32>
    %c0_64 = arith.constant 0 : index
    %c0_65 = arith.constant 0 : index
    %c0_66 = arith.constant 0 : index
    %175 = vector.load %arg13[%c0_64, %c0_65, %c0_66] : memref<3x8x32xf32, #tpu.memory_space<vmem>>, vector<3x8x32xf32>
    tpu.vector_store %arg13[%c0_64, %c0_65, %c0_66], %174 {strides = array<i32>} : memref<3x8x32xf32, #tpu.memory_space<vmem>>, vector<3x8x32xf32>,
    return
  }
  func.func @transform_0(%arg0: i32) -> (i32, i32, i32) {
    %c0_i32 = arith.constant 0 : i32
    %c0_i32_0 = arith.constant 0 : i32
    %c0_i32_1 = arith.constant 0 : i32
    return %arg0, %c0_i32, %c0_i32_0 : i32, i32, i32
  }
  func.func @transform_1(%arg0: i32) -> (i32, i32) {
    %c0_i32 = arith.constant 0 : i32
    %c0_i32_0 = arith.constant 0 : i32
    %c0_i32_1 = arith.constant 0 : i32
    return %c0_i32, %c0_i32_0 : i32, i32
  }
  func.func @transform_2(%arg0: i32) -> (i32, i32) {
    %c0_i32 = arith.constant 0 : i32
    %c0_i32_0 = arith.constant 0 : i32
    %c0_i32_1 = arith.constant 0 : i32
    return %c0_i32, %c0_i32_0 : i32, i32
  }
  func.func @transform_3(%arg0: i32) -> (i32, i32) {
    %c0_i32 = arith.constant 0 : i32
    %c0_i32_0 = arith.constant 0 : i32
    %c0_i32_1 = arith.constant 0 : i32
    return %c0_i32, %c0_i32_0 : i32, i32
  }
  func.func @transform_4(%arg0: i32) -> (i32, i32) {
    %c0_i32 = arith.constant 0 : i32
    %c0_i32_0 = arith.constant 0 : i32
    %c0_i32_1 = arith.constant 0 : i32
    return %c0_i32, %c0_i32_0 : i32, i32
  }
  func.func @transform_5(%arg0: i32) -> (i32, i32) {
    %c0_i32 = arith.constant 0 : i32
    %c0_i32_0 = arith.constant 0 : i32
    %c0_i32_1 = arith.constant 0 : i32
    return %c0_i32, %c0_i32_0 : i32, i32
  }
  func.func @transform_6(%arg0: i32) -> (i32, i32) {
    %c0_i32 = arith.constant 0 : i32
    %c0_i32_0 = arith.constant 0 : i32
    %c0_i32_1 = arith.constant 0 : i32
    return %c0_i32, %c0_i32_0 : i32, i32
  }
  func.func @transform_7(%arg0: i32) -> (i32, i32) {
    %c0_i32 = arith.constant 0 : i32
    %c0_i32_0 = arith.constant 0 : i32
    %c0_i32_1 = arith.constant 0 : i32
    return %c0_i32, %c0_i32_0 : i32, i32
  }
  func.func @transform_8(%arg0: i32) -> (i32, i32) {
    %c0_i32 = arith.constant 0 : i32
    %c0_i32_0 = arith.constant 0 : i32
    %c0_i32_1 = arith.constant 0 : i32
    return %c0_i32, %c0_i32_0 : i32, i32
  }
  func.func @transform_9(%arg0: i32) -> (i32, i32) {
    %c0_i32 = arith.constant 0 : i32
    %c0_i32_0 = arith.constant 0 : i32
    %c0_i32_1 = arith.constant 0 : i32
    return %c0_i32, %c0_i32_0 : i32, i32
  }
  func.func @transform_10(%arg0: i32) -> (i32, i32) {
    %c0_i32 = arith.constant 0 : i32
    %c0_i32_0 = arith.constant 0 : i32
    %c0_i32_1 = arith.constant 0 : i32
    return %c0_i32, %c0_i32_0 : i32, i32
  }
  func.func @transform_11(%arg0: i32) -> (i32, i32) {
    %c0_i32 = arith.constant 0 : i32
    %c0_i32_0 = arith.constant 0 : i32
    %c0_i32_1 = arith.constant 0 : i32
    return %c0_i32, %c0_i32_0 : i32, i32
  }
  func.func @transform_12(%arg0: i32) -> (i32, i32, i32) {
    %c0_i32 = arith.constant 0 : i32
    %c0_i32_0 = arith.constant 0 : i32
    %c0_i32_1 = arith.constant 0 : i32
    return %arg0, %c0_i32, %c0_i32_0 : i32, i32, i32
  }
}

</mosaic_0001>

<llo_original>
// kernel: tpu_custom_call.1
$region0: #{tpu_custom_call.1}
  #allocation0 [shape = 'u32[]', space=smem, size = 0x4, offset = 0x4, fixed_abs, tag = 'smem constant byte address 0x4 - core index']
  #allocation1 [shape = 'u32[144,128]{1,0:T(1,128)}', space=vmem, size = 0x12000, scoped, tag = 'internal scratch']
  %s0 = inlined_call_operand.vmem [shape: f32[6,8,32], index: 0, kind: input, shape index: {}]
  %s1 = inlined_call_operand.vmem [shape: f32[32,96], index: 1, kind: input, shape index: {}]
  %s2 = inlined_call_operand.vmem [shape: f32[32,32], index: 2, kind: input, shape index: {}]
  %s3 = inlined_call_operand.vmem [shape: f32[1,32], index: 3, kind: input, shape index: {}]
  %s4 = inlined_call_operand.vmem [shape: f32[1,32], index: 4, kind: input, shape index: {}]
  %s5 = inlined_call_operand.vmem [shape: f32[1,32], index: 5, kind: input, shape index: {}]
  %s6 = inlined_call_operand.vmem [shape: f32[1,32], index: 6, kind: input, shape index: {}]
  %s7 = inlined_call_operand.vmem [shape: f32[1,32], index: 7, kind: input, shape index: {}]
  %s8 = inlined_call_operand.vmem [shape: f32[32,128], index: 8, kind: input, shape index: {}]
  %s9 = inlined_call_operand.vmem [shape: f32[1,128], index: 9, kind: input, shape index: {}]
  %s10 = inlined_call_operand.vmem [shape: f32[128,32], index: 10, kind: input, shape index: {}]
  %s11 = inlined_call_operand.vmem [shape: f32[1,32], index: 11, kind: input, shape index: {}]
  %s12 = inlined_call_operand.hbm [shape: f32[6,8,32], index: 12, kind: output, shape index: {}]
  %s13 = sld [smem:[#allocation0]]
  $region81: #{tpu_custom_call.1} parent=0
    _
  %s15 = ssub.s32 1, %s13
  %s16 = scalar_select 0, %s15, %s13
  $region1: #{tpu_custom_call.1} parent=0
    #allocation2 [shape = 'u8[24576]{0}', space=vmem, size = 0x6000, scoped, tag = 'output window, operand 0']
    #allocation3 [shape = 's32[2]{0}', space=sflag, size = 0x8, scoped, tag = 'scoped memory for tpu_custom_call.1']
    %17 = vsyncpa [#allocation3], 0
    %s18 = scalar_lea.sflag [#allocation3], 1
    %19 = vsyncpa %s18, 0
    loop: start=0, step=1, limit=4
    $region2: #{tpu_custom_call.1} parent=1 // loop_pre_header
      _
    $region3: #{tpu_custom_call.1} parent=1 // loop_header
      %s21 = sphi 0, %s25
      %p22 = scmp.ge.s32.totalorder %s21, 4
      %s31 = sphi 0, %s33
      %s34 = sphi 0, %s31
      %s35 = sphi 0, %s34
      %s51 = sphi 0, %s35
      %s55 = sphi 0, %s55
      %s57 = sphi 0, %s55
      %s58 = sphi 0, %s57
      %s72 = sphi 0, %s58
      %s76 = sphi 0, %s76
      %s78 = sphi 0, %s76
      %s79 = sphi 0, %s78
      %s93 = sphi 0, %s79
      %s97 = sphi 0, %s97
      %s99 = sphi 0, %s97
      %s100 = sphi 0, %s99
      %s114 = sphi 0, %s100
      %s118 = sphi 0, %s118
      %s120 = sphi 0, %s118
      %s121 = sphi 0, %s120
      %s135 = sphi 0, %s121
      %s139 = sphi 0, %s139
      %s141 = sphi 0, %s139
      %s142 = sphi 0, %s141
      %s156 = sphi 0, %s142
      %s160 = sphi 0, %s160
      %s162 = sphi 0, %s160
      %s163 = sphi 0, %s162
      %s177 = sphi 0, %s163
      %s181 = sphi 0, %s181
      %s183 = sphi 0, %s181
      %s184 = sphi 0, %s183
      %s198 = sphi 0, %s184
      %s202 = sphi 0, %s202
      %s204 = sphi 0, %s202
      %s205 = sphi 0, %s204
      %s219 = sphi 0, %s205
      %s223 = sphi 0, %s223
      %s225 = sphi 0, %s223
      %s226 = sphi 0, %s225
      %s240 = sphi 0, %s226
      %s244 = sphi 0, %s244
      %s246 = sphi 0, %s244
      %s247 = sphi 0, %s246
      %s261 = sphi 0, %s247
      %s265 = sphi 0, %s265
      %s267 = sphi 0, %s265
      %s268 = sphi 0, %s267
      %s282 = sphi 0, %s268
      %s288 = sphi 0, %s290
      %s291 = sphi 0, %s288
      %s292 = sphi 0, %s291
      %s308 = sphi 0, %s292
    $region4: #{tpu_custom_call.1} parent=1 // loop_header_branch
      %24 = sbr.rel (%p22) target = $region8
    $region5: #{tpu_custom_call.1} parent=1 // loop_body
      %s26 = ssub.s32 %s21, 1
      %s27 = ssub.s32 %s21, 2
      %s28 = sadd.s32 %s21, 1
      %s29 = ssub.s32 %s21, %s28
      %p30 = scmp.eq.s32.totalorder %s29, 0
      %s32 = sadd.s32 %s31, 1
      %s33 = scalar_select %p30, %s31, %s32
      %p36 = pneg %p30
      %p37 = scmp.eq.s32.totalorder %s21, 1
      %p38 = por %p36, %p37
      %p39 = scmp.ne.s32.totalorder %s31, %s34
      %p40 = scmp.eq.s32.totalorder %s21, 0
      %p41 = por %p39, %p40
      %p42 = scmp.ne.s32.totalorder %s31, %s34
      %p43 = scmp.eq.s32.totalorder %s26, 1
      %p44 = por %p42, %p43
      %p45 = scmp.ne.s32.totalorder %s34, %s35
      %p46 = scmp.eq.s32.totalorder %s26, 0
      %p47 = por %p45, %p46
      %p48 = scmp.ne.s32.totalorder %s34, %s35
      %p49 = scmp.eq.s32.totalorder %s27, 1
      %p50 = por %p48, %p49
      %p52 = scmp.ne.s32.totalorder %s35, %s51
      %p53 = scmp.eq.s32.totalorder %s27, 0
      %p54 = por %p52, %p53
      %s56 = sadd.s32 %s55, 1
      %p59 = scmp.eq.s32.totalorder %s21, 1
      %p60 = scmp.ne.s32.totalorder %s55, %s57
      %p61 = scmp.eq.s32.totalorder %s21, 0
      %p62 = por %p60, %p61
      %p63 = scmp.ne.s32.totalorder %s55, %s57
      %p64 = scmp.eq.s32.totalorder %s26, 1
      %p65 = por %p63, %p64
      %p66 = scmp.ne.s32.totalorder %s57, %s58
      %p67 = scmp.eq.s32.totalorder %s26, 0
      %p68 = por %p66, %p67
      %p69 = scmp.ne.s32.totalorder %s57, %s58
      %p70 = scmp.eq.s32.totalorder %s27, 1
      %p71 = por %p69, %p70
      %p73 = scmp.ne.s32.totalorder %s58, %s72
      %p74 = scmp.eq.s32.totalorder %s27, 0
      %p75 = por %p73, %p74
      %s77 = sadd.s32 %s76, 1
      %p80 = scmp.eq.s32.totalorder %s21, 1
      %p81 = scmp.ne.s32.totalorder %s76, %s78
      %p82 = scmp.eq.s32.totalorder %s21, 0
      %p83 = por %p81, %p82
      %p84 = scmp.ne.s32.totalorder %s76, %s78
      %p85 = scmp.eq.s32.totalorder %s26, 1
      %p86 = por %p84, %p85
      %p87 = scmp.ne.s32.totalorder %s78, %s79
      %p88 = scmp.eq.s32.totalorder %s26, 0
      %p89 = por %p87, %p88
      %p90 = scmp.ne.s32.totalorder %s78, %s79
      %p91 = scmp.eq.s32.totalorder %s27, 1
      %p92 = por %p90, %p91
      %p94 = scmp.ne.s32.totalorder %s79, %s93
      %p95 = scmp.eq.s32.totalorder %s27, 0
      %p96 = por %p94, %p95
      %s98 = sadd.s32 %s97, 1
      %p101 = scmp.eq.s32.totalorder %s21, 1
      %p102 = scmp.ne.s32.totalorder %s97, %s99
      %p103 = scmp.eq.s32.totalorder %s21, 0
      %p104 = por %p102, %p103
      %p105 = scmp.ne.s32.totalorder %s97, %s99
      %p106 = scmp.eq.s32.totalorder %s26, 1
      %p107 = por %p105, %p106
      %p108 = scmp.ne.s32.totalorder %s99, %s100
      %p109 = scmp.eq.s32.totalorder %s26, 0
      %p110 = por %p108, %p109
      %p111 = scmp.ne.s32.totalorder %s99, %s100
      %p112 = scmp.eq.s32.totalorder %s27, 1
      %p113 = por %p111, %p112
      %p115 = scmp.ne.s32.totalorder %s100, %s114
      %p116 = scmp.eq.s32.totalorder %s27, 0
      %p117 = por %p115, %p116
      %s119 = sadd.s32 %s118, 1
      %p122 = scmp.eq.s32.totalorder %s21, 1
      %p123 = scmp.ne.s32.totalorder %s118, %s120
      %p124 = scmp.eq.s32.totalorder %s21, 0
      %p125 = por %p123, %p124
      %p126 = scmp.ne.s32.totalorder %s118, %s120
      %p127 = scmp.eq.s32.totalorder %s26, 1
      %p128 = por %p126, %p127
      %p129 = scmp.ne.s32.totalorder %s120, %s121
      %p130 = scmp.eq.s32.totalorder %s26, 0
      %p131 = por %p129, %p130
      %p132 = scmp.ne.s32.totalorder %s120, %s121
      %p133 = scmp.eq.s32.totalorder %s27, 1
      %p134 = por %p132, %p133
      %p136 = scmp.ne.s32.totalorder %s121, %s135
      %p137 = scmp.eq.s32.totalorder %s27, 0
      %p138 = por %p136, %p137
      %s140 = sadd.s32 %s139, 1
      %p143 = scmp.eq.s32.totalorder %s21, 1
      %p144 = scmp.ne.s32.totalorder %s139, %s141
      %p145 = scmp.eq.s32.totalorder %s21, 0
      %p146 = por %p144, %p145
      %p147 = scmp.ne.s32.totalorder %s139, %s141
      %p148 = scmp.eq.s32.totalorder %s26, 1
      %p149 = por %p147, %p148
      %p150 = scmp.ne.s32.totalorder %s141, %s142
      %p151 = scmp.eq.s32.totalorder %s26, 0
      %p152 = por %p150, %p151
      %p153 = scmp.ne.s32.totalorder %s141, %s142
      %p154 = scmp.eq.s32.totalorder %s27, 1
      %p155 = por %p153, %p154
      %p157 = scmp.ne.s32.totalorder %s142, %s156
      %p158 = scmp.eq.s32.totalorder %s27, 0
      %p159 = por %p157, %p158
      %s161 = sadd.s32 %s160, 1
      %p164 = scmp.eq.s32.totalorder %s21, 1
      %p165 = scmp.ne.s32.totalorder %s160, %s162
      %p166 = scmp.eq.s32.totalorder %s21, 0
      %p167 = por %p165, %p166
      %p168 = scmp.ne.s32.totalorder %s160, %s162
      %p169 = scmp.eq.s32.totalorder %s26, 1
      %p170 = por %p168, %p169
      %p171 = scmp.ne.s32.totalorder %s162, %s163
      %p172 = scmp.eq.s32.totalorder %s26, 0
      %p173 = por %p171, %p172
      %p174 = scmp.ne.s32.totalorder %s162, %s163
      %p175 = scmp.eq.s32.totalorder %s27, 1
      %p176 = por %p174, %p175
      %p178 = scmp.ne.s32.totalorder %s163, %s177
      %p179 = scmp.eq.s32.totalorder %s27, 0
      %p180 = por %p178, %p179
      %s182 = sadd.s32 %s181, 1
      %p185 = scmp.eq.s32.totalorder %s21, 1
      %p186 = scmp.ne.s32.totalorder %s181, %s183
      %p187 = scmp.eq.s32.totalorder %s21, 0
      %p188 = por %p186, %p187
      %p189 = scmp.ne.s32.totalorder %s181, %s183
      %p190 = scmp.eq.s32.totalorder %s26, 1
      %p191 = por %p189, %p190
      %p192 = scmp.ne.s32.totalorder %s183, %s184
      %p193 = scmp.eq.s32.totalorder %s26, 0
      %p194 = por %p192, %p193
      %p195 = scmp.ne.s32.totalorder %s183, %s184
      %p196 = scmp.eq.s32.totalorder %s27, 1
      %p197 = por %p195, %p196
      %p199 = scmp.ne.s32.totalorder %s184, %s198
      %p200 = scmp.eq.s32.totalorder %s27, 0
      %p201 = por %p199, %p200
      %s203 = sadd.s32 %s202, 1
      %p206 = scmp.eq.s32.totalorder %s21, 1
      %p207 = scmp.ne.s32.totalorder %s202, %s204
      %p208 = scmp.eq.s32.totalorder %s21, 0
      %p209 = por %p207, %p208
      %p210 = scmp.ne.s32.totalorder %s202, %s204
      %p211 = scmp.eq.s32.totalorder %s26, 1
      %p212 = por %p210, %p211
      %p213 = scmp.ne.s32.totalorder %s204, %s205
      %p214 = scmp.eq.s32.totalorder %s26, 0
      %p215 = por %p213, %p214
      %p216 = scmp.ne.s32.totalorder %s204, %s205
      %p217 = scmp.eq.s32.totalorder %s27, 1
      %p218 = por %p216, %p217
      %p220 = scmp.ne.s32.totalorder %s205, %s219
      %p221 = scmp.eq.s32.totalorder %s27, 0
      %p222 = por %p220, %p221
      %s224 = sadd.s32 %s223, 1
      %p227 = scmp.eq.s32.totalorder %s21, 1
      %p228 = scmp.ne.s32.totalorder %s223, %s225
      %p229 = scmp.eq.s32.totalorder %s21, 0
      %p230 = por %p228, %p229
      %p231 = scmp.ne.s32.totalorder %s223, %s225
      %p232 = scmp.eq.s32.totalorder %s26, 1
      %p233 = por %p231, %p232
      %p234 = scmp.ne.s32.totalorder %s225, %s226
      %p235 = scmp.eq.s32.totalorder %s26, 0
      %p236 = por %p234, %p235
      %p237 = scmp.ne.s32.totalorder %s225, %s226
      %p238 = scmp.eq.s32.totalorder %s27, 1
      %p239 = por %p237, %p238
      %p241 = scmp.ne.s32.totalorder %s226, %s240
      %p242 = scmp.eq.s32.totalorder %s27, 0
      %p243 = por %p241, %p242
      %s245 = sadd.s32 %s244, 1
      %p248 = scmp.eq.s32.totalorder %s21, 1
      %p249 = scmp.ne.s32.totalorder %s244, %s246
      %p250 = scmp.eq.s32.totalorder %s21, 0
      %p251 = por %p249, %p250
      %p252 = scmp.ne.s32.totalorder %s244, %s246
      %p253 = scmp.eq.s32.totalorder %s26, 1
      %p254 = por %p252, %p253
      %p255 = scmp.ne.s32.totalorder %s246, %s247
      %p256 = scmp.eq.s32.totalorder %s26, 0
      %p257 = por %p255, %p256
      %p258 = scmp.ne.s32.totalorder %s246, %s247
      %p259 = scmp.eq.s32.totalorder %s27, 1
      %p260 = por %p258, %p259
      %p262 = scmp.ne.s32.totalorder %s247, %s261
      %p263 = scmp.eq.s32.totalorder %s27, 0
      %p264 = por %p262, %p263
      %s266 = sadd.s32 %s265, 1
      %p269 = scmp.eq.s32.totalorder %s21, 1
      %p270 = scmp.ne.s32.totalorder %s265, %s267
      %p271 = scmp.eq.s32.totalorder %s21, 0
      %p272 = por %p270, %p271
      %p273 = scmp.ne.s32.totalorder %s265, %s267
      %p274 = scmp.eq.s32.totalorder %s26, 1
      %p275 = por %p273, %p274
      %p276 = scmp.ne.s32.totalorder %s267, %s268
      %p277 = scmp.eq.s32.totalorder %s26, 0
      %p278 = por %p276, %p277
      %p279 = scmp.ne.s32.totalorder %s267, %s268
      %p280 = scmp.eq.s32.totalorder %s27, 1
      %p281 = por %p279, %p280
      %p283 = scmp.ne.s32.totalorder %s268, %s282
      %p284 = scmp.eq.s32.totalorder %s27, 0
      %p285 = por %p283, %p284
      %s286 = ssub.s32 %s21, %s28
      %p287 = scmp.eq.s32.totalorder %s286, 0
      %s289 = sadd.s32 %s288, 1
      %s290 = scalar_select %p287, %s288, %s289
      %p293 = pneg %p287
      %p294 = scmp.eq.s32.totalorder %s21, 1
      %p295 = por %p293, %p294
      %p296 = scmp.ne.s32.totalorder %s288, %s291
      %p297 = scmp.eq.s32.totalorder %s21, 0
      %p298 = por %p296, %p297
      %p299 = scmp.ne.s32.totalorder %s288, %s291
      %p300 = scmp.eq.s32.totalorder %s26, 1
      %p301 = por %p299, %p300
      %p302 = scmp.ne.s32.totalorder %s291, %s292
      %p303 = scmp.eq.s32.totalorder %s26, 0
      %p304 = por %p302, %p303
      %p305 = scmp.ne.s32.totalorder %s291, %s292
      %p306 = scmp.eq.s32.totalorder %s27, 1
      %p307 = por %p305, %p306
      %p309 = scmp.ne.s32.totalorder %s292, %s308
      %p310 = scmp.eq.s32.totalorder %s27, 0
      %p311 = por %p309, %p310
      %p312 = scmp.le.s32.totalorder 1, %s21
      %p313 = scmp.lt.s32.totalorder %s21, 3
      %p314 = pnand %p312, %p313
      %p315 = pneg %p314
      // Predicated region
      $region9: #{tpu_custom_call.1} parent=5 // pred_check
        _
      $region10: #{tpu_custom_call.1} parent=5 // pred_check_branch
        %317 = sbr.rel (%p314) target = $region12
      $region11: #{tpu_custom_call.1} parent=5 // pred_region
        %s318 = ssub.s32 %s21, 1
        // Predicated region
        $region13: #{tpu_custom_call.1} parent=11 // pred_check
          %p319 = pneg %p68
        $region14: #{tpu_custom_call.1} parent=11 // pred_check_branch
          %321 = sbr.rel (%p319) target = $region16
        $region15: #{tpu_custom_call.1} parent=11 // pred_region
          _
        $region16: #{tpu_custom_call.1} parent=11 // pred_fallthru
          _
        // Predicated region
        $region17: #{tpu_custom_call.1} parent=11 // pred_check
          %p322 = pneg %p89
        $region18: #{tpu_custom_call.1} parent=11 // pred_check_branch
          %324 = sbr.rel (%p322) target = $region20
        $region19: #{tpu_custom_call.1} parent=11 // pred_region
          _
        $region20: #{tpu_custom_call.1} parent=11 // pred_fallthru
          _
        // Predicated region
        $region21: #{tpu_custom_call.1} parent=11 // pred_check
          %p325 = pneg %p110
        $region22: #{tpu_custom_call.1} parent=11 // pred_check_branch
          %327 = sbr.rel (%p325) target = $region24
        $region23: #{tpu_custom_call.1} parent=11 // pred_region
          _
        $region24: #{tpu_custom_call.1} parent=11 // pred_fallthru
          _
        // Predicated region
        $region25: #{tpu_custom_call.1} parent=11 // pred_check
          %p328 = pneg %p131
        $region26: #{tpu_custom_call.1} parent=11 // pred_check_branch
          %330 = sbr.rel (%p328) target = $region28
        $region27: #{tpu_custom_call.1} parent=11 // pred_region
          _
        $region28: #{tpu_custom_call.1} parent=11 // pred_fallthru
          _
        // Predicated region
        $region29: #{tpu_custom_call.1} parent=11 // pred_check
          %p331 = pneg %p152
        $region30: #{tpu_custom_call.1} parent=11 // pred_check_branch
          %333 = sbr.rel (%p331) target = $region32
        $region31: #{tpu_custom_call.1} parent=11 // pred_region
          _
        $region32: #{tpu_custom_call.1} parent=11 // pred_fallthru
          _
        // Predicated region
        $region33: #{tpu_custom_call.1} parent=11 // pred_check
          %p334 = pneg %p173
        $region34: #{tpu_custom_call.1} parent=11 // pred_check_branch
          %336 = sbr.rel (%p334) target = $region36
        $region35: #{tpu_custom_call.1} parent=11 // pred_region
          _
        $region36: #{tpu_custom_call.1} parent=11 // pred_fallthru
          _
        // Predicated region
        $region37: #{tpu_custom_call.1} parent=11 // pred_check
          %p337 = pneg %p194
        $region38: #{tpu_custom_call.1} parent=11 // pred_check_branch
          %339 = sbr.rel (%p337) target = $region40
        $region39: #{tpu_custom_call.1} parent=11 // pred_region
          _
        $region40: #{tpu_custom_call.1} parent=11 // pred_fallthru
          _
        // Predicated region
        $region41: #{tpu_custom_call.1} parent=11 // pred_check
          %p340 = pneg %p215
        $region42: #{tpu_custom_call.1} parent=11 // pred_check_branch
          %342 = sbr.rel (%p340) target = $region44
        $region43: #{tpu_custom_call.1} parent=11 // pred_region
          _
        $region44: #{tpu_custom_call.1} parent=11 // pred_fallthru
          _
        // Predicated region
        $region45: #{tpu_custom_call.1} parent=11 // pred_check
          %p343 = pneg %p236
        $region46: #{tpu_custom_call.1} parent=11 // pred_check_branch
          %345 = sbr.rel (%p343) target = $region48
        $region47: #{tpu_custom_call.1} parent=11 // pred_region
          _
        $region48: #{tpu_custom_call.1} parent=11 // pred_fallthru
          _
        // Predicated region
        $region49: #{tpu_custom_call.1} parent=11 // pred_check
          %p346 = pneg %p257
        $region50: #{tpu_custom_call.1} parent=11 // pred_check_branch
          %348 = sbr.rel (%p346) target = $region52
        $region51: #{tpu_custom_call.1} parent=11 // pred_region
          _
        $region52: #{tpu_custom_call.1} parent=11 // pred_fallthru
          _
        // Predicated region
        $region53: #{tpu_custom_call.1} parent=11 // pred_check
          %p349 = pneg %p278
        $region54: #{tpu_custom_call.1} parent=11 // pred_check_branch
          %351 = sbr.rel (%p349) target = $region56
        $region55: #{tpu_custom_call.1} parent=11 // pred_region
          _
        $region56: #{tpu_custom_call.1} parent=11 // pred_fallthru
          _
      $region12: #{tpu_custom_call.1} parent=5 // pred_fallthru
        _
      %p352 = scmp.lt.s32.totalorder %s21, 2
      // Predicated region
      $region57: #{tpu_custom_call.1} parent=5 // pred_check
        %p353 = pneg %p352
      $region58: #{tpu_custom_call.1} parent=5 // pred_check_branch
        %355 = sbr.rel (%p353) target = $region60
      $region59: #{tpu_custom_call.1} parent=5 // pred_region
        // Predicated region
        $region61: #{tpu_custom_call.1} parent=59 // pred_check
          %p356 = pneg %p41
        $region62: #{tpu_custom_call.1} parent=59 // pred_check_branch
          %358 = sbr.rel (%p356) target = $region64
        $region63: #{tpu_custom_call.1} parent=59 // pred_region
          %s359 = smul.u32 3, %s21
          %p360 = scmp.lt.s32.totalorder %s359, 5
          %s361 = scalar_select %p360, %s359, 5
          %s362 = smul.addr %s361, 8
          %s363 = scalar_lea.vmem %s0, %s362
          %s364 = smul.u32 3, %s21
        $region64: #{tpu_custom_call.1} parent=59 // pred_fallthru
          _
      $region60: #{tpu_custom_call.1} parent=5 // pred_fallthru
        _
      %p365 = scmp.le.s32.totalorder 1, %s21
      %p366 = scmp.lt.s32.totalorder %s21, 3
      %p367 = pnand %p365, %p366
      %p368 = pneg %p367
      // Predicated region
      $region65: #{tpu_custom_call.1} parent=5 // pred_check
        _
      $region66: #{tpu_custom_call.1} parent=5 // pred_check_branch
        %370 = sbr.rel (%p367) target = $region68
      $region67: #{tpu_custom_call.1} parent=5 // pred_region
        %s371 = ssub.s32 %s21, 1
        %s372 = smul.u32 3, %s26
        %p373 = scmp.lt.s32.totalorder %s372, 5
        %s374 = scalar_select %p373, %s372, 5
        %s375 = smul.addr %s374, 8
        %s376 = scalar_lea.vmem %s0, %s375
        %p377 = pneg %p47
        %p378 = pneg %p44
        %p379 = pneg %p68
        %p380 = pneg %p65
        %p381 = pneg %p89
        %p382 = pneg %p86
        %p383 = pneg %p110
        %p384 = pneg %p107
        %p385 = pneg %p131
        %p386 = pneg %p128
        %p387 = pneg %p152
        %p388 = pneg %p149
        %p389 = pneg %p173
        %p390 = pneg %p170
        %p391 = pneg %p194
        %p392 = pneg %p191
        %p393 = pneg %p215
        %p394 = pneg %p212
        %p395 = pneg %p236
        %p396 = pneg %p233
        %p397 = pneg %p257
        %p398 = pneg %p254
        %p399 = pneg %p278
        %p400 = pneg %p275
        %p401 = pneg %p304
        %p402 = pneg %p301
        %s403 = sand.u32 %s291, 1
        %s404 = scalar_lea.sflag [#allocation3], %s403
        %s405 = sand.u32 %s291, 1
        %s406 = smul.addr %s405, 24
        %s407 = scalar_lea.vmem [#allocation2], %s406
        %s408 = smul.u32 3, %s26
        %p409 = scmp.lt.s32.totalorder %s408, 5
        %s410 = scalar_select %p409, %s408, 5
        %s411 = smul.addr %s410, 8
        %s412 = scalar_lea.vmem %s0, %s411
        %s413 = smul.u32 3, %s26
        %s414 = smul.u32 3, %s26
        %v415 = vld [vmem:[%s412] sm:$0xff]
        %v416 = vld [vmem:[%s412 + $0x8] sm:$0xff]
        %v417 = vld [vmem:[%s412 + $0x10] sm:$0xff]
        %v418 = vld [vmem:[%s1] sm:$0xff]
        %v419 = vld [vmem:[%s1 + $0x8] sm:$0xff]
        %v420 = vld [vmem:[%s1 + $0x10] sm:$0xff]
        %v421 = vld [vmem:[%s1 + $0x18] sm:$0xff]
        %v422 = vld [vmem:[%s2] sm:$0xff]
        %v423 = vld [vmem:[%s2 + $0x8] sm:$0xff]
        %v424 = vld [vmem:[%s2 + $0x10] sm:$0xff]
        %v425 = vld [vmem:[%s2 + $0x18] sm:$0xff]
        %v426 = vld [vmem:[%s3] sm:$0x1]
        %v427 = vld [vmem:[%s4] sm:$0x1]
        %v428 = vld [vmem:[%s5] sm:$0x1]
        %v429 = vld [vmem:[%s6] sm:$0x1]
        %v430 = vld [vmem:[%s7] sm:$0x1]
        %v431 = vld [vmem:[%s8] sm:$0xff]
        %v432 = vld [vmem:[%s8 + $0x8] sm:$0xff]
        %v433 = vld [vmem:[%s8 + $0x10] sm:$0xff]
        %v434 = vld [vmem:[%s8 + $0x18] sm:$0xff]
        %v435 = vld [vmem:[%s9] sm:$0x1]
        %v436 = vld [vmem:[%s10] sm:$0xff]
        %v437 = vld [vmem:[%s10 + $0x8] sm:$0xff]
        %v438 = vld [vmem:[%s10 + $0x10] sm:$0xff]
        %v439 = vld [vmem:[%s10 + $0x18] sm:$0xff]
        %v440 = vld [vmem:[%s10 + $0x20] sm:$0xff]
        %v441 = vld [vmem:[%s10 + $0x28] sm:$0xff]
        %v442 = vld [vmem:[%s10 + $0x30] sm:$0xff]
        %v443 = vld [vmem:[%s10 + $0x38] sm:$0xff]
        %v444 = vld [vmem:[%s10 + $0x40] sm:$0xff]
        %v445 = vld [vmem:[%s10 + $0x48] sm:$0xff]
        %v446 = vld [vmem:[%s10 + $0x50] sm:$0xff]
        %v447 = vld [vmem:[%s10 + $0x58] sm:$0xff]
        %v448 = vld [vmem:[%s10 + $0x60] sm:$0xff]
        %v449 = vld [vmem:[%s10 + $0x68] sm:$0xff]
        %v450 = vld [vmem:[%s10 + $0x70] sm:$0xff]
        %v451 = vld [vmem:[%s10 + $0x78] sm:$0xff]
        %v452 = vld [vmem:[%s11] sm:$0x1]
        %vm453 = vcmask 261120
        %v454 = vsel %vm453, %v415, 0.0
        %455 = vadd.xlane.f32.xlu0 %v454
        %v456 = vpop.xlane.xlu0 %455
        %v457 = vsel %vm453, %v416, 0.0
        %458 = vadd.xlane.f32.xlu0 %v457
        %v459 = vpop.xlane.xlu0 %458
        %v460 = vsel %vm453, %v417, 0.0
        %461 = vadd.xlane.f32.xlu0 %v460
        %v462 = vpop.xlane.xlu0 %461
        %v463 = vrcp.pop 32.0
        %v464 = vmul.f32 %v456, %v463
        %v465 = vmul.f32 %v459, %v463
        %v466 = vmul.f32 %v462, %v463
        %v467 = vsub.f32 %v415, %v464
        %v468 = vsub.f32 %v416, %v465
        %v469 = vsub.f32 %v417, %v466
        %v470 = vmul.f32 %v467, %v467
        %v471 = vmul.f32 %v468, %v468
        %v472 = vmul.f32 %v469, %v469
        %v473 = vsel %vm453, %v470, 0.0
        %474 = vadd.xlane.f32.xlu0 %v473
        %v475 = vpop.xlane.xlu0 %474
        %v476 = vsel %vm453, %v471, 0.0
        %477 = vadd.xlane.f32.xlu0 %v476
        %v478 = vpop.xlane.xlu0 %477
        %v479 = vsel %vm453, %v472, 0.0
        %480 = vadd.xlane.f32.xlu0 %v479
        %v481 = vpop.xlane.xlu0 %480
        %v482 = vmul.f32 %v475, %v463
        %v483 = vmul.f32 %v478, %v463
        %v484 = vmul.f32 %v481, %v463
        %v485 = vadd.f32 %v482, 1e-05
        %v486 = vadd.f32 %v483, 1e-05
        %v487 = vadd.f32 %v484, 1e-05
        %v488 = vrsqrt.pop %v485
        %v489 = vrsqrt.pop %v486
        %v490 = vrsqrt.pop %v487
        %v491 = vmul.f32 %v467, %v488
        %v492 = vmul.f32 %v468, %v489
        %v493 = vmul.f32 %v469, %v490
        %v495 = vlaneseq
        %v496 = vshrl.u32 %v495, 7
        %v497 = vsub.s32 0, %v496
        %v498 = vrot.slane %v427, %v497
        %v500 = vmul.f32 %v491, %v498
        %v501 = vmul.f32 %v492, %v498
        %v502 = vmul.f32 %v493, %v498
        %v504 = vlaneseq
        %v505 = vshrl.u32 %v504, 7
        %v506 = vsub.s32 0, %v505
        %v507 = vrot.slane %v428, %v506
        %v509 = vadd.f32 %v500, %v507
        %v510 = vadd.f32 %v501, %v507
        %v511 = vadd.f32 %v502, %v507
        %v513 = vsel %vm453, %v509, 0
        %v516 = vsel %vm453, %v510, 0
        %v519 = vsel %vm453, %v511, 0
        %521 = vmatprep.subr.mxu0 0.0
        %522 = vmatpush1.msra.mxu0 %v418
        %523 = vmatprep.subr.mxu0 0.0
        %524 = vmatpush1.msra.mxu0 %v419
        %525 = vmatprep.subr.mxu0 0.0
        %526 = vmatpush1.msra.mxu0 %v420
        %527 = vmatprep.subr.mxu0 0.0
        %528 = vmatpush1.msra.mxu0 %v421
        %529 = vmatprep.subr.mxu0 0.0
        %530 = vmatpush1.msra.mxu0 0.0
        %531 = vmatprep.subr.mxu0 0.0
        %532 = vmatpush1.msra.mxu0 0.0
        %533 = vmatprep.subr.mxu0 0.0
        %534 = vmatpush1.msra.mxu0 0.0
        %535 = vmatprep.subr.mxu0 0.0
        %536 = vmatpush1.msra.mxu0 0.0
        %537 = vmatprep.subr.mxu0 0.0
        %538 = vmatpush1.msra.mxu0 0.0
        %539 = vmatprep.subr.mxu0 0.0
        %540 = vmatpush1.msra.mxu0 0.0
        %541 = vmatprep.subr.mxu0 0.0
        %542 = vmatpush1.msra.mxu0 0.0
        %543 = vmatprep.subr.mxu0 0.0
        %544 = vmatpush1.msra.mxu0 0.0
        %545 = vmatprep.subr.mxu0 0.0
        %546 = vmatpush1.msra.mxu0 0.0
        %547 = vmatprep.subr.mxu0 0.0
        %548 = vmatpush1.msra.mxu0 0.0
        %549 = vmatprep.subr.mxu0 0.0
        %550 = vmatpush1.msra.mxu0 0.0
        %551 = vmatprep.subr.mxu0 0.0
        %552 = vmatpush1.msra.mxu0 0.0
        %553 = vmatprep.subr.mxu0 0.0
        %554 = vmatpush1.msra.mxu0 0.0
        %555 = vmatprep.subr.mxu0 0.0
        %556 = vmatpush1.msra.mxu0 0.0
        %557 = vmatprep.subr.mxu0 0.0
        %558 = vmatpush1.msra.mxu0 0.0
        %559 = vmatprep.subr.mxu0 0.0
        %560 = vmatpush1.msra.mxu0 0.0
        %561 = vmatprep.subr.mxu0 0.0
        %562 = vmatpush1.msra.mxu0 0.0
        %563 = vmatprep.subr.mxu0 0.0
        %564 = vmatpush1.msra.mxu0 0.0
        %565 = vmatprep.subr.mxu0 0.0
        %566 = vmatpush1.msra.mxu0 0.0
        %567 = vmatprep.subr.mxu0 0.0
        %568 = vmatpush1.msra.mxu0 0.0
        %569 = vmatprep.subr.mxu0 0.0
        %570 = vmatpush1.msra.mxu0 0.0
        %571 = vmatprep.subr.mxu0 0.0
        %572 = vmatpush1.msra.mxu0 0.0
        %573 = vmatprep.subr.mxu0 0.0
        %574 = vmatpush1.msra.mxu0 0.0
        %575 = vmatprep.subr.mxu0 0.0
        %576 = vmatpush1.msra.mxu0 0.0
        %577 = vmatprep.subr.mxu0 0.0
        %578 = vmatpush1.msra.mxu0 0.0
        %579 = vmatprep.subr.mxu0 0.0
        %580 = vmatpush1.msra.mxu0 0.0
        %581 = vmatprep.subr.mxu0 0.0
        %582 = vmatpush1.msra.mxu0 0.0
        %583 = vmatprep.subr.mxu0 0.0
        %584 = vmatpush1.msra.mxu0 0.0
        %585 = vmatprep.mubr.f32.mxu0 0.0
        %586 = vmatmul.mubr.f32.gmra.mrb[0].mxu0 %v513
        %v587 = vpop.f32.mrb[0].mxu0
        %v588 = vadd.f32 0.0, %v587
        %v589 = vpop.f32.mrb[0].mxu0
        %590 = vmatprep.mubr.f32.mxu0 0.0
        %591 = vmatmul.mubr.f32.gmra.mrb[0].mxu0 %v516
        %v592 = vpop.f32.mrb[0].mxu0
        %v593 = vadd.f32 0.0, %v592
        %v594 = vpop.f32.mrb[0].mxu0
        %595 = vmatprep.mubr.f32.mxu0 0.0
        %596 = vmatmul.mubr.f32.gmra.mrb[0].mxu0 %v519
        %v597 = vpop.f32.mrb[0].mxu0
        %v598 = vadd.f32 0.0, %v597
        %v599 = vpop.f32.mrb[0].mxu0
        %600 = vdwg.mxu0
        %v601 = vlaneseq
        %v602 = vshrl.u32 %v601, 7
        %v603 = vlaneseq
        %v604 = vand.u32 %v603, 127
        %vm605 = vcmp.ge.s32.totalorder %v602, %v604
        %v606 = vsel %vm605, 0.0, -1e+30
        %608 = vrot.lane.b32.xlu0 %v588, 96
        %v609 = vpop.permute.xlu0 %608
        %vm610 = vcmask 64512
        %v611 = vsel %vm610, %v588, 0
        %v613 = vsel %vm610, %v609, 0
        %615 = vmatprep.subr.mxu0 0.0
        %616 = vmatpush1.xpose.msra.mxu0 %v613
        %617 = vmatprep.subr.mxu0 0.0
        %618 = vmatpush1.xpose.msra.mxu0 0.0
        %619 = vmatprep.subr.mxu0 0.0
        %620 = vmatpush1.xpose.msra.mxu0 0.0
        %621 = vmatprep.subr.mxu0 0.0
        %622 = vmatpush1.xpose.msra.mxu0 0.0
        %623 = vmatprep.subr.mxu0 0.0
        %624 = vmatpush1.xpose.msra.mxu0 0.0
        %625 = vmatprep.subr.mxu0 0.0
        %626 = vmatpush1.xpose.msra.mxu0 0.0
        %627 = vmatprep.subr.mxu0 0.0
        %628 = vmatpush1.xpose.msra.mxu0 0.0
        %629 = vmatprep.subr.mxu0 0.0
        %630 = vmatpush1.xpose.msra.mxu0 0.0
        %631 = vmatprep.subr.mxu0 0.0
        %632 = vmatpush1.xpose.msra.mxu0 0.0
        %633 = vmatprep.subr.mxu0 0.0
        %634 = vmatpush1.xpose.msra.mxu0 0.0
        %635 = vmatprep.subr.mxu0 0.0
        %636 = vmatpush1.xpose.msra.mxu0 0.0
        %637 = vmatprep.subr.mxu0 0.0
        %638 = vmatpush1.xpose.msra.mxu0 0.0
        %639 = vmatprep.subr.mxu0 0.0
        %640 = vmatpush1.xpose.msra.mxu0 0.0
        %641 = vmatprep.subr.mxu0 0.0
        %642 = vmatpush1.xpose.msra.mxu0 0.0
        %643 = vmatprep.subr.mxu0 0.0
        %644 = vmatpush1.xpose.msra.mxu0 0.0
        %645 = vmatprep.subr.mxu0 0.0
        %646 = vmatpush1.xpose.msra.mxu0 0.0
        %647 = vmatprep.subr.mxu0 0.0
        %648 = vmatpush1.xpose.msra.mxu0 0.0
        %649 = vmatprep.subr.mxu0 0.0
        %650 = vmatpush1.xpose.msra.mxu0 0.0
        %651 = vmatprep.subr.mxu0 0.0
        %652 = vmatpush1.xpose.msra.mxu0 0.0
        %653 = vmatprep.subr.mxu0 0.0
        %654 = vmatpush1.xpose.msra.mxu0 0.0
        %655 = vmatprep.subr.mxu0 0.0
        %656 = vmatpush1.xpose.msra.mxu0 0.0
        %657 = vmatprep.subr.mxu0 0.0
        %658 = vmatpush1.xpose.msra.mxu0 0.0
        %659 = vmatprep.subr.mxu0 0.0
        %660 = vmatpush1.xpose.msra.mxu0 0.0
        %661 = vmatprep.subr.mxu0 0.0
        %662 = vmatpush1.xpose.msra.mxu0 0.0
        %663 = vmatprep.subr.mxu0 0.0
        %664 = vmatpush1.xpose.msra.mxu0 0.0
        %665 = vmatprep.subr.mxu0 0.0
        %666 = vmatpush1.xpose.msra.mxu0 0.0
        %667 = vmatprep.subr.mxu0 0.0
        %668 = vmatpush1.xpose.msra.mxu0 0.0
        %669 = vmatprep.subr.mxu0 0.0
        %670 = vmatpush1.xpose.msra.mxu0 0.0
        %671 = vmatprep.subr.mxu0 0.0
        %672 = vmatpush1.xpose.msra.mxu0 0.0
        %673 = vmatprep.subr.mxu0 0.0
        %674 = vmatpush1.xpose.msra.mxu0 0.0
        %675 = vmatprep.subr.mxu0 0.0
        %676 = vmatpush1.xpose.msra.mxu0 0.0
        %677 = vmatprep.subr.mxu0 0.0
        %678 = vmatpush1.xpose.msra.mxu0 0.0
        %679 = vmatprep.mubr.f32.mxu0 0.0
        %680 = vmatmul.mubr.f32.gmra.mrb[0].mxu0 %v611
        %v681 = vpop.f32.mrb[0].mxu0
        %v682 = vadd.f32 0.0, %v681
        %v683 = vpop.f32.mrb[0].mxu0
        %684 = vdwg.mxu0
        %686 = vrot.lane.b32.xlu0 %v593, 96
        %v687 = vpop.permute.xlu0 %686
        %v688 = vsel %vm610, %v593, 0
        %v690 = vsel %vm610, %v687, 0
        %692 = vmatprep.subr.mxu0 0.0
        %693 = vmatpush1.xpose.msra.mxu0 %v690
        %694 = vmatprep.subr.mxu0 0.0
        %695 = vmatpush1.xpose.msra.mxu0 0.0
        %696 = vmatprep.subr.mxu0 0.0
        %697 = vmatpush1.xpose.msra.mxu0 0.0
        %698 = vmatprep.subr.mxu0 0.0
        %699 = vmatpush1.xpose.msra.mxu0 0.0
        %700 = vmatprep.subr.mxu0 0.0
        %701 = vmatpush1.xpose.msra.mxu0 0.0
        %702 = vmatprep.subr.mxu0 0.0
        %703 = vmatpush1.xpose.msra.mxu0 0.0
        %704 = vmatprep.subr.mxu0 0.0
        %705 = vmatpush1.xpose.msra.mxu0 0.0
        %706 = vmatprep.subr.mxu0 0.0
        %707 = vmatpush1.xpose.msra.mxu0 0.0
        %708 = vmatprep.subr.mxu0 0.0
        %709 = vmatpush1.xpose.msra.mxu0 0.0
        %710 = vmatprep.subr.mxu0 0.0
        %711 = vmatpush1.xpose.msra.mxu0 0.0
        %712 = vmatprep.subr.mxu0 0.0
        %713 = vmatpush1.xpose.msra.mxu0 0.0
        %714 = vmatprep.subr.mxu0 0.0
        %715 = vmatpush1.xpose.msra.mxu0 0.0
        %716 = vmatprep.subr.mxu0 0.0
        %717 = vmatpush1.xpose.msra.mxu0 0.0
        %718 = vmatprep.subr.mxu0 0.0
        %719 = vmatpush1.xpose.msra.mxu0 0.0
        %720 = vmatprep.subr.mxu0 0.0
        %721 = vmatpush1.xpose.msra.mxu0 0.0
        %722 = vmatprep.subr.mxu0 0.0
        %723 = vmatpush1.xpose.msra.mxu0 0.0
        %724 = vmatprep.subr.mxu0 0.0
        %725 = vmatpush1.xpose.msra.mxu0 0.0
        %726 = vmatprep.subr.mxu0 0.0
        %727 = vmatpush1.xpose.msra.mxu0 0.0
        %728 = vmatprep.subr.mxu0 0.0
        %729 = vmatpush1.xpose.msra.mxu0 0.0
        %730 = vmatprep.subr.mxu0 0.0
        %731 = vmatpush1.xpose.msra.mxu0 0.0
        %732 = vmatprep.subr.mxu0 0.0
        %733 = vmatpush1.xpose.msra.mxu0 0.0
        %734 = vmatprep.subr.mxu0 0.0
        %735 = vmatpush1.xpose.msra.mxu0 0.0
        %736 = vmatprep.subr.mxu0 0.0
        %737 = vmatpush1.xpose.msra.mxu0 0.0
        %738 = vmatprep.subr.mxu0 0.0
        %739 = vmatpush1.xpose.msra.mxu0 0.0
        %740 = vmatprep.subr.mxu0 0.0
        %741 = vmatpush1.xpose.msra.mxu0 0.0
        %742 = vmatprep.subr.mxu0 0.0
        %743 = vmatpush1.xpose.msra.mxu0 0.0
        %744 = vmatprep.subr.mxu0 0.0
        %745 = vmatpush1.xpose.msra.mxu0 0.0
        %746 = vmatprep.subr.mxu0 0.0
        %747 = vmatpush1.xpose.msra.mxu0 0.0
        %748 = vmatprep.subr.mxu0 0.0
        %749 = vmatpush1.xpose.msra.mxu0 0.0
        %750 = vmatprep.subr.mxu0 0.0
        %751 = vmatpush1.xpose.msra.mxu0 0.0
        %752 = vmatprep.subr.mxu0 0.0
        %753 = vmatpush1.xpose.msra.mxu0 0.0
        %754 = vmatprep.subr.mxu0 0.0
        %755 = vmatpush1.xpose.msra.mxu0 0.0
        %756 = vmatprep.mubr.f32.mxu0 0.0
        %757 = vmatmul.mubr.f32.gmra.mrb[0].mxu0 %v688
        %v758 = vpop.f32.mrb[0].mxu0
        %v759 = vadd.f32 0.0, %v758
        %v760 = vpop.f32.mrb[0].mxu0
        %761 = vdwg.mxu0
        %763 = vrot.lane.b32.xlu0 %v598, 96
        %v764 = vpop.permute.xlu0 %763
        %v765 = vsel %vm610, %v598, 0
        %v767 = vsel %vm610, %v764, 0
        %769 = vmatprep.subr.mxu0 0.0
        %770 = vmatpush1.xpose.msra.mxu0 %v767
        %771 = vmatprep.subr.mxu0 0.0
        %772 = vmatpush1.xpose.msra.mxu0 0.0
        %773 = vmatprep.subr.mxu0 0.0
        %774 = vmatpush1.xpose.msra.mxu0 0.0
        %775 = vmatprep.subr.mxu0 0.0
        %776 = vmatpush1.xpose.msra.mxu0 0.0
        %777 = vmatprep.subr.mxu0 0.0
        %778 = vmatpush1.xpose.msra.mxu0 0.0
        %779 = vmatprep.subr.mxu0 0.0
        %780 = vmatpush1.xpose.msra.mxu0 0.0
        %781 = vmatprep.subr.mxu0 0.0
        %782 = vmatpush1.xpose.msra.mxu0 0.0
        %783 = vmatprep.subr.mxu0 0.0
        %784 = vmatpush1.xpose.msra.mxu0 0.0
        %785 = vmatprep.subr.mxu0 0.0
        %786 = vmatpush1.xpose.msra.mxu0 0.0
        %787 = vmatprep.subr.mxu0 0.0
        %788 = vmatpush1.xpose.msra.mxu0 0.0
        %789 = vmatprep.subr.mxu0 0.0
        %790 = vmatpush1.xpose.msra.mxu0 0.0
        %791 = vmatprep.subr.mxu0 0.0
        %792 = vmatpush1.xpose.msra.mxu0 0.0
        %793 = vmatprep.subr.mxu0 0.0
        %794 = vmatpush1.xpose.msra.mxu0 0.0
        %795 = vmatprep.subr.mxu0 0.0
        %796 = vmatpush1.xpose.msra.mxu0 0.0
        %797 = vmatprep.subr.mxu0 0.0
        %798 = vmatpush1.xpose.msra.mxu0 0.0
        %799 = vmatprep.subr.mxu0 0.0
        %800 = vmatpush1.xpose.msra.mxu0 0.0
        %801 = vmatprep.subr.mxu0 0.0
        %802 = vmatpush1.xpose.msra.mxu0 0.0
        %803 = vmatprep.subr.mxu0 0.0
        %804 = vmatpush1.xpose.msra.mxu0 0.0
        %805 = vmatprep.subr.mxu0 0.0
        %806 = vmatpush1.xpose.msra.mxu0 0.0
        %807 = vmatprep.subr.mxu0 0.0
        %808 = vmatpush1.xpose.msra.mxu0 0.0
        %809 = vmatprep.subr.mxu0 0.0
        %810 = vmatpush1.xpose.msra.mxu0 0.0
        %811 = vmatprep.subr.mxu0 0.0
        %812 = vmatpush1.xpose.msra.mxu0 0.0
        %813 = vmatprep.subr.mxu0 0.0
        %814 = vmatpush1.xpose.msra.mxu0 0.0
        %815 = vmatprep.subr.mxu0 0.0
        %816 = vmatpush1.xpose.msra.mxu0 0.0
        %817 = vmatprep.subr.mxu0 0.0
        %818 = vmatpush1.xpose.msra.mxu0 0.0
        %819 = vmatprep.subr.mxu0 0.0
        %820 = vmatpush1.xpose.msra.mxu0 0.0
        %821 = vmatprep.subr.mxu0 0.0
        %822 = vmatpush1.xpose.msra.mxu0 0.0
        %823 = vmatprep.subr.mxu0 0.0
        %824 = vmatpush1.xpose.msra.mxu0 0.0
        %825 = vmatprep.subr.mxu0 0.0
        %826 = vmatpush1.xpose.msra.mxu0 0.0
        %827 = vmatprep.subr.mxu0 0.0
        %828 = vmatpush1.xpose.msra.mxu0 0.0
        %829 = vmatprep.subr.mxu0 0.0
        %830 = vmatpush1.xpose.msra.mxu0 0.0
        %831 = vmatprep.subr.mxu0 0.0
        %832 = vmatpush1.xpose.msra.mxu0 0.0
        %833 = vmatprep.mubr.f32.mxu0 0.0
        %834 = vmatmul.mubr.f32.gmra.mrb[0].mxu0 %v765
        %v835 = vpop.f32.mrb[0].mxu0
        %v836 = vadd.f32 0.0, %v835
        %v837 = vpop.f32.mrb[0].mxu0
        %838 = vdwg.mxu0
        %v839 = vmul.f32 %v682, 0.35355338
        %v840 = vmul.f32 %v759, 0.35355338
        %v841 = vmul.f32 %v836, 0.35355338
        %v842 = vadd.f32 %v839, %v606
        %v843 = vadd.f32 %v840, %v606
        %v844 = vadd.f32 %v841, %v606
        %v845 = vsel %vm610, %v842, -inf
        %846 = vmax.xlane.f32.xlu0 %v845
        %v847 = vpop.xlane.xlu0 %846
        %v848 = vsel %vm610, %v843, -inf
        %849 = vmax.xlane.f32.xlu0 %v848
        %v850 = vpop.xlane.xlu0 %849
        %v851 = vsel %vm610, %v844, -inf
        %852 = vmax.xlane.f32.xlu0 %v851
        %v853 = vpop.xlane.xlu0 %852
        %v854 = vsub.f32 %v842, %v847
        %v855 = vsub.f32 %v843, %v850
        %v856 = vsub.f32 %v844, %v853
        %v857 = vmul.f32 %v854, 1.442695
        %v858 = vpow.pop %v857
        %v859 = vmul.f32 %v855, 1.442695
        %v860 = vpow.pop %v859
        %v861 = vmul.f32 %v856, 1.442695
        %v862 = vpow.pop %v861
        %v863 = vsel %vm610, %v858, 0.0
        %864 = vadd.xlane.f32.xlu0 %v863
        %v865 = vpop.xlane.xlu0 %864
        %v866 = vsel %vm610, %v860, 0.0
        %867 = vadd.xlane.f32.xlu0 %v866
        %v868 = vpop.xlane.xlu0 %867
        %v869 = vsel %vm610, %v862, 0.0
        %870 = vadd.xlane.f32.xlu0 %v869
        %v871 = vpop.xlane.xlu0 %870
        %v872 = vrcp.pop %v865
        %v873 = vrcp.pop %v868
        %v874 = vrcp.pop %v871
        %v875 = vmul.f32 %v858, %v872
        %v876 = vmul.f32 %v860, %v873
        %v877 = vmul.f32 %v862, %v874
        %878 = vrot.lane.b32.xlu0 %v588, 64
        %v879 = vpop.permute.xlu0 %878
        %v882 = vsel %vm610, %v875, 0
        %884 = vmatprep.subr.mxu0 0.0
        %885 = vmatpush1.msra.mxu0 %v879
        %886 = vmatprep.subr.mxu0 0.0
        %887 = vmatpush1.msra.mxu0 0.0
        %888 = vmatprep.subr.mxu0 0.0
        %889 = vmatpush1.msra.mxu0 0.0
        %890 = vmatprep.subr.mxu0 0.0
        %891 = vmatpush1.msra.mxu0 0.0
        %892 = vmatprep.subr.mxu0 0.0
        %893 = vmatpush1.msra.mxu0 0.0
        %894 = vmatprep.subr.mxu0 0.0
        %895 = vmatpush1.msra.mxu0 0.0
        %896 = vmatprep.subr.mxu0 0.0
        %897 = vmatpush1.msra.mxu0 0.0
        %898 = vmatprep.subr.mxu0 0.0
        %899 = vmatpush1.msra.mxu0 0.0
        %900 = vmatprep.subr.mxu0 0.0
        %901 = vmatpush1.msra.mxu0 0.0
        %902 = vmatprep.subr.mxu0 0.0
        %903 = vmatpush1.msra.mxu0 0.0
        %904 = vmatprep.subr.mxu0 0.0
        %905 = vmatpush1.msra.mxu0 0.0
        %906 = vmatprep.subr.mxu0 0.0
        %907 = vmatpush1.msra.mxu0 0.0
        %908 = vmatprep.subr.mxu0 0.0
        %909 = vmatpush1.msra.mxu0 0.0
        %910 = vmatprep.subr.mxu0 0.0
        %911 = vmatpush1.msra.mxu0 0.0
        %912 = vmatprep.subr.mxu0 0.0
        %913 = vmatpush1.msra.mxu0 0.0
        %914 = vmatprep.subr.mxu0 0.0
        %915 = vmatpush1.msra.mxu0 0.0
        %916 = vmatprep.subr.mxu0 0.0
        %917 = vmatpush1.msra.mxu0 0.0
        %918 = vmatprep.subr.mxu0 0.0
        %919 = vmatpush1.msra.mxu0 0.0
        %920 = vmatprep.subr.mxu0 0.0
        %921 = vmatpush1.msra.mxu0 0.0
        %922 = vmatprep.subr.mxu0 0.0
        %923 = vmatpush1.msra.mxu0 0.0
        %924 = vmatprep.subr.mxu0 0.0
        %925 = vmatpush1.msra.mxu0 0.0
        %926 = vmatprep.subr.mxu0 0.0
        %927 = vmatpush1.msra.mxu0 0.0
        %928 = vmatprep.subr.mxu0 0.0
        %929 = vmatpush1.msra.mxu0 0.0
        %930 = vmatprep.subr.mxu0 0.0
        %931 = vmatpush1.msra.mxu0 0.0
        %932 = vmatprep.subr.mxu0 0.0
        %933 = vmatpush1.msra.mxu0 0.0
        %934 = vmatprep.subr.mxu0 0.0
        %935 = vmatpush1.msra.mxu0 0.0
        %936 = vmatprep.subr.mxu0 0.0
        %937 = vmatpush1.msra.mxu0 0.0
        %938 = vmatprep.subr.mxu0 0.0
        %939 = vmatpush1.msra.mxu0 0.0
        %940 = vmatprep.subr.mxu0 0.0
        %941 = vmatpush1.msra.mxu0 0.0
        %942 = vmatprep.subr.mxu0 0.0
        %943 = vmatpush1.msra.mxu0 0.0
        %944 = vmatprep.subr.mxu0 0.0
        %945 = vmatpush1.msra.mxu0 0.0
        %946 = vmatprep.subr.mxu0 0.0
        %947 = vmatpush1.msra.mxu0 0.0
        %948 = vmatprep.mubr.f32.mxu0 0.0
        %949 = vmatmul.mubr.f32.gmra.mrb[0].mxu0 %v882
        %v950 = vpop.f32.mrb[0].mxu0
        %v951 = vadd.f32 0.0, %v950
        %v952 = vpop.f32.mrb[0].mxu0
        %953 = vdwg.mxu0
        %954 = vrot.lane.b32.xlu0 %v593, 64
        %v955 = vpop.permute.xlu0 %954
        %v958 = vsel %vm610, %v876, 0
        %960 = vmatprep.subr.mxu0 0.0
        %961 = vmatpush1.msra.mxu0 %v955
        %962 = vmatprep.subr.mxu0 0.0
        %963 = vmatpush1.msra.mxu0 0.0
        %964 = vmatprep.subr.mxu0 0.0
        %965 = vmatpush1.msra.mxu0 0.0
        %966 = vmatprep.subr.mxu0 0.0
        %967 = vmatpush1.msra.mxu0 0.0
        %968 = vmatprep.subr.mxu0 0.0
        %969 = vmatpush1.msra.mxu0 0.0
        %970 = vmatprep.subr.mxu0 0.0
        %971 = vmatpush1.msra.mxu0 0.0
        %972 = vmatprep.subr.mxu0 0.0
        %973 = vmatpush1.msra.mxu0 0.0
        %974 = vmatprep.subr.mxu0 0.0
        %975 = vmatpush1.msra.mxu0 0.0
        %976 = vmatprep.subr.mxu0 0.0
        %977 = vmatpush1.msra.mxu0 0.0
        %978 = vmatprep.subr.mxu0 0.0
        %979 = vmatpush1.msra.mxu0 0.0
        %980 = vmatprep.subr.mxu0 0.0
        %981 = vmatpush1.msra.mxu0 0.0
        %982 = vmatprep.subr.mxu0 0.0
        %983 = vmatpush1.msra.mxu0 0.0
        %984 = vmatprep.subr.mxu0 0.0
        %985 = vmatpush1.msra.mxu0 0.0
        %986 = vmatprep.subr.mxu0 0.0
        %987 = vmatpush1.msra.mxu0 0.0
        %988 = vmatprep.subr.mxu0 0.0
        %989 = vmatpush1.msra.mxu0 0.0
        %990 = vmatprep.subr.mxu0 0.0
        %991 = vmatpush1.msra.mxu0 0.0
        %992 = vmatprep.subr.mxu0 0.0
        %993 = vmatpush1.msra.mxu0 0.0
        %994 = vmatprep.subr.mxu0 0.0
        %995 = vmatpush1.msra.mxu0 0.0
        %996 = vmatprep.subr.mxu0 0.0
        %997 = vmatpush1.msra.mxu0 0.0
        %998 = vmatprep.subr.mxu0 0.0
        %999 = vmatpush1.msra.mxu0 0.0
        %1000 = vmatprep.subr.mxu0 0.0
        %1001 = vmatpush1.msra.mxu0 0.0
        %1002 = vmatprep.subr.mxu0 0.0
        %1003 = vmatpush1.msra.mxu0 0.0
        %1004 = vmatprep.subr.mxu0 0.0
        %1005 = vmatpush1.msra.mxu0 0.0
        %1006 = vmatprep.subr.mxu0 0.0
        %1007 = vmatpush1.msra.mxu0 0.0
        %1008 = vmatprep.subr.mxu0 0.0
        %1009 = vmatpush1.msra.mxu0 0.0
        %1010 = vmatprep.subr.mxu0 0.0
        %1011 = vmatpush1.msra.mxu0 0.0
        %1012 = vmatprep.subr.mxu0 0.0
        %1013 = vmatpush1.msra.mxu0 0.0
        %1014 = vmatprep.subr.mxu0 0.0
        %1015 = vmatpush1.msra.mxu0 0.0
        %1016 = vmatprep.subr.mxu0 0.0
        %1017 = vmatpush1.msra.mxu0 0.0
        %1018 = vmatprep.subr.mxu0 0.0
        %1019 = vmatpush1.msra.mxu0 0.0
        %1020 = vmatprep.subr.mxu0 0.0
        %1021 = vmatpush1.msra.mxu0 0.0
        %1022 = vmatprep.subr.mxu0 0.0
        %1023 = vmatpush1.msra.mxu0 0.0
        %1024 = vmatprep.mubr.f32.mxu0 0.0
        %1025 = vmatmul.mubr.f32.gmra.mrb[0].mxu0 %v958
        %v1026 = vpop.f32.mrb[0].mxu0
        %v1027 = vadd.f32 0.0, %v1026
        %v1028 = vpop.f32.mrb[0].mxu0
        %1029 = vdwg.mxu0
        %1030 = vrot.lane.b32.xlu0 %v598, 64
        %v1031 = vpop.permute.xlu0 %1030
        %v1034 = vsel %vm610, %v877, 0
        %1036 = vmatprep.subr.mxu0 0.0
        %1037 = vmatpush1.msra.mxu0 %v1031
        %1038 = vmatprep.subr.mxu0 0.0
        %1039 = vmatpush1.msra.mxu0 0.0
        %1040 = vmatprep.subr.mxu0 0.0
        %1041 = vmatpush1.msra.mxu0 0.0
        %1042 = vmatprep.subr.mxu0 0.0
        %1043 = vmatpush1.msra.mxu0 0.0
        %1044 = vmatprep.subr.mxu0 0.0
        %1045 = vmatpush1.msra.mxu0 0.0
        %1046 = vmatprep.subr.mxu0 0.0
        %1047 = vmatpush1.msra.mxu0 0.0
        %1048 = vmatprep.subr.mxu0 0.0
        %1049 = vmatpush1.msra.mxu0 0.0
        %1050 = vmatprep.subr.mxu0 0.0
        %1051 = vmatpush1.msra.mxu0 0.0
        %1052 = vmatprep.subr.mxu0 0.0
        %1053 = vmatpush1.msra.mxu0 0.0
        %1054 = vmatprep.subr.mxu0 0.0
        %1055 = vmatpush1.msra.mxu0 0.0
        %1056 = vmatprep.subr.mxu0 0.0
        %1057 = vmatpush1.msra.mxu0 0.0
        %1058 = vmatprep.subr.mxu0 0.0
        %1059 = vmatpush1.msra.mxu0 0.0
        %1060 = vmatprep.subr.mxu0 0.0
        %1061 = vmatpush1.msra.mxu0 0.0
        %1062 = vmatprep.subr.mxu0 0.0
        %1063 = vmatpush1.msra.mxu0 0.0
        %1064 = vmatprep.subr.mxu0 0.0
        %1065 = vmatpush1.msra.mxu0 0.0
        %1066 = vmatprep.subr.mxu0 0.0
        %1067 = vmatpush1.msra.mxu0 0.0
        %1068 = vmatprep.subr.mxu0 0.0
        %1069 = vmatpush1.msra.mxu0 0.0
        %1070 = vmatprep.subr.mxu0 0.0
        %1071 = vmatpush1.msra.mxu0 0.0
        %1072 = vmatprep.subr.mxu0 0.0
        %1073 = vmatpush1.msra.mxu0 0.0
        %1074 = vmatprep.subr.mxu0 0.0
        %1075 = vmatpush1.msra.mxu0 0.0
        %1076 = vmatprep.subr.mxu0 0.0
        %1077 = vmatpush1.msra.mxu0 0.0
        %1078 = vmatprep.subr.mxu0 0.0
        %1079 = vmatpush1.msra.mxu0 0.0
        %1080 = vmatprep.subr.mxu0 0.0
        %1081 = vmatpush1.msra.mxu0 0.0
        %1082 = vmatprep.subr.mxu0 0.0
        %1083 = vmatpush1.msra.mxu0 0.0
        %1084 = vmatprep.subr.mxu0 0.0
        %1085 = vmatpush1.msra.mxu0 0.0
        %1086 = vmatprep.subr.mxu0 0.0
        %1087 = vmatpush1.msra.mxu0 0.0
        %1088 = vmatprep.subr.mxu0 0.0
        %1089 = vmatpush1.msra.mxu0 0.0
        %1090 = vmatprep.subr.mxu0 0.0
        %1091 = vmatpush1.msra.mxu0 0.0
        %1092 = vmatprep.subr.mxu0 0.0
        %1093 = vmatpush1.msra.mxu0 0.0
        %1094 = vmatprep.subr.mxu0 0.0
        %1095 = vmatpush1.msra.mxu0 0.0
        %1096 = vmatprep.subr.mxu0 0.0
        %1097 = vmatpush1.msra.mxu0 0.0
        %1098 = vmatprep.subr.mxu0 0.0
        %1099 = vmatpush1.msra.mxu0 0.0
        %1100 = vmatprep.mubr.f32.mxu0 0.0
        %1101 = vmatmul.mubr.f32.gmra.mrb[0].mxu0 %v1034
        %v1102 = vpop.f32.mrb[0].mxu0
        %v1103 = vadd.f32 0.0, %v1102
        %v1104 = vpop.f32.mrb[0].mxu0
        %1105 = vdwg.mxu0
        %1106 = vrot.lane.b32.xlu0 %v588, 120
        %v1107 = vpop.permute.xlu0 %1106
        %1108 = vrot.lane.b32.xlu0 %v588, 88
        %v1109 = vpop.permute.xlu0 %1108
        %v1110 = vsel %vm610, %v1107, 0
        %v1112 = vsel %vm610, %v1109, 0
        %1114 = vmatprep.subr.mxu0 0.0
        %1115 = vmatpush1.xpose.msra.mxu0 %v1112
        %1116 = vmatprep.subr.mxu0 0.0
        %1117 = vmatpush1.xpose.msra.mxu0 0.0
        %1118 = vmatprep.subr.mxu0 0.0
        %1119 = vmatpush1.xpose.msra.mxu0 0.0
        %1120 = vmatprep.subr.mxu0 0.0
        %1121 = vmatpush1.xpose.msra.mxu0 0.0
        %1122 = vmatprep.subr.mxu0 0.0
        %1123 = vmatpush1.xpose.msra.mxu0 0.0
        %1124 = vmatprep.subr.mxu0 0.0
        %1125 = vmatpush1.xpose.msra.mxu0 0.0
        %1126 = vmatprep.subr.mxu0 0.0
        %1127 = vmatpush1.xpose.msra.mxu0 0.0
        %1128 = vmatprep.subr.mxu0 0.0
        %1129 = vmatpush1.xpose.msra.mxu0 0.0
        %1130 = vmatprep.subr.mxu0 0.0
        %1131 = vmatpush1.xpose.msra.mxu0 0.0
        %1132 = vmatprep.subr.mxu0 0.0
        %1133 = vmatpush1.xpose.msra.mxu0 0.0
        %1134 = vmatprep.subr.mxu0 0.0
        %1135 = vmatpush1.xpose.msra.mxu0 0.0
        %1136 = vmatprep.subr.mxu0 0.0
        %1137 = vmatpush1.xpose.msra.mxu0 0.0
        %1138 = vmatprep.subr.mxu0 0.0
        %1139 = vmatpush1.xpose.msra.mxu0 0.0
        %1140 = vmatprep.subr.mxu0 0.0
        %1141 = vmatpush1.xpose.msra.mxu0 0.0
        %1142 = vmatprep.subr.mxu0 0.0
        %1143 = vmatpush1.xpose.msra.mxu0 0.0
        %1144 = vmatprep.subr.mxu0 0.0
        %1145 = vmatpush1.xpose.msra.mxu0 0.0
        %1146 = vmatprep.subr.mxu0 0.0
        %1147 = vmatpush1.xpose.msra.mxu0 0.0
        %1148 = vmatprep.subr.mxu0 0.0
        %1149 = vmatpush1.xpose.msra.mxu0 0.0
        %1150 = vmatprep.subr.mxu0 0.0
        %1151 = vmatpush1.xpose.msra.mxu0 0.0
        %1152 = vmatprep.subr.mxu0 0.0
        %1153 = vmatpush1.xpose.msra.mxu0 0.0
        %1154 = vmatprep.subr.mxu0 0.0
        %1155 = vmatpush1.xpose.msra.mxu0 0.0
        %1156 = vmatprep.subr.mxu0 0.0
        %1157 = vmatpush1.xpose.msra.mxu0 0.0
        %1158 = vmatprep.subr.mxu0 0.0
        %1159 = vmatpush1.xpose.msra.mxu0 0.0
        %1160 = vmatprep.subr.mxu0 0.0
        %1161 = vmatpush1.xpose.msra.mxu0 0.0
        %1162 = vmatprep.subr.mxu0 0.0
        %1163 = vmatpush1.xpose.msra.mxu0 0.0
        %1164 = vmatprep.subr.mxu0 0.0
        %1165 = vmatpush1.xpose.msra.mxu0 0.0
        %1166 = vmatprep.subr.mxu0 0.0
        %1167 = vmatpush1.xpose.msra.mxu0 0.0
        %1168 = vmatprep.subr.mxu0 0.0
        %1169 = vmatpush1.xpose.msra.mxu0 0.0
        %1170 = vmatprep.subr.mxu0 0.0
        %1171 = vmatpush1.xpose.msra.mxu0 0.0
        %1172 = vmatprep.subr.mxu0 0.0
        %1173 = vmatpush1.xpose.msra.mxu0 0.0
        %1174 = vmatprep.subr.mxu0 0.0
        %1175 = vmatpush1.xpose.msra.mxu0 0.0
        %1176 = vmatprep.subr.mxu0 0.0
        %1177 = vmatpush1.xpose.msra.mxu0 0.0
        %1178 = vmatprep.mubr.f32.mxu0 0.0
        %1179 = vmatmul.mubr.f32.gmra.mrb[0].mxu0 %v1110
        %v1180 = vpop.f32.mrb[0].mxu0
        %v1181 = vadd.f32 0.0, %v1180
        %v1182 = vpop.f32.mrb[0].mxu0
        %1183 = vdwg.mxu0
        %1184 = vrot.lane.b32.xlu0 %v593, 120
        %v1185 = vpop.permute.xlu0 %1184
        %1186 = vrot.lane.b32.xlu0 %v593, 88
        %v1187 = vpop.permute.xlu0 %1186
        %v1188 = vsel %vm610, %v1185, 0
        %v1190 = vsel %vm610, %v1187, 0
        %1192 = vmatprep.subr.mxu0 0.0
        %1193 = vmatpush1.xpose.msra.mxu0 %v1190
        %1194 = vmatprep.subr.mxu0 0.0
        %1195 = vmatpush1.xpose.msra.mxu0 0.0
        %1196 = vmatprep.subr.mxu0 0.0
        %1197 = vmatpush1.xpose.msra.mxu0 0.0
        %1198 = vmatprep.subr.mxu0 0.0
        %1199 = vmatpush1.xpose.msra.mxu0 0.0
        %1200 = vmatprep.subr.mxu0 0.0
        %1201 = vmatpush1.xpose.msra.mxu0 0.0
        %1202 = vmatprep.subr.mxu0 0.0
        %1203 = vmatpush1.xpose.msra.mxu0 0.0
        %1204 = vmatprep.subr.mxu0 0.0
        %1205 = vmatpush1.xpose.msra.mxu0 0.0
        %1206 = vmatprep.subr.mxu0 0.0
        %1207 = vmatpush1.xpose.msra.mxu0 0.0
        %1208 = vmatprep.subr.mxu0 0.0
        %1209 = vmatpush1.xpose.msra.mxu0 0.0
        %1210 = vmatprep.subr.mxu0 0.0
        %1211 = vmatpush1.xpose.msra.mxu0 0.0
        %1212 = vmatprep.subr.mxu0 0.0
        %1213 = vmatpush1.xpose.msra.mxu0 0.0
        %1214 = vmatprep.subr.mxu0 0.0
        %1215 = vmatpush1.xpose.msra.mxu0 0.0
        %1216 = vmatprep.subr.mxu0 0.0
        %1217 = vmatpush1.xpose.msra.mxu0 0.0
        %1218 = vmatprep.subr.mxu0 0.0
        %1219 = vmatpush1.xpose.msra.mxu0 0.0
        %1220 = vmatprep.subr.mxu0 0.0
        %1221 = vmatpush1.xpose.msra.mxu0 0.0
        %1222 = vmatprep.subr.mxu0 0.0
        %1223 = vmatpush1.xpose.msra.mxu0 0.0
        %1224 = vmatprep.subr.mxu0 0.0
        %1225 = vmatpush1.xpose.msra.mxu0 0.0
        %1226 = vmatprep.subr.mxu0 0.0
        %1227 = vmatpush1.xpose.msra.mxu0 0.0
        %1228 = vmatprep.subr.mxu0 0.0
        %1229 = vmatpush1.xpose.msra.mxu0 0.0
        %1230 = vmatprep.subr.mxu0 0.0
        %1231 = vmatpush1.xpose.msra.mxu0 0.0
        %1232 = vmatprep.subr.mxu0 0.0
        %1233 = vmatpush1.xpose.msra.mxu0 0.0
        %1234 = vmatprep.subr.mxu0 0.0
        %1235 = vmatpush1.xpose.msra.mxu0 0.0
        %1236 = vmatprep.subr.mxu0 0.0
        %1237 = vmatpush1.xpose.msra.mxu0 0.0
        %1238 = vmatprep.subr.mxu0 0.0
        %1239 = vmatpush1.xpose.msra.mxu0 0.0
        %1240 = vmatprep.subr.mxu0 0.0
        %1241 = vmatpush1.xpose.msra.mxu0 0.0
        %1242 = vmatprep.subr.mxu0 0.0
        %1243 = vmatpush1.xpose.msra.mxu0 0.0
        %1244 = vmatprep.subr.mxu0 0.0
        %1245 = vmatpush1.xpose.msra.mxu0 0.0
        %1246 = vmatprep.subr.mxu0 0.0
        %1247 = vmatpush1.xpose.msra.mxu0 0.0
        %1248 = vmatprep.subr.mxu0 0.0
        %1249 = vmatpush1.xpose.msra.mxu0 0.0
        %1250 = vmatprep.subr.mxu0 0.0
        %1251 = vmatpush1.xpose.msra.mxu0 0.0
        %1252 = vmatprep.subr.mxu0 0.0
        %1253 = vmatpush1.xpose.msra.mxu0 0.0
        %1254 = vmatprep.subr.mxu0 0.0
        %1255 = vmatpush1.xpose.msra.mxu0 0.0
        %1256 = vmatprep.mubr.f32.mxu0 0.0
        %1257 = vmatmul.mubr.f32.gmra.mrb[0].mxu0 %v1188
        %v1258 = vpop.f32.mrb[0].mxu0
        %v1259 = vadd.f32 0.0, %v1258
        %v1260 = vpop.f32.mrb[0].mxu0
        %1261 = vdwg.mxu0
        %1262 = vrot.lane.b32.xlu0 %v598, 120
        %v1263 = vpop.permute.xlu0 %1262
        %1264 = vrot.lane.b32.xlu0 %v598, 88
        %v1265 = vpop.permute.xlu0 %1264
        %v1266 = vsel %vm610, %v1263, 0
        %v1268 = vsel %vm610, %v1265, 0
        %1270 = vmatprep.subr.mxu0 0.0
        %1271 = vmatpush1.xpose.msra.mxu0 %v1268
        %1272 = vmatprep.subr.mxu0 0.0
        %1273 = vmatpush1.xpose.msra.mxu0 0.0
        %1274 = vmatprep.subr.mxu0 0.0
        %1275 = vmatpush1.xpose.msra.mxu0 0.0
        %1276 = vmatprep.subr.mxu0 0.0
        %1277 = vmatpush1.xpose.msra.mxu0 0.0
        %1278 = vmatprep.subr.mxu0 0.0
        %1279 = vmatpush1.xpose.msra.mxu0 0.0
        %1280 = vmatprep.subr.mxu0 0.0
        %1281 = vmatpush1.xpose.msra.mxu0 0.0
        %1282 = vmatprep.subr.mxu0 0.0
        %1283 = vmatpush1.xpose.msra.mxu0 0.0
        %1284 = vmatprep.subr.mxu0 0.0
        %1285 = vmatpush1.xpose.msra.mxu0 0.0
        %1286 = vmatprep.subr.mxu0 0.0
        %1287 = vmatpush1.xpose.msra.mxu0 0.0
        %1288 = vmatprep.subr.mxu0 0.0
        %1289 = vmatpush1.xpose.msra.mxu0 0.0
        %1290 = vmatprep.subr.mxu0 0.0
        %1291 = vmatpush1.xpose.msra.mxu0 0.0
        %1292 = vmatprep.subr.mxu0 0.0
        %1293 = vmatpush1.xpose.msra.mxu0 0.0
        %1294 = vmatprep.subr.mxu0 0.0
        %1295 = vmatpush1.xpose.msra.mxu0 0.0
        %1296 = vmatprep.subr.mxu0 0.0
        %1297 = vmatpush1.xpose.msra.mxu0 0.0
        %1298 = vmatprep.subr.mxu0 0.0
        %1299 = vmatpush1.xpose.msra.mxu0 0.0
        %1300 = vmatprep.subr.mxu0 0.0
        %1301 = vmatpush1.xpose.msra.mxu0 0.0
        %1302 = vmatprep.subr.mxu0 0.0
        %1303 = vmatpush1.xpose.msra.mxu0 0.0
        %1304 = vmatprep.subr.mxu0 0.0
        %1305 = vmatpush1.xpose.msra.mxu0 0.0
        %1306 = vmatprep.subr.mxu0 0.0
        %1307 = vmatpush1.xpose.msra.mxu0 0.0
        %1308 = vmatprep.subr.mxu0 0.0
        %1309 = vmatpush1.xpose.msra.mxu0 0.0
        %1310 = vmatprep.subr.mxu0 0.0
        %1311 = vmatpush1.xpose.msra.mxu0 0.0
        %1312 = vmatprep.subr.mxu0 0.0
        %1313 = vmatpush1.xpose.msra.mxu0 0.0
        %1314 = vmatprep.subr.mxu0 0.0
        %1315 = vmatpush1.xpose.msra.mxu0 0.0
        %1316 = vmatprep.subr.mxu0 0.0
        %1317 = vmatpush1.xpose.msra.mxu0 0.0
        %1318 = vmatprep.subr.mxu0 0.0
        %1319 = vmatpush1.xpose.msra.mxu0 0.0
        %1320 = vmatprep.subr.mxu0 0.0
        %1321 = vmatpush1.xpose.msra.mxu0 0.0
        %1322 = vmatprep.subr.mxu0 0.0
        %1323 = vmatpush1.xpose.msra.mxu0 0.0
        %1324 = vmatprep.subr.mxu0 0.0
        %1325 = vmatpush1.xpose.msra.mxu0 0.0
        %1326 = vmatprep.subr.mxu0 0.0
        %1327 = vmatpush1.xpose.msra.mxu0 0.0
        %1328 = vmatprep.subr.mxu0 0.0
        %1329 = vmatpush1.xpose.msra.mxu0 0.0
        %1330 = vmatprep.subr.mxu0 0.0
        %1331 = vmatpush1.xpose.msra.mxu0 0.0
        %1332 = vmatprep.subr.mxu0 0.0
        %1333 = vmatpush1.xpose.msra.mxu0 0.0
        %1334 = vmatprep.mubr.f32.mxu0 0.0
        %1335 = vmatmul.mubr.f32.gmra.mrb[0].mxu0 %v1266
        %v1336 = vpop.f32.mrb[0].mxu0
        %v1337 = vadd.f32 0.0, %v1336
        %v1338 = vpop.f32.mrb[0].mxu0
        %1339 = vdwg.mxu0
        %v1340 = vmul.f32 %v1181, 0.35355338
        %v1341 = vmul.f32 %v1259, 0.35355338
        %v1342 = vmul.f32 %v1337, 0.35355338
        %v1343 = vadd.f32 %v1340, %v606
        %v1344 = vadd.f32 %v1341, %v606
        %v1345 = vadd.f32 %v1342, %v606
        %v1346 = vsel %vm610, %v1343, -inf
        %1347 = vmax.xlane.f32.xlu0 %v1346
        %v1348 = vpop.xlane.xlu0 %1347
        %v1349 = vsel %vm610, %v1344, -inf
        %1350 = vmax.xlane.f32.xlu0 %v1349
        %v1351 = vpop.xlane.xlu0 %1350
        %v1352 = vsel %vm610, %v1345, -inf
        %1353 = vmax.xlane.f32.xlu0 %v1352
        %v1354 = vpop.xlane.xlu0 %1353
        %v1355 = vsub.f32 %v1343, %v1348
        %v1356 = vsub.f32 %v1344, %v1351
        %v1357 = vsub.f32 %v1345, %v1354
        %v1358 = vmul.f32 %v1355, 1.442695
        %v1359 = vpow.pop %v1358
        %v1360 = vmul.f32 %v1356, 1.442695
        %v1361 = vpow.pop %v1360
        %v1362 = vmul.f32 %v1357, 1.442695
        %v1363 = vpow.pop %v1362
        %v1364 = vsel %vm610, %v1359, 0.0
        %1365 = vadd.xlane.f32.xlu0 %v1364
        %v1366 = vpop.xlane.xlu0 %1365
        %v1367 = vsel %vm610, %v1361, 0.0
        %1368 = vadd.xlane.f32.xlu0 %v1367
        %v1369 = vpop.xlane.xlu0 %1368
        %v1370 = vsel %vm610, %v1363, 0.0
        %1371 = vadd.xlane.f32.xlu0 %v1370
        %v1372 = vpop.xlane.xlu0 %1371
        %v1373 = vrcp.pop %v1366
        %v1374 = vrcp.pop %v1369
        %v1375 = vrcp.pop %v1372
        %v1376 = vmul.f32 %v1359, %v1373
        %v1377 = vmul.f32 %v1361, %v1374
        %v1378 = vmul.f32 %v1363, %v1375
        %1379 = vrot.lane.b32.xlu0 %v588, 56
        %v1380 = vpop.permute.xlu0 %1379
        %v1383 = vsel %vm610, %v1376, 0
        %1385 = vmatprep.subr.mxu0 0.0
        %1386 = vmatpush1.msra.mxu0 %v1380
        %1387 = vmatprep.subr.mxu0 0.0
        %1388 = vmatpush1.msra.mxu0 0.0
        %1389 = vmatprep.subr.mxu0 0.0
        %1390 = vmatpush1.msra.mxu0 0.0
        %1391 = vmatprep.subr.mxu0 0.0
        %1392 = vmatpush1.msra.mxu0 0.0
        %1393 = vmatprep.subr.mxu0 0.0
        %1394 = vmatpush1.msra.mxu0 0.0
        %1395 = vmatprep.subr.mxu0 0.0
        %1396 = vmatpush1.msra.mxu0 0.0
        %1397 = vmatprep.subr.mxu0 0.0
        %1398 = vmatpush1.msra.mxu0 0.0
        %1399 = vmatprep.subr.mxu0 0.0
        %1400 = vmatpush1.msra.mxu0 0.0
        %1401 = vmatprep.subr.mxu0 0.0
        %1402 = vmatpush1.msra.mxu0 0.0
        %1403 = vmatprep.subr.mxu0 0.0
        %1404 = vmatpush1.msra.mxu0 0.0
        %1405 = vmatprep.subr.mxu0 0.0
        %1406 = vmatpush1.msra.mxu0 0.0
        %1407 = vmatprep.subr.mxu0 0.0
        %1408 = vmatpush1.msra.mxu0 0.0
        %1409 = vmatprep.subr.mxu0 0.0
        %1410 = vmatpush1.msra.mxu0 0.0
        %1411 = vmatprep.subr.mxu0 0.0
        %1412 = vmatpush1.msra.mxu0 0.0
        %1413 = vmatprep.subr.mxu0 0.0
        %1414 = vmatpush1.msra.mxu0 0.0
        %1415 = vmatprep.subr.mxu0 0.0
        %1416 = vmatpush1.msra.mxu0 0.0
        %1417 = vmatprep.subr.mxu0 0.0
        %1418 = vmatpush1.msra.mxu0 0.0
        %1419 = vmatprep.subr.mxu0 0.0
        %1420 = vmatpush1.msra.mxu0 0.0
        %1421 = vmatprep.subr.mxu0 0.0
        %1422 = vmatpush1.msra.mxu0 0.0
        %1423 = vmatprep.subr.mxu0 0.0
        %1424 = vmatpush1.msra.mxu0 0.0
        %1425 = vmatprep.subr.mxu0 0.0
        %1426 = vmatpush1.msra.mxu0 0.0
        %1427 = vmatprep.subr.mxu0 0.0
        %1428 = vmatpush1.msra.mxu0 0.0
        %1429 = vmatprep.subr.mxu0 0.0
        %1430 = vmatpush1.msra.mxu0 0.0
        %1431 = vmatprep.subr.mxu0 0.0
        %1432 = vmatpush1.msra.mxu0 0.0
        %1433 = vmatprep.subr.mxu0 0.0
        %1434 = vmatpush1.msra.mxu0 0.0
        %1435 = vmatprep.subr.mxu0 0.0
        %1436 = vmatpush1.msra.mxu0 0.0
        %1437 = vmatprep.subr.mxu0 0.0
        %1438 = vmatpush1.msra.mxu0 0.0
        %1439 = vmatprep.subr.mxu0 0.0
        %1440 = vmatpush1.msra.mxu0 0.0
        %1441 = vmatprep.subr.mxu0 0.0
        %1442 = vmatpush1.msra.mxu0 0.0
        %1443 = vmatprep.subr.mxu0 0.0
        %1444 = vmatpush1.msra.mxu0 0.0
        %1445 = vmatprep.subr.mxu0 0.0
        %1446 = vmatpush1.msra.mxu0 0.0
        %1447 = vmatprep.subr.mxu0 0.0
        %1448 = vmatpush1.msra.mxu0 0.0
        %1449 = vmatprep.mubr.f32.mxu0 0.0
        %1450 = vmatmul.mubr.f32.gmra.mrb[0].mxu0 %v1383
        %v1451 = vpop.f32.mrb[0].mxu0
        %v1452 = vadd.f32 0.0, %v1451
        %v1453 = vpop.f32.mrb[0].mxu0
        %1454 = vdwg.mxu0
        %1455 = vrot.lane.b32.xlu0 %v593, 56
        %v1456 = vpop.permute.xlu0 %1455
        %v1459 = vsel %vm610, %v1377, 0
        %1461 = vmatprep.subr.mxu0 0.0
        %1462 = vmatpush1.msra.mxu0 %v1456
        %1463 = vmatprep.subr.mxu0 0.0
        %1464 = vmatpush1.msra.mxu0 0.0
        %1465 = vmatprep.subr.mxu0 0.0
        %1466 = vmatpush1.msra.mxu0 0.0
        %1467 = vmatprep.subr.mxu0 0.0
        %1468 = vmatpush1.msra.mxu0 0.0
        %1469 = vmatprep.subr.mxu0 0.0
        %1470 = vmatpush1.msra.mxu0 0.0
        %1471 = vmatprep.subr.mxu0 0.0
        %1472 = vmatpush1.msra.mxu0 0.0
        %1473 = vmatprep.subr.mxu0 0.0
        %1474 = vmatpush1.msra.mxu0 0.0
        %1475 = vmatprep.subr.mxu0 0.0
        %1476 = vmatpush1.msra.mxu0 0.0
        %1477 = vmatprep.subr.mxu0 0.0
        %1478 = vmatpush1.msra.mxu0 0.0
        %1479 = vmatprep.subr.mxu0 0.0
        %1480 = vmatpush1.msra.mxu0 0.0
        %1481 = vmatprep.subr.mxu0 0.0
        %1482 = vmatpush1.msra.mxu0 0.0
        %1483 = vmatprep.subr.mxu0 0.0
        %1484 = vmatpush1.msra.mxu0 0.0
        %1485 = vmatprep.subr.mxu0 0.0
        %1486 = vmatpush1.msra.mxu0 0.0
        %1487 = vmatprep.subr.mxu0 0.0
        %1488 = vmatpush1.msra.mxu0 0.0
        %1489 = vmatprep.subr.mxu0 0.0
        %1490 = vmatpush1.msra.mxu0 0.0
        %1491 = vmatprep.subr.mxu0 0.0
        %1492 = vmatpush1.msra.mxu0 0.0
        %1493 = vmatprep.subr.mxu0 0.0
        %1494 = vmatpush1.msra.mxu0 0.0
        %1495 = vmatprep.subr.mxu0 0.0
        %1496 = vmatpush1.msra.mxu0 0.0
        %1497 = vmatprep.subr.mxu0 0.0
        %1498 = vmatpush1.msra.mxu0 0.0
        %1499 = vmatprep.subr.mxu0 0.0
        %1500 = vmatpush1.msra.mxu0 0.0
        %1501 = vmatprep.subr.mxu0 0.0
        %1502 = vmatpush1.msra.mxu0 0.0
        %1503 = vmatprep.subr.mxu0 0.0
        %1504 = vmatpush1.msra.mxu0 0.0
        %1505 = vmatprep.subr.mxu0 0.0
        %1506 = vmatpush1.msra.mxu0 0.0
        %1507 = vmatprep.subr.mxu0 0.0
        %1508 = vmatpush1.msra.mxu0 0.0
        %1509 = vmatprep.subr.mxu0 0.0
        %1510 = vmatpush1.msra.mxu0 0.0
        %1511 = vmatprep.subr.mxu0 0.0
        %1512 = vmatpush1.msra.mxu0 0.0
        %1513 = vmatprep.subr.mxu0 0.0
        %1514 = vmatpush1.msra.mxu0 0.0
        %1515 = vmatprep.subr.mxu0 0.0
        %1516 = vmatpush1.msra.mxu0 0.0
        %1517 = vmatprep.subr.mxu0 0.0
        %1518 = vmatpush1.msra.mxu0 0.0
        %1519 = vmatprep.subr.mxu0 0.0
        %1520 = vmatpush1.msra.mxu0 0.0
        %1521 = vmatprep.subr.mxu0 0.0
        %1522 = vmatpush1.msra.mxu0 0.0
        %1523 = vmatprep.subr.mxu0 0.0
        %1524 = vmatpush1.msra.mxu0 0.0
        %1525 = vmatprep.mubr.f32.mxu0 0.0
        %1526 = vmatmul.mubr.f32.gmra.mrb[0].mxu0 %v1459
        %v1527 = vpop.f32.mrb[0].mxu0
        %v1528 = vadd.f32 0.0, %v1527
        %v1529 = vpop.f32.mrb[0].mxu0
        %1530 = vdwg.mxu0
        %1531 = vrot.lane.b32.xlu0 %v598, 56
        %v1532 = vpop.permute.xlu0 %1531
        %v1535 = vsel %vm610, %v1378, 0
        %1537 = vmatprep.subr.mxu0 0.0
        %1538 = vmatpush1.msra.mxu0 %v1532
        %1539 = vmatprep.subr.mxu0 0.0
        %1540 = vmatpush1.msra.mxu0 0.0
        %1541 = vmatprep.subr.mxu0 0.0
        %1542 = vmatpush1.msra.mxu0 0.0
        %1543 = vmatprep.subr.mxu0 0.0
        %1544 = vmatpush1.msra.mxu0 0.0
        %1545 = vmatprep.subr.mxu0 0.0
        %1546 = vmatpush1.msra.mxu0 0.0
        %1547 = vmatprep.subr.mxu0 0.0
        %1548 = vmatpush1.msra.mxu0 0.0
        %1549 = vmatprep.subr.mxu0 0.0
        %1550 = vmatpush1.msra.mxu0 0.0
        %1551 = vmatprep.subr.mxu0 0.0
        %1552 = vmatpush1.msra.mxu0 0.0
        %1553 = vmatprep.subr.mxu0 0.0
        %1554 = vmatpush1.msra.mxu0 0.0
        %1555 = vmatprep.subr.mxu0 0.0
        %1556 = vmatpush1.msra.mxu0 0.0
        %1557 = vmatprep.subr.mxu0 0.0
        %1558 = vmatpush1.msra.mxu0 0.0
        %1559 = vmatprep.subr.mxu0 0.0
        %1560 = vmatpush1.msra.mxu0 0.0
        %1561 = vmatprep.subr.mxu0 0.0
        %1562 = vmatpush1.msra.mxu0 0.0
        %1563 = vmatprep.subr.mxu0 0.0
        %1564 = vmatpush1.msra.mxu0 0.0
        %1565 = vmatprep.subr.mxu0 0.0
        %1566 = vmatpush1.msra.mxu0 0.0
        %1567 = vmatprep.subr.mxu0 0.0
        %1568 = vmatpush1.msra.mxu0 0.0
        %1569 = vmatprep.subr.mxu0 0.0
        %1570 = vmatpush1.msra.mxu0 0.0
        %1571 = vmatprep.subr.mxu0 0.0
        %1572 = vmatpush1.msra.mxu0 0.0
        %1573 = vmatprep.subr.mxu0 0.0
        %1574 = vmatpush1.msra.mxu0 0.0
        %1575 = vmatprep.subr.mxu0 0.0
        %1576 = vmatpush1.msra.mxu0 0.0
        %1577 = vmatprep.subr.mxu0 0.0
        %1578 = vmatpush1.msra.mxu0 0.0
        %1579 = vmatprep.subr.mxu0 0.0
        %1580 = vmatpush1.msra.mxu0 0.0
        %1581 = vmatprep.subr.mxu0 0.0
        %1582 = vmatpush1.msra.mxu0 0.0
        %1583 = vmatprep.subr.mxu0 0.0
        %1584 = vmatpush1.msra.mxu0 0.0
        %1585 = vmatprep.subr.mxu0 0.0
        %1586 = vmatpush1.msra.mxu0 0.0
        %1587 = vmatprep.subr.mxu0 0.0
        %1588 = vmatpush1.msra.mxu0 0.0
        %1589 = vmatprep.subr.mxu0 0.0
        %1590 = vmatpush1.msra.mxu0 0.0
        %1591 = vmatprep.subr.mxu0 0.0
        %1592 = vmatpush1.msra.mxu0 0.0
        %1593 = vmatprep.subr.mxu0 0.0
        %1594 = vmatpush1.msra.mxu0 0.0
        %1595 = vmatprep.subr.mxu0 0.0
        %1596 = vmatpush1.msra.mxu0 0.0
        %1597 = vmatprep.subr.mxu0 0.0
        %1598 = vmatpush1.msra.mxu0 0.0
        %1599 = vmatprep.subr.mxu0 0.0
        %1600 = vmatpush1.msra.mxu0 0.0
        %1601 = vmatprep.mubr.f32.mxu0 0.0
        %1602 = vmatmul.mubr.f32.gmra.mrb[0].mxu0 %v1535
        %v1603 = vpop.f32.mrb[0].mxu0
        %v1604 = vadd.f32 0.0, %v1603
        %v1605 = vpop.f32.mrb[0].mxu0
        %1606 = vdwg.mxu0
        %v1608 = vsel %vm610, %v1452, 0
        %v1611 = vsel %vm610, %v1528, 0
        %v1614 = vsel %vm610, %v1604, 0
        %1616 = vmatprep.subr.mxu0 0.0
        %1617 = vmatpush1.msra.mxu0 %v423
        %1618 = vmatprep.subr.mxu0 0.0
        %1619 = vmatpush1.msra.mxu0 0.0
        %1620 = vmatprep.subr.mxu0 0.0
        %1621 = vmatpush1.msra.mxu0 0.0
        %1622 = vmatprep.subr.mxu0 0.0
        %1623 = vmatpush1.msra.mxu0 0.0
        %1624 = vmatprep.subr.mxu0 0.0
        %1625 = vmatpush1.msra.mxu0 0.0
        %1626 = vmatprep.subr.mxu0 0.0
        %1627 = vmatpush1.msra.mxu0 0.0
        %1628 = vmatprep.subr.mxu0 0.0
        %1629 = vmatpush1.msra.mxu0 0.0
        %1630 = vmatprep.subr.mxu0 0.0
        %1631 = vmatpush1.msra.mxu0 0.0
        %1632 = vmatprep.subr.mxu0 0.0
        %1633 = vmatpush1.msra.mxu0 0.0
        %1634 = vmatprep.subr.mxu0 0.0
        %1635 = vmatpush1.msra.mxu0 0.0
        %1636 = vmatprep.subr.mxu0 0.0
        %1637 = vmatpush1.msra.mxu0 0.0
        %1638 = vmatprep.subr.mxu0 0.0
        %1639 = vmatpush1.msra.mxu0 0.0
        %1640 = vmatprep.subr.mxu0 0.0
        %1641 = vmatpush1.msra.mxu0 0.0
        %1642 = vmatprep.subr.mxu0 0.0
        %1643 = vmatpush1.msra.mxu0 0.0
        %1644 = vmatprep.subr.mxu0 0.0
        %1645 = vmatpush1.msra.mxu0 0.0
        %1646 = vmatprep.subr.mxu0 0.0
        %1647 = vmatpush1.msra.mxu0 0.0
        %1648 = vmatprep.subr.mxu0 0.0
        %1649 = vmatpush1.msra.mxu0 0.0
        %1650 = vmatprep.subr.mxu0 0.0
        %1651 = vmatpush1.msra.mxu0 0.0
        %1652 = vmatprep.subr.mxu0 0.0
        %1653 = vmatpush1.msra.mxu0 0.0
        %1654 = vmatprep.subr.mxu0 0.0
        %1655 = vmatpush1.msra.mxu0 0.0
        %1656 = vmatprep.subr.mxu0 0.0
        %1657 = vmatpush1.msra.mxu0 0.0
        %1658 = vmatprep.subr.mxu0 0.0
        %1659 = vmatpush1.msra.mxu0 0.0
        %1660 = vmatprep.subr.mxu0 0.0
        %1661 = vmatpush1.msra.mxu0 0.0
        %1662 = vmatprep.subr.mxu0 0.0
        %1663 = vmatpush1.msra.mxu0 0.0
        %1664 = vmatprep.subr.mxu0 0.0
        %1665 = vmatpush1.msra.mxu0 0.0
        %1666 = vmatprep.subr.mxu0 0.0
        %1667 = vmatpush1.msra.mxu0 0.0
        %1668 = vmatprep.subr.mxu0 0.0
        %1669 = vmatpush1.msra.mxu0 0.0
        %1670 = vmatprep.subr.mxu0 0.0
        %1671 = vmatpush1.msra.mxu0 0.0
        %1672 = vmatprep.subr.mxu0 0.0
        %1673 = vmatpush1.msra.mxu0 0.0
        %1674 = vmatprep.subr.mxu0 0.0
        %1675 = vmatpush1.msra.mxu0 0.0
        %1676 = vmatprep.subr.mxu0 0.0
        %1677 = vmatpush1.msra.mxu0 0.0
        %1678 = vmatprep.subr.mxu0 0.0
        %1679 = vmatpush1.msra.mxu0 0.0
        %1680 = vmatprep.mubr.f32.mxu0 0.0
        %1681 = vmatmul.mubr.f32.gmra.mrb[0].mxu0 %v1608
        %v1682 = vpop.f32.mrb[0].mxu0
        %v1683 = vadd.f32 0.0, %v1682
        %v1684 = vpop.f32.mrb[0].mxu0
        %1685 = vmatprep.mubr.f32.mxu0 0.0
        %1686 = vmatmul.mubr.f32.gmra.mrb[0].mxu0 %v1611
        %v1687 = vpop.f32.mrb[0].mxu0
        %v1688 = vadd.f32 0.0, %v1687
        %v1689 = vpop.f32.mrb[0].mxu0
        %1690 = vmatprep.mubr.f32.mxu0 0.0
        %1691 = vmatmul.mubr.f32.gmra.mrb[0].mxu0 %v1614
        %v1692 = vpop.f32.mrb[0].mxu0
        %v1693 = vadd.f32 0.0, %v1692
        %v1694 = vpop.f32.mrb[0].mxu0
        %1695 = vdwg.mxu0
        %v1697 = vsel %vm610, %v951, 0
        %v1700 = vsel %vm610, %v1027, 0
        %v1703 = vsel %vm610, %v1103, 0
        %1705 = vmatprep.subr.mxu0 0.0
        %1706 = vmatpush1.msra.mxu0 %v422
        %1707 = vmatprep.subr.mxu0 0.0
        %1708 = vmatpush1.msra.mxu0 0.0
        %1709 = vmatprep.subr.mxu0 0.0
        %1710 = vmatpush1.msra.mxu0 0.0
        %1711 = vmatprep.subr.mxu0 0.0
        %1712 = vmatpush1.msra.mxu0 0.0
        %1713 = vmatprep.subr.mxu0 0.0
        %1714 = vmatpush1.msra.mxu0 0.0
        %1715 = vmatprep.subr.mxu0 0.0
        %1716 = vmatpush1.msra.mxu0 0.0
        %1717 = vmatprep.subr.mxu0 0.0
        %1718 = vmatpush1.msra.mxu0 0.0
        %1719 = vmatprep.subr.mxu0 0.0
        %1720 = vmatpush1.msra.mxu0 0.0
        %1721 = vmatprep.subr.mxu0 0.0
        %1722 = vmatpush1.msra.mxu0 0.0
        %1723 = vmatprep.subr.mxu0 0.0
        %1724 = vmatpush1.msra.mxu0 0.0
        %1725 = vmatprep.subr.mxu0 0.0
        %1726 = vmatpush1.msra.mxu0 0.0
        %1727 = vmatprep.subr.mxu0 0.0
        %1728 = vmatpush1.msra.mxu0 0.0
        %1729 = vmatprep.subr.mxu0 0.0
        %1730 = vmatpush1.msra.mxu0 0.0
        %1731 = vmatprep.subr.mxu0 0.0
        %1732 = vmatpush1.msra.mxu0 0.0
        %1733 = vmatprep.subr.mxu0 0.0
        %1734 = vmatpush1.msra.mxu0 0.0
        %1735 = vmatprep.subr.mxu0 0.0
        %1736 = vmatpush1.msra.mxu0 0.0
        %1737 = vmatprep.subr.mxu0 0.0
        %1738 = vmatpush1.msra.mxu0 0.0
        %1739 = vmatprep.subr.mxu0 0.0
        %1740 = vmatpush1.msra.mxu0 0.0
        %1741 = vmatprep.subr.mxu0 0.0
        %1742 = vmatpush1.msra.mxu0 0.0
        %1743 = vmatprep.subr.mxu0 0.0
        %1744 = vmatpush1.msra.mxu0 0.0
        %1745 = vmatprep.subr.mxu0 0.0
        %1746 = vmatpush1.msra.mxu0 0.0
        %1747 = vmatprep.subr.mxu0 0.0
        %1748 = vmatpush1.msra.mxu0 0.0
        %1749 = vmatprep.subr.mxu0 0.0
        %1750 = vmatpush1.msra.mxu0 0.0
        %1751 = vmatprep.subr.mxu0 0.0
        %1752 = vmatpush1.msra.mxu0 0.0
        %1753 = vmatprep.subr.mxu0 0.0
        %1754 = vmatpush1.msra.mxu0 0.0
        %1755 = vmatprep.subr.mxu0 0.0
        %1756 = vmatpush1.msra.mxu0 0.0
        %1757 = vmatprep.subr.mxu0 0.0
        %1758 = vmatpush1.msra.mxu0 0.0
        %1759 = vmatprep.subr.mxu0 0.0
        %1760 = vmatpush1.msra.mxu0 0.0
        %1761 = vmatprep.subr.mxu0 0.0
        %1762 = vmatpush1.msra.mxu0 0.0
        %1763 = vmatprep.subr.mxu0 0.0
        %1764 = vmatpush1.msra.mxu0 0.0
        %1765 = vmatprep.subr.mxu0 0.0
        %1766 = vmatpush1.msra.mxu0 0.0
        %1767 = vmatprep.subr.mxu0 0.0
        %1768 = vmatpush1.msra.mxu0 0.0
        %1769 = vmatprep.mubr.f32.mxu0 0.0
        %1770 = vmatmul.mubr.f32.gmra.mrb[0].mxu0 %v1697
        %v1771 = vpop.f32.mrb[0].mxu0
        %v1772 = vadd.f32 %v1683, %v1771
        %v1773 = vpop.f32.mrb[0].mxu0
        %1774 = vmatprep.mubr.f32.mxu0 0.0
        %1775 = vmatmul.mubr.f32.gmra.mrb[0].mxu0 %v1700
        %v1776 = vpop.f32.mrb[0].mxu0
        %v1777 = vadd.f32 %v1688, %v1776
        %v1778 = vpop.f32.mrb[0].mxu0
        %1779 = vmatprep.mubr.f32.mxu0 0.0
        %1780 = vmatmul.mubr.f32.gmra.mrb[0].mxu0 %v1703
        %v1781 = vpop.f32.mrb[0].mxu0
        %v1782 = vadd.f32 %v1693, %v1781
        %v1783 = vpop.f32.mrb[0].mxu0
        %1784 = vdwg.mxu0
        %1785 = vrot.lane.b32.xlu0 %v588, 112
        %v1786 = vpop.permute.xlu0 %1785
        %1787 = vrot.lane.b32.xlu0 %v588, 80
        %v1788 = vpop.permute.xlu0 %1787
        %v1789 = vsel %vm610, %v1786, 0
        %v1791 = vsel %vm610, %v1788, 0
        %1793 = vmatprep.subr.mxu0 0.0
        %1794 = vmatpush1.xpose.msra.mxu0 %v1791
        %1795 = vmatprep.subr.mxu0 0.0
        %1796 = vmatpush1.xpose.msra.mxu0 0.0
        %1797 = vmatprep.subr.mxu0 0.0
        %1798 = vmatpush1.xpose.msra.mxu0 0.0
        %1799 = vmatprep.subr.mxu0 0.0
        %1800 = vmatpush1.xpose.msra.mxu0 0.0
        %1801 = vmatprep.subr.mxu0 0.0
        %1802 = vmatpush1.xpose.msra.mxu0 0.0
        %1803 = vmatprep.subr.mxu0 0.0
        %1804 = vmatpush1.xpose.msra.mxu0 0.0
        %1805 = vmatprep.subr.mxu0 0.0
        %1806 = vmatpush1.xpose.msra.mxu0 0.0
        %1807 = vmatprep.subr.mxu0 0.0
        %1808 = vmatpush1.xpose.msra.mxu0 0.0
        %1809 = vmatprep.subr.mxu0 0.0
        %1810 = vmatpush1.xpose.msra.mxu0 0.0
        %1811 = vmatprep.subr.mxu0 0.0
        %1812 = vmatpush1.xpose.msra.mxu0 0.0
        %1813 = vmatprep.subr.mxu0 0.0
        %1814 = vmatpush1.xpose.msra.mxu0 0.0
        %1815 = vmatprep.subr.mxu0 0.0
        %1816 = vmatpush1.xpose.msra.mxu0 0.0
        %1817 = vmatprep.subr.mxu0 0.0
        %1818 = vmatpush1.xpose.msra.mxu0 0.0
        %1819 = vmatprep.subr.mxu0 0.0
        %1820 = vmatpush1.xpose.msra.mxu0 0.0
        %1821 = vmatprep.subr.mxu0 0.0
        %1822 = vmatpush1.xpose.msra.mxu0 0.0
        %1823 = vmatprep.subr.mxu0 0.0
        %1824 = vmatpush1.xpose.msra.mxu0 0.0
        %1825 = vmatprep.subr.mxu0 0.0
        %1826 = vmatpush1.xpose.msra.mxu0 0.0
        %1827 = vmatprep.subr.mxu0 0.0
        %1828 = vmatpush1.xpose.msra.mxu0 0.0
        %1829 = vmatprep.subr.mxu0 0.0
        %1830 = vmatpush1.xpose.msra.mxu0 0.0
        %1831 = vmatprep.subr.mxu0 0.0
        %1832 = vmatpush1.xpose.msra.mxu0 0.0
        %1833 = vmatprep.subr.mxu0 0.0
        %1834 = vmatpush1.xpose.msra.mxu0 0.0
        %1835 = vmatprep.subr.mxu0 0.0
        %1836 = vmatpush1.xpose.msra.mxu0 0.0
        %1837 = vmatprep.subr.mxu0 0.0
        %1838 = vmatpush1.xpose.msra.mxu0 0.0
        %1839 = vmatprep.subr.mxu0 0.0
        %1840 = vmatpush1.xpose.msra.mxu0 0.0
        %1841 = vmatprep.subr.mxu0 0.0
        %1842 = vmatpush1.xpose.msra.mxu0 0.0
        %1843 = vmatprep.subr.mxu0 0.0
        %1844 = vmatpush1.xpose.msra.mxu0 0.0
        %1845 = vmatprep.subr.mxu0 0.0
        %1846 = vmatpush1.xpose.msra.mxu0 0.0
        %1847 = vmatprep.subr.mxu0 0.0
        %1848 = vmatpush1.xpose.msra.mxu0 0.0
        %1849 = vmatprep.subr.mxu0 0.0
        %1850 = vmatpush1.xpose.msra.mxu0 0.0
        %1851 = vmatprep.subr.mxu0 0.0
        %1852 = vmatpush1.xpose.msra.mxu0 0.0
        %1853 = vmatprep.subr.mxu0 0.0
        %1854 = vmatpush1.xpose.msra.mxu0 0.0
        %1855 = vmatprep.subr.mxu0 0.0
        %1856 = vmatpush1.xpose.msra.mxu0 0.0
        %1857 = vmatprep.mubr.f32.mxu0 0.0
        %1858 = vmatmul.mubr.f32.gmra.mrb[0].mxu0 %v1789
        %v1859 = vpop.f32.mrb[0].mxu0
        %v1860 = vadd.f32 0.0, %v1859
        %v1861 = vpop.f32.mrb[0].mxu0
        %1862 = vdwg.mxu0
        %1863 = vrot.lane.b32.xlu0 %v593, 112
        %v1864 = vpop.permute.xlu0 %1863
        %1865 = vrot.lane.b32.xlu0 %v593, 80
        %v1866 = vpop.permute.xlu0 %1865
        %v1867 = vsel %vm610, %v1864, 0
        %v1869 = vsel %vm610, %v1866, 0
        %1871 = vmatprep.subr.mxu0 0.0
        %1872 = vmatpush1.xpose.msra.mxu0 %v1869
        %1873 = vmatprep.subr.mxu0 0.0
        %1874 = vmatpush1.xpose.msra.mxu0 0.0
        %1875 = vmatprep.subr.mxu0 0.0
        %1876 = vmatpush1.xpose.msra.mxu0 0.0
        %1877 = vmatprep.subr.mxu0 0.0
        %1878 = vmatpush1.xpose.msra.mxu0 0.0
        %1879 = vmatprep.subr.mxu0 0.0
        %1880 = vmatpush1.xpose.msra.mxu0 0.0
        %1881 = vmatprep.subr.mxu0 0.0
        %1882 = vmatpush1.xpose.msra.mxu0 0.0
        %1883 = vmatprep.subr.mxu0 0.0
        %1884 = vmatpush1.xpose.msra.mxu0 0.0
        %1885 = vmatprep.subr.mxu0 0.0
        %1886 = vmatpush1.xpose.msra.mxu0 0.0
        %1887 = vmatprep.subr.mxu0 0.0
        %1888 = vmatpush1.xpose.msra.mxu0 0.0
        %1889 = vmatprep.subr.mxu0 0.0
        %1890 = vmatpush1.xpose.msra.mxu0 0.0
        %1891 = vmatprep.subr.mxu0 0.0
        %1892 = vmatpush1.xpose.msra.mxu0 0.0
        %1893 = vmatprep.subr.mxu0 0.0
        %1894 = vmatpush1.xpose.msra.mxu0 0.0
        %1895 = vmatprep.subr.mxu0 0.0
        %1896 = vmatpush1.xpose.msra.mxu0 0.0
        %1897 = vmatprep.subr.mxu0 0.0
        %1898 = vmatpush1.xpose.msra.mxu0 0.0
        %1899 = vmatprep.subr.mxu0 0.0
        %1900 = vmatpush1.xpose.msra.mxu0 0.0
        %1901 = vmatprep.subr.mxu0 0.0
        %1902 = vmatpush1.xpose.msra.mxu0 0.0
        %1903 = vmatprep.subr.mxu0 0.0
        %1904 = vmatpush1.xpose.msra.mxu0 0.0
        %1905 = vmatprep.subr.mxu0 0.0
        %1906 = vmatpush1.xpose.msra.mxu0 0.0
        %1907 = vmatprep.subr.mxu0 0.0
        %1908 = vmatpush1.xpose.msra.mxu0 0.0
        %1909 = vmatprep.subr.mxu0 0.0
        %1910 = vmatpush1.xpose.msra.mxu0 0.0
        %1911 = vmatprep.subr.mxu0 0.0
        %1912 = vmatpush1.xpose.msra.mxu0 0.0
        %1913 = vmatprep.subr.mxu0 0.0
        %1914 = vmatpush1.xpose.msra.mxu0 0.0
        %1915 = vmatprep.subr.mxu0 0.0
        %1916 = vmatpush1.xpose.msra.mxu0 0.0
        %1917 = vmatprep.subr.mxu0 0.0
        %1918 = vmatpush1.xpose.msra.mxu0 0.0
        %1919 = vmatprep.subr.mxu0 0.0
        %1920 = vmatpush1.xpose.msra.mxu0 0.0
        %1921 = vmatprep.subr.mxu0 0.0
        %1922 = vmatpush1.xpose.msra.mxu0 0.0
        %1923 = vmatprep.subr.mxu0 0.0
        %1924 = vmatpush1.xpose.msra.mxu0 0.0
        %1925 = vmatprep.subr.mxu0 0.0
        %1926 = vmatpush1.xpose.msra.mxu0 0.0
        %1927 = vmatprep.subr.mxu0 0.0
        %1928 = vmatpush1.xpose.msra.mxu0 0.0
        %1929 = vmatprep.subr.mxu0 0.0
        %1930 = vmatpush1.xpose.msra.mxu0 0.0
        %1931 = vmatprep.subr.mxu0 0.0
        %1932 = vmatpush1.xpose.msra.mxu0 0.0
        %1933 = vmatprep.subr.mxu0 0.0
        %1934 = vmatpush1.xpose.msra.mxu0 0.0
        %1935 = vmatprep.mubr.f32.mxu0 0.0
        %1936 = vmatmul.mubr.f32.gmra.mrb[0].mxu0 %v1867
        %v1937 = vpop.f32.mrb[0].mxu0
        %v1938 = vadd.f32 0.0, %v1937
        %v1939 = vpop.f32.mrb[0].mxu0
        %1940 = vdwg.mxu0
        %1941 = vrot.lane.b32.xlu0 %v598, 112
        %v1942 = vpop.permute.xlu0 %1941
        %1943 = vrot.lane.b32.xlu0 %v598, 80
        %v1944 = vpop.permute.xlu0 %1943
        %v1945 = vsel %vm610, %v1942, 0
        %v1947 = vsel %vm610, %v1944, 0
        %1949 = vmatprep.subr.mxu0 0.0
        %1950 = vmatpush1.xpose.msra.mxu0 %v1947
        %1951 = vmatprep.subr.mxu0 0.0
        %1952 = vmatpush1.xpose.msra.mxu0 0.0
        %1953 = vmatprep.subr.mxu0 0.0
        %1954 = vmatpush1.xpose.msra.mxu0 0.0
        %1955 = vmatprep.subr.mxu0 0.0
        %1956 = vmatpush1.xpose.msra.mxu0 0.0
        %1957 = vmatprep.subr.mxu0 0.0
        %1958 = vmatpush1.xpose.msra.mxu0 0.0
        %1959 = vmatprep.subr.mxu0 0.0
        %1960 = vmatpush1.xpose.msra.mxu0 0.0
        %1961 = vmatprep.subr.mxu0 0.0
        %1962 = vmatpush1.xpose.msra.mxu0 0.0
        %1963 = vmatprep.subr.mxu0 0.0
        %1964 = vmatpush1.xpose.msra.mxu0 0.0
        %1965 = vmatprep.subr.mxu0 0.0
        %1966 = vmatpush1.xpose.msra.mxu0 0.0
        %1967 = vmatprep.subr.mxu0 0.0
        %1968 = vmatpush1.xpose.msra.mxu0 0.0
        %1969 = vmatprep.subr.mxu0 0.0
        %1970 = vmatpush1.xpose.msra.mxu0 0.0
        %1971 = vmatprep.subr.mxu0 0.0
        %1972 = vmatpush1.xpose.msra.mxu0 0.0
        %1973 = vmatprep.subr.mxu0 0.0
        %1974 = vmatpush1.xpose.msra.mxu0 0.0
        %1975 = vmatprep.subr.mxu0 0.0
        %1976 = vmatpush1.xpose.msra.mxu0 0.0
        %1977 = vmatprep.subr.mxu0 0.0
        %1978 = vmatpush1.xpose.msra.mxu0 0.0
        %1979 = vmatprep.subr.mxu0 0.0
        %1980 = vmatpush1.xpose.msra.mxu0 0.0
        %1981 = vmatprep.subr.mxu0 0.0
        %1982 = vmatpush1.xpose.msra.mxu0 0.0
        %1983 = vmatprep.subr.mxu0 0.0
        %1984 = vmatpush1.xpose.msra.mxu0 0.0
        %1985 = vmatprep.subr.mxu0 0.0
        %1986 = vmatpush1.xpose.msra.mxu0 0.0
        %1987 = vmatprep.subr.mxu0 0.0
        %1988 = vmatpush1.xpose.msra.mxu0 0.0
        %1989 = vmatprep.subr.mxu0 0.0
        %1990 = vmatpush1.xpose.msra.mxu0 0.0
        %1991 = vmatprep.subr.mxu0 0.0
        %1992 = vmatpush1.xpose.msra.mxu0 0.0
        %1993 = vmatprep.subr.mxu0 0.0
        %1994 = vmatpush1.xpose.msra.mxu0 0.0
        %1995 = vmatprep.subr.mxu0 0.0
        %1996 = vmatpush1.xpose.msra.mxu0 0.0
        %1997 = vmatprep.subr.mxu0 0.0
        %1998 = vmatpush1.xpose.msra.mxu0 0.0
        %1999 = vmatprep.subr.mxu0 0.0
        %2000 = vmatpush1.xpose.msra.mxu0 0.0
        %2001 = vmatprep.subr.mxu0 0.0
        %2002 = vmatpush1.xpose.msra.mxu0 0.0
        %2003 = vmatprep.subr.mxu0 0.0
        %2004 = vmatpush1.xpose.msra.mxu0 0.0
        %2005 = vmatprep.subr.mxu0 0.0
        %2006 = vmatpush1.xpose.msra.mxu0 0.0
        %2007 = vmatprep.subr.mxu0 0.0
        %2008 = vmatpush1.xpose.msra.mxu0 0.0
        %2009 = vmatprep.subr.mxu0 0.0
        %2010 = vmatpush1.xpose.msra.mxu0 0.0
        %2011 = vmatprep.subr.mxu0 0.0
        %2012 = vmatpush1.xpose.msra.mxu0 0.0
        %2013 = vmatprep.mubr.f32.mxu0 0.0
        %2014 = vmatmul.mubr.f32.gmra.mrb[0].mxu0 %v1945
        %v2015 = vpop.f32.mrb[0].mxu0
        %v2016 = vadd.f32 0.0, %v2015
        %v2017 = vpop.f32.mrb[0].mxu0
        %2018 = vdwg.mxu0
        %v2019 = vmul.f32 %v1860, 0.35355338
        %v2020 = vmul.f32 %v1938, 0.35355338
        %v2021 = vmul.f32 %v2016, 0.35355338
        %v2022 = vadd.f32 %v2019, %v606
        %v2023 = vadd.f32 %v2020, %v606
        %v2024 = vadd.f32 %v2021, %v606
        %v2025 = vsel %vm610, %v2022, -inf
        %2026 = vmax.xlane.f32.xlu0 %v2025
        %v2027 = vpop.xlane.xlu0 %2026
        %v2028 = vsel %vm610, %v2023, -inf
        %2029 = vmax.xlane.f32.xlu0 %v2028
        %v2030 = vpop.xlane.xlu0 %2029
        %v2031 = vsel %vm610, %v2024, -inf
        %2032 = vmax.xlane.f32.xlu0 %v2031
        %v2033 = vpop.xlane.xlu0 %2032
        %v2034 = vsub.f32 %v2022, %v2027
        %v2035 = vsub.f32 %v2023, %v2030
        %v2036 = vsub.f32 %v2024, %v2033
        %v2037 = vmul.f32 %v2034, 1.442695
        %v2038 = vpow.pop %v2037
        %v2039 = vmul.f32 %v2035, 1.442695
        %v2040 = vpow.pop %v2039
        %v2041 = vmul.f32 %v2036, 1.442695
        %v2042 = vpow.pop %v2041
        %v2043 = vsel %vm610, %v2038, 0.0
        %2044 = vadd.xlane.f32.xlu0 %v2043
        %v2045 = vpop.xlane.xlu0 %2044
        %v2046 = vsel %vm610, %v2040, 0.0
        %2047 = vadd.xlane.f32.xlu0 %v2046
        %v2048 = vpop.xlane.xlu0 %2047
        %v2049 = vsel %vm610, %v2042, 0.0
        %2050 = vadd.xlane.f32.xlu0 %v2049
        %v2051 = vpop.xlane.xlu0 %2050
        %v2052 = vrcp.pop %v2045
        %v2053 = vrcp.pop %v2048
        %v2054 = vrcp.pop %v2051
        %v2055 = vmul.f32 %v2038, %v2052
        %v2056 = vmul.f32 %v2040, %v2053
        %v2057 = vmul.f32 %v2042, %v2054
        %2058 = vrot.lane.b32.xlu0 %v588, 48
        %v2059 = vpop.permute.xlu0 %2058
        %v2062 = vsel %vm610, %v2055, 0
        %2064 = vmatprep.subr.mxu0 0.0
        %2065 = vmatpush1.msra.mxu0 %v2059
        %2066 = vmatprep.subr.mxu0 0.0
        %2067 = vmatpush1.msra.mxu0 0.0
        %2068 = vmatprep.subr.mxu0 0.0
        %2069 = vmatpush1.msra.mxu0 0.0
        %2070 = vmatprep.subr.mxu0 0.0
        %2071 = vmatpush1.msra.mxu0 0.0
        %2072 = vmatprep.subr.mxu0 0.0
        %2073 = vmatpush1.msra.mxu0 0.0
        %2074 = vmatprep.subr.mxu0 0.0
        %2075 = vmatpush1.msra.mxu0 0.0
        %2076 = vmatprep.subr.mxu0 0.0
        %2077 = vmatpush1.msra.mxu0 0.0
        %2078 = vmatprep.subr.mxu0 0.0
        %2079 = vmatpush1.msra.mxu0 0.0
        %2080 = vmatprep.subr.mxu0 0.0
        %2081 = vmatpush1.msra.mxu0 0.0
        %2082 = vmatprep.subr.mxu0 0.0
        %2083 = vmatpush1.msra.mxu0 0.0
        %2084 = vmatprep.subr.mxu0 0.0
        %2085 = vmatpush1.msra.mxu0 0.0
        %2086 = vmatprep.subr.mxu0 0.0
        %2087 = vmatpush1.msra.mxu0 0.0
        %2088 = vmatprep.subr.mxu0 0.0
        %2089 = vmatpush1.msra.mxu0 0.0
        %2090 = vmatprep.subr.mxu0 0.0
        %2091 = vmatpush1.msra.mxu0 0.0
        %2092 = vmatprep.subr.mxu0 0.0
        %2093 = vmatpush1.msra.mxu0 0.0
        %2094 = vmatprep.subr.mxu0 0.0
        %2095 = vmatpush1.msra.mxu0 0.0
        %2096 = vmatprep.subr.mxu0 0.0
        %2097 = vmatpush1.msra.mxu0 0.0
        %2098 = vmatprep.subr.mxu0 0.0
        %2099 = vmatpush1.msra.mxu0 0.0
        %2100 = vmatprep.subr.mxu0 0.0
        %2101 = vmatpush1.msra.mxu0 0.0
        %2102 = vmatprep.subr.mxu0 0.0
        %2103 = vmatpush1.msra.mxu0 0.0
        %2104 = vmatprep.subr.mxu0 0.0
        %2105 = vmatpush1.msra.mxu0 0.0
        %2106 = vmatprep.subr.mxu0 0.0
        %2107 = vmatpush1.msra.mxu0 0.0
        %2108 = vmatprep.subr.mxu0 0.0
        %2109 = vmatpush1.msra.mxu0 0.0
        %2110 = vmatprep.subr.mxu0 0.0
        %2111 = vmatpush1.msra.mxu0 0.0
        %2112 = vmatprep.subr.mxu0 0.0
        %2113 = vmatpush1.msra.mxu0 0.0
        %2114 = vmatprep.subr.mxu0 0.0
        %2115 = vmatpush1.msra.mxu0 0.0
        %2116 = vmatprep.subr.mxu0 0.0
        %2117 = vmatpush1.msra.mxu0 0.0
        %2118 = vmatprep.subr.mxu0 0.0
        %2119 = vmatpush1.msra.mxu0 0.0
        %2120 = vmatprep.subr.mxu0 0.0
        %2121 = vmatpush1.msra.mxu0 0.0
        %2122 = vmatprep.subr.mxu0 0.0
        %2123 = vmatpush1.msra.mxu0 0.0
        %2124 = vmatprep.subr.mxu0 0.0
        %2125 = vmatpush1.msra.mxu0 0.0
        %2126 = vmatprep.subr.mxu0 0.0
        %2127 = vmatpush1.msra.mxu0 0.0
        %2128 = vmatprep.mubr.f32.mxu0 0.0
        %2129 = vmatmul.mubr.f32.gmra.mrb[0].mxu0 %v2062
        %v2130 = vpop.f32.mrb[0].mxu0
        %v2131 = vadd.f32 0.0, %v2130
        %v2132 = vpop.f32.mrb[0].mxu0
        %2133 = vdwg.mxu0
        %2134 = vrot.lane.b32.xlu0 %v593, 48
        %v2135 = vpop.permute.xlu0 %2134
        %v2138 = vsel %vm610, %v2056, 0
        %2140 = vmatprep.subr.mxu0 0.0
        %2141 = vmatpush1.msra.mxu0 %v2135
        %2142 = vmatprep.subr.mxu0 0.0
        %2143 = vmatpush1.msra.mxu0 0.0
        %2144 = vmatprep.subr.mxu0 0.0
        %2145 = vmatpush1.msra.mxu0 0.0
        %2146 = vmatprep.subr.mxu0 0.0
        %2147 = vmatpush1.msra.mxu0 0.0
        %2148 = vmatprep.subr.mxu0 0.0
        %2149 = vmatpush1.msra.mxu0 0.0
        %2150 = vmatprep.subr.mxu0 0.0
        %2151 = vmatpush1.msra.mxu0 0.0
        %2152 = vmatprep.subr.mxu0 0.0
        %2153 = vmatpush1.msra.mxu0 0.0
        %2154 = vmatprep.subr.mxu0 0.0
        %2155 = vmatpush1.msra.mxu0 0.0
        %2156 = vmatprep.subr.mxu0 0.0
        %2157 = vmatpush1.msra.mxu0 0.0
        %2158 = vmatprep.subr.mxu0 0.0
        %2159 = vmatpush1.msra.mxu0 0.0
        %2160 = vmatprep.subr.mxu0 0.0
        %2161 = vmatpush1.msra.mxu0 0.0
        %2162 = vmatprep.subr.mxu0 0.0
        %2163 = vmatpush1.msra.mxu0 0.0
        %2164 = vmatprep.subr.mxu0 0.0
        %2165 = vmatpush1.msra.mxu0 0.0
        %2166 = vmatprep.subr.mxu0 0.0
        %2167 = vmatpush1.msra.mxu0 0.0
        %2168 = vmatprep.subr.mxu0 0.0
        %2169 = vmatpush1.msra.mxu0 0.0
        %2170 = vmatprep.subr.mxu0 0.0
        %2171 = vmatpush1.msra.mxu0 0.0
        %2172 = vmatprep.subr.mxu0 0.0
        %2173 = vmatpush1.msra.mxu0 0.0
        %2174 = vmatprep.subr.mxu0 0.0
        %2175 = vmatpush1.msra.mxu0 0.0
        %2176 = vmatprep.subr.mxu0 0.0
        %2177 = vmatpush1.msra.mxu0 0.0
        %2178 = vmatprep.subr.mxu0 0.0
        %2179 = vmatpush1.msra.mxu0 0.0
        %2180 = vmatprep.subr.mxu0 0.0
        %2181 = vmatpush1.msra.mxu0 0.0
        %2182 = vmatprep.subr.mxu0 0.0
        %2183 = vmatpush1.msra.mxu0 0.0
        %2184 = vmatprep.subr.mxu0 0.0
        %2185 = vmatpush1.msra.mxu0 0.0
        %2186 = vmatprep.subr.mxu0 0.0
        %2187 = vmatpush1.msra.mxu0 0.0
        %2188 = vmatprep.subr.mxu0 0.0
        %2189 = vmatpush1.msra.mxu0 0.0
        %2190 = vmatprep.subr.mxu0 0.0
        %2191 = vmatpush1.msra.mxu0 0.0
        %2192 = vmatprep.subr.mxu0 0.0
        %2193 = vmatpush1.msra.mxu0 0.0
        %2194 = vmatprep.subr.mxu0 0.0
        %2195 = vmatpush1.msra.mxu0 0.0
        %2196 = vmatprep.subr.mxu0 0.0
        %2197 = vmatpush1.msra.mxu0 0.0
        %2198 = vmatprep.subr.mxu0 0.0
        %2199 = vmatpush1.msra.mxu0 0.0
        %2200 = vmatprep.subr.mxu0 0.0
        %2201 = vmatpush1.msra.mxu0 0.0
        %2202 = vmatprep.subr.mxu0 0.0
        %2203 = vmatpush1.msra.mxu0 0.0
        %2204 = vmatprep.mubr.f32.mxu0 0.0
        %2205 = vmatmul.mubr.f32.gmra.mrb[0].mxu0 %v2138
        %v2206 = vpop.f32.mrb[0].mxu0
        %v2207 = vadd.f32 0.0, %v2206
        %v2208 = vpop.f32.mrb[0].mxu0
        %2209 = vdwg.mxu0
        %2210 = vrot.lane.b32.xlu0 %v598, 48
        %v2211 = vpop.permute.xlu0 %2210
        %v2214 = vsel %vm610, %v2057, 0
        %2216 = vmatprep.subr.mxu0 0.0
        %2217 = vmatpush1.msra.mxu0 %v2211
        %2218 = vmatprep.subr.mxu0 0.0
        %2219 = vmatpush1.msra.mxu0 0.0
        %2220 = vmatprep.subr.mxu0 0.0
        %2221 = vmatpush1.msra.mxu0 0.0
        %2222 = vmatprep.subr.mxu0 0.0
        %2223 = vmatpush1.msra.mxu0 0.0
        %2224 = vmatprep.subr.mxu0 0.0
        %2225 = vmatpush1.msra.mxu0 0.0
        %2226 = vmatprep.subr.mxu0 0.0
        %2227 = vmatpush1.msra.mxu0 0.0
        %2228 = vmatprep.subr.mxu0 0.0
        %2229 = vmatpush1.msra.mxu0 0.0
        %2230 = vmatprep.subr.mxu0 0.0
        %2231 = vmatpush1.msra.mxu0 0.0
        %2232 = vmatprep.subr.mxu0 0.0
        %2233 = vmatpush1.msra.mxu0 0.0
        %2234 = vmatprep.subr.mxu0 0.0
        %2235 = vmatpush1.msra.mxu0 0.0
        %2236 = vmatprep.subr.mxu0 0.0
        %2237 = vmatpush1.msra.mxu0 0.0
        %2238 = vmatprep.subr.mxu0 0.0
        %2239 = vmatpush1.msra.mxu0 0.0
        %2240 = vmatprep.subr.mxu0 0.0
        %2241 = vmatpush1.msra.mxu0 0.0
        %2242 = vmatprep.subr.mxu0 0.0
        %2243 = vmatpush1.msra.mxu0 0.0
        %2244 = vmatprep.subr.mxu0 0.0
        %2245 = vmatpush1.msra.mxu0 0.0
        %2246 = vmatprep.subr.mxu0 0.0
        %2247 = vmatpush1.msra.mxu0 0.0
        %2248 = vmatprep.subr.mxu0 0.0
        %2249 = vmatpush1.msra.mxu0 0.0
        %2250 = vmatprep.subr.mxu0 0.0
        %2251 = vmatpush1.msra.mxu0 0.0
        %2252 = vmatprep.subr.mxu0 0.0
        %2253 = vmatpush1.msra.mxu0 0.0
        %2254 = vmatprep.subr.mxu0 0.0
        %2255 = vmatpush1.msra.mxu0 0.0
        %2256 = vmatprep.subr.mxu0 0.0
        %2257 = vmatpush1.msra.mxu0 0.0
        %2258 = vmatprep.subr.mxu0 0.0
        %2259 = vmatpush1.msra.mxu0 0.0
        %2260 = vmatprep.subr.mxu0 0.0
        %2261 = vmatpush1.msra.mxu0 0.0
        %2262 = vmatprep.subr.mxu0 0.0
        %2263 = vmatpush1.msra.mxu0 0.0
        %2264 = vmatprep.subr.mxu0 0.0
        %2265 = vmatpush1.msra.mxu0 0.0
        %2266 = vmatprep.subr.mxu0 0.0
        %2267 = vmatpush1.msra.mxu0 0.0
        %2268 = vmatprep.subr.mxu0 0.0
        %2269 = vmatpush1.msra.mxu0 0.0
        %2270 = vmatprep.subr.mxu0 0.0
        %2271 = vmatpush1.msra.mxu0 0.0
        %2272 = vmatprep.subr.mxu0 0.0
        %2273 = vmatpush1.msra.mxu0 0.0
        %2274 = vmatprep.subr.mxu0 0.0
        %2275 = vmatpush1.msra.mxu0 0.0
        %2276 = vmatprep.subr.mxu0 0.0
        %2277 = vmatpush1.msra.mxu0 0.0
        %2278 = vmatprep.subr.mxu0 0.0
        %2279 = vmatpush1.msra.mxu0 0.0
        %2280 = vmatprep.mubr.f32.mxu0 0.0
        %2281 = vmatmul.mubr.f32.gmra.mrb[0].mxu0 %v2214
        %v2282 = vpop.f32.mrb[0].mxu0
        %v2283 = vadd.f32 0.0, %v2282
        %v2284 = vpop.f32.mrb[0].mxu0
        %2285 = vdwg.mxu0
        %v2287 = vsel %vm610, %v2131, 0
        %v2290 = vsel %vm610, %v2207, 0
        %v2293 = vsel %vm610, %v2283, 0
        %2295 = vmatprep.subr.mxu0 0.0
        %2296 = vmatpush1.msra.mxu0 %v424
        %2297 = vmatprep.subr.mxu0 0.0
        %2298 = vmatpush1.msra.mxu0 0.0
        %2299 = vmatprep.subr.mxu0 0.0
        %2300 = vmatpush1.msra.mxu0 0.0
        %2301 = vmatprep.subr.mxu0 0.0
        %2302 = vmatpush1.msra.mxu0 0.0
        %2303 = vmatprep.subr.mxu0 0.0
        %2304 = vmatpush1.msra.mxu0 0.0
        %2305 = vmatprep.subr.mxu0 0.0
        %2306 = vmatpush1.msra.mxu0 0.0
        %2307 = vmatprep.subr.mxu0 0.0
        %2308 = vmatpush1.msra.mxu0 0.0
        %2309 = vmatprep.subr.mxu0 0.0
        %2310 = vmatpush1.msra.mxu0 0.0
        %2311 = vmatprep.subr.mxu0 0.0
        %2312 = vmatpush1.msra.mxu0 0.0
        %2313 = vmatprep.subr.mxu0 0.0
        %2314 = vmatpush1.msra.mxu0 0.0
        %2315 = vmatprep.subr.mxu0 0.0
        %2316 = vmatpush1.msra.mxu0 0.0
        %2317 = vmatprep.subr.mxu0 0.0
        %2318 = vmatpush1.msra.mxu0 0.0
        %2319 = vmatprep.subr.mxu0 0.0
        %2320 = vmatpush1.msra.mxu0 0.0
        %2321 = vmatprep.subr.mxu0 0.0
        %2322 = vmatpush1.msra.mxu0 0.0
        %2323 = vmatprep.subr.mxu0 0.0
        %2324 = vmatpush1.msra.mxu0 0.0
        %2325 = vmatprep.subr.mxu0 0.0
        %2326 = vmatpush1.msra.mxu0 0.0
        %2327 = vmatprep.subr.mxu0 0.0
        %2328 = vmatpush1.msra.mxu0 0.0
        %2329 = vmatprep.subr.mxu0 0.0
        %2330 = vmatpush1.msra.mxu0 0.0
        %2331 = vmatprep.subr.mxu0 0.0
        %2332 = vmatpush1.msra.mxu0 0.0
        %2333 = vmatprep.subr.mxu0 0.0
        %2334 = vmatpush1.msra.mxu0 0.0
        %2335 = vmatprep.subr.mxu0 0.0
        %2336 = vmatpush1.msra.mxu0 0.0
        %2337 = vmatprep.subr.mxu0 0.0
        %2338 = vmatpush1.msra.mxu0 0.0
        %2339 = vmatprep.subr.mxu0 0.0
        %2340 = vmatpush1.msra.mxu0 0.0
        %2341 = vmatprep.subr.mxu0 0.0
        %2342 = vmatpush1.msra.mxu0 0.0
        %2343 = vmatprep.subr.mxu0 0.0
        %2344 = vmatpush1.msra.mxu0 0.0
        %2345 = vmatprep.subr.mxu0 0.0
        %2346 = vmatpush1.msra.mxu0 0.0
        %2347 = vmatprep.subr.mxu0 0.0
        %2348 = vmatpush1.msra.mxu0 0.0
        %2349 = vmatprep.subr.mxu0 0.0
        %2350 = vmatpush1.msra.mxu0 0.0
        %2351 = vmatprep.subr.mxu0 0.0
        %2352 = vmatpush1.msra.mxu0 0.0
        %2353 = vmatprep.subr.mxu0 0.0
        %2354 = vmatpush1.msra.mxu0 0.0
        %2355 = vmatprep.subr.mxu0 0.0
        %2356 = vmatpush1.msra.mxu0 0.0
        %2357 = vmatprep.subr.mxu0 0.0
        %2358 = vmatpush1.msra.mxu0 0.0
        %2359 = vmatprep.mubr.f32.mxu0 0.0
        %2360 = vmatmul.mubr.f32.gmra.mrb[0].mxu0 %v2287
        %v2361 = vpop.f32.mrb[0].mxu0
        %v2362 = vadd.f32 0.0, %v2361
        %v2363 = vpop.f32.mrb[0].mxu0
        %2364 = vmatprep.mubr.f32.mxu0 0.0
        %2365 = vmatmul.mubr.f32.gmra.mrb[0].mxu0 %v2290
        %v2366 = vpop.f32.mrb[0].mxu0
        %v2367 = vadd.f32 0.0, %v2366
        %v2368 = vpop.f32.mrb[0].mxu0
        %2369 = vmatprep.mubr.f32.mxu0 0.0
        %2370 = vmatmul.mubr.f32.gmra.mrb[0].mxu0 %v2293
        %v2371 = vpop.f32.mrb[0].mxu0
        %v2372 = vadd.f32 0.0, %v2371
        %v2373 = vpop.f32.mrb[0].mxu0
        %2374 = vdwg.mxu0
        %v2375 = vadd.f32 %v1772, %v2362
        %v2376 = vadd.f32 %v1777, %v2367
        %v2377 = vadd.f32 %v1782, %v2372
        %2378 = vrot.lane.b32.xlu0 %v588, 104
        %v2379 = vpop.permute.xlu0 %2378
        %2380 = vrot.lane.b32.xlu0 %v588, 72
        %v2381 = vpop.permute.xlu0 %2380
        %v2382 = vsel %vm610, %v2379, 0
        %v2384 = vsel %vm610, %v2381, 0
        %2386 = vmatprep.subr.mxu0 0.0
        %2387 = vmatpush1.xpose.msra.mxu0 %v2384
        %2388 = vmatprep.subr.mxu0 0.0
        %2389 = vmatpush1.xpose.msra.mxu0 0.0
        %2390 = vmatprep.subr.mxu0 0.0
        %2391 = vmatpush1.xpose.msra.mxu0 0.0
        %2392 = vmatprep.subr.mxu0 0.0
        %2393 = vmatpush1.xpose.msra.mxu0 0.0
        %2394 = vmatprep.subr.mxu0 0.0
        %2395 = vmatpush1.xpose.msra.mxu0 0.0
        %2396 = vmatprep.subr.mxu0 0.0
        %2397 = vmatpush1.xpose.msra.mxu0 0.0
        %2398 = vmatprep.subr.mxu0 0.0
        %2399 = vmatpush1.xpose.msra.mxu0 0.0
        %2400 = vmatprep.subr.mxu0 0.0
        %2401 = vmatpush1.xpose.msra.mxu0 0.0
        %2402 = vmatprep.subr.mxu0 0.0
        %2403 = vmatpush1.xpose.msra.mxu0 0.0
        %2404 = vmatprep.subr.mxu0 0.0
        %2405 = vmatpush1.xpose.msra.mxu0 0.0
        %2406 = vmatprep.subr.mxu0 0.0
        %2407 = vmatpush1.xpose.msra.mxu0 0.0
        %2408 = vmatprep.subr.mxu0 0.0
        %2409 = vmatpush1.xpose.msra.mxu0 0.0
        %2410 = vmatprep.subr.mxu0 0.0
        %2411 = vmatpush1.xpose.msra.mxu0 0.0
        %2412 = vmatprep.subr.mxu0 0.0
        %2413 = vmatpush1.xpose.msra.mxu0 0.0
        %2414 = vmatprep.subr.mxu0 0.0
        %2415 = vmatpush1.xpose.msra.mxu0 0.0
        %2416 = vmatprep.subr.mxu0 0.0
        %2417 = vmatpush1.xpose.msra.mxu0 0.0
        %2418 = vmatprep.subr.mxu0 0.0
        %2419 = vmatpush1.xpose.msra.mxu0 0.0
        %2420 = vmatprep.subr.mxu0 0.0
        %2421 = vmatpush1.xpose.msra.mxu0 0.0
        %2422 = vmatprep.subr.mxu0 0.0
        %2423 = vmatpush1.xpose.msra.mxu0 0.0
        %2424 = vmatprep.subr.mxu0 0.0
        %2425 = vmatpush1.xpose.msra.mxu0 0.0
        %2426 = vmatprep.subr.mxu0 0.0
        %2427 = vmatpush1.xpose.msra.mxu0 0.0
        %2428 = vmatprep.subr.mxu0 0.0
        %2429 = vmatpush1.xpose.msra.mxu0 0.0
        %2430 = vmatprep.subr.mxu0 0.0
        %2431 = vmatpush1.xpose.msra.mxu0 0.0
        %2432 = vmatprep.subr.mxu0 0.0
        %2433 = vmatpush1.xpose.msra.mxu0 0.0
        %2434 = vmatprep.subr.mxu0 0.0
        %2435 = vmatpush1.xpose.msra.mxu0 0.0
        %2436 = vmatprep.subr.mxu0 0.0
        %2437 = vmatpush1.xpose.msra.mxu0 0.0
        %2438 = vmatprep.subr.mxu0 0.0
        %2439 = vmatpush1.xpose.msra.mxu0 0.0
        %2440 = vmatprep.subr.mxu0 0.0
        %2441 = vmatpush1.xpose.msra.mxu0 0.0
        %2442 = vmatprep.subr.mxu0 0.0
        %2443 = vmatpush1.xpose.msra.mxu0 0.0
        %2444 = vmatprep.subr.mxu0 0.0
        %2445 = vmatpush1.xpose.msra.mxu0 0.0
        %2446 = vmatprep.subr.mxu0 0.0
        %2447 = vmatpush1.xpose.msra.mxu0 0.0
        %2448 = vmatprep.subr.mxu0 0.0
        %2449 = vmatpush1.xpose.msra.mxu0 0.0
        %2450 = vmatprep.mubr.f32.mxu0 0.0
        %2451 = vmatmul.mubr.f32.gmra.mrb[0].mxu0 %v2382
        %v2452 = vpop.f32.mrb[0].mxu0
        %v2453 = vadd.f32 0.0, %v2452
        %v2454 = vpop.f32.mrb[0].mxu0
        %2455 = vdwg.mxu0
        %2456 = vrot.lane.b32.xlu0 %v593, 104
        %v2457 = vpop.permute.xlu0 %2456
        %2458 = vrot.lane.b32.xlu0 %v593, 72
        %v2459 = vpop.permute.xlu0 %2458
        %v2460 = vsel %vm610, %v2457, 0
        %v2462 = vsel %vm610, %v2459, 0
        %2464 = vmatprep.subr.mxu0 0.0
        %2465 = vmatpush1.xpose.msra.mxu0 %v2462
        %2466 = vmatprep.subr.mxu0 0.0
        %2467 = vmatpush1.xpose.msra.mxu0 0.0
        %2468 = vmatprep.subr.mxu0 0.0
        %2469 = vmatpush1.xpose.msra.mxu0 0.0
        %2470 = vmatprep.subr.mxu0 0.0
        %2471 = vmatpush1.xpose.msra.mxu0 0.0
        %2472 = vmatprep.subr.mxu0 0.0
        %2473 = vmatpush1.xpose.msra.mxu0 0.0
        %2474 = vmatprep.subr.mxu0 0.0
        %2475 = vmatpush1.xpose.msra.mxu0 0.0
        %2476 = vmatprep.subr.mxu0 0.0
        %2477 = vmatpush1.xpose.msra.mxu0 0.0
        %2478 = vmatprep.subr.mxu0 0.0
        %2479 = vmatpush1.xpose.msra.mxu0 0.0
        %2480 = vmatprep.subr.mxu0 0.0
        %2481 = vmatpush1.xpose.msra.mxu0 0.0
        %2482 = vmatprep.subr.mxu0 0.0
        %2483 = vmatpush1.xpose.msra.mxu0 0.0
        %2484 = vmatprep.subr.mxu0 0.0
        %2485 = vmatpush1.xpose.msra.mxu0 0.0
        %2486 = vmatprep.subr.mxu0 0.0
        %2487 = vmatpush1.xpose.msra.mxu0 0.0
        %2488 = vmatprep.subr.mxu0 0.0
        %2489 = vmatpush1.xpose.msra.mxu0 0.0
        %2490 = vmatprep.subr.mxu0 0.0
        %2491 = vmatpush1.xpose.msra.mxu0 0.0
        %2492 = vmatprep.subr.mxu0 0.0
        %2493 = vmatpush1.xpose.msra.mxu0 0.0
        %2494 = vmatprep.subr.mxu0 0.0
        %2495 = vmatpush1.xpose.msra.mxu0 0.0
        %2496 = vmatprep.subr.mxu0 0.0
        %2497 = vmatpush1.xpose.msra.mxu0 0.0
        %2498 = vmatprep.subr.mxu0 0.0
        %2499 = vmatpush1.xpose.msra.mxu0 0.0
        %2500 = vmatprep.subr.mxu0 0.0
        %2501 = vmatpush1.xpose.msra.mxu0 0.0
        %2502 = vmatprep.subr.mxu0 0.0
        %2503 = vmatpush1.xpose.msra.mxu0 0.0
        %2504 = vmatprep.subr.mxu0 0.0
        %2505 = vmatpush1.xpose.msra.mxu0 0.0
        %2506 = vmatprep.subr.mxu0 0.0
        %2507 = vmatpush1.xpose.msra.mxu0 0.0
        %2508 = vmatprep.subr.mxu0 0.0
        %2509 = vmatpush1.xpose.msra.mxu0 0.0
        %2510 = vmatprep.subr.mxu0 0.0
        %2511 = vmatpush1.xpose.msra.mxu0 0.0
        %2512 = vmatprep.subr.mxu0 0.0
        %2513 = vmatpush1.xpose.msra.mxu0 0.0
        %2514 = vmatprep.subr.mxu0 0.0
        %2515 = vmatpush1.xpose.msra.mxu0 0.0
        %2516 = vmatprep.subr.mxu0 0.0
        %2517 = vmatpush1.xpose.msra.mxu0 0.0
        %2518 = vmatprep.subr.mxu0 0.0
        %2519 = vmatpush1.xpose.msra.mxu0 0.0
        %2520 = vmatprep.subr.mxu0 0.0
        %2521 = vmatpush1.xpose.msra.mxu0 0.0
        %2522 = vmatprep.subr.mxu0 0.0
        %2523 = vmatpush1.xpose.msra.mxu0 0.0
        %2524 = vmatprep.subr.mxu0 0.0
        %2525 = vmatpush1.xpose.msra.mxu0 0.0
        %2526 = vmatprep.subr.mxu0 0.0
        %2527 = vmatpush1.xpose.msra.mxu0 0.0
        %2528 = vmatprep.mubr.f32.mxu0 0.0
        %2529 = vmatmul.mubr.f32.gmra.mrb[0].mxu0 %v2460
        %v2530 = vpop.f32.mrb[0].mxu0
        %v2531 = vadd.f32 0.0, %v2530
        %v2532 = vpop.f32.mrb[0].mxu0
        %2533 = vdwg.mxu0
        %2534 = vrot.lane.b32.xlu0 %v598, 104
        %v2535 = vpop.permute.xlu0 %2534
        %2536 = vrot.lane.b32.xlu0 %v598, 72
        %v2537 = vpop.permute.xlu0 %2536
        %v2538 = vsel %vm610, %v2535, 0
        %v2540 = vsel %vm610, %v2537, 0
        %2542 = vmatprep.subr.mxu0 0.0
        %2543 = vmatpush1.xpose.msra.mxu0 %v2540
        %2544 = vmatprep.subr.mxu0 0.0
        %2545 = vmatpush1.xpose.msra.mxu0 0.0
        %2546 = vmatprep.subr.mxu0 0.0
        %2547 = vmatpush1.xpose.msra.mxu0 0.0
        %2548 = vmatprep.subr.mxu0 0.0
        %2549 = vmatpush1.xpose.msra.mxu0 0.0
        %2550 = vmatprep.subr.mxu0 0.0
        %2551 = vmatpush1.xpose.msra.mxu0 0.0
        %2552 = vmatprep.subr.mxu0 0.0
        %2553 = vmatpush1.xpose.msra.mxu0 0.0
        %2554 = vmatprep.subr.mxu0 0.0
        %2555 = vmatpush1.xpose.msra.mxu0 0.0
        %2556 = vmatprep.subr.mxu0 0.0
        %2557 = vmatpush1.xpose.msra.mxu0 0.0
        %2558 = vmatprep.subr.mxu0 0.0
        %2559 = vmatpush1.xpose.msra.mxu0 0.0
        %2560 = vmatprep.subr.mxu0 0.0
        %2561 = vmatpush1.xpose.msra.mxu0 0.0
        %2562 = vmatprep.subr.mxu0 0.0
        %2563 = vmatpush1.xpose.msra.mxu0 0.0
        %2564 = vmatprep.subr.mxu0 0.0
        %2565 = vmatpush1.xpose.msra.mxu0 0.0
        %2566 = vmatprep.subr.mxu0 0.0
        %2567 = vmatpush1.xpose.msra.mxu0 0.0
        %2568 = vmatprep.subr.mxu0 0.0
        %2569 = vmatpush1.xpose.msra.mxu0 0.0
        %2570 = vmatprep.subr.mxu0 0.0
        %2571 = vmatpush1.xpose.msra.mxu0 0.0
        %2572 = vmatprep.subr.mxu0 0.0
        %2573 = vmatpush1.xpose.msra.mxu0 0.0
        %2574 = vmatprep.subr.mxu0 0.0
        %2575 = vmatpush1.xpose.msra.mxu0 0.0
        %2576 = vmatprep.subr.mxu0 0.0
        %2577 = vmatpush1.xpose.msra.mxu0 0.0
        %2578 = vmatprep.subr.mxu0 0.0
        %2579 = vmatpush1.xpose.msra.mxu0 0.0
        %2580 = vmatprep.subr.mxu0 0.0
        %2581 = vmatpush1.xpose.msra.mxu0 0.0
        %2582 = vmatprep.subr.mxu0 0.0
        %2583 = vmatpush1.xpose.msra.mxu0 0.0
        %2584 = vmatprep.subr.mxu0 0.0
        %2585 = vmatpush1.xpose.msra.mxu0 0.0
        %2586 = vmatprep.subr.mxu0 0.0
        %2587 = vmatpush1.xpose.msra.mxu0 0.0
        %2588 = vmatprep.subr.mxu0 0.0
        %2589 = vmatpush1.xpose.msra.mxu0 0.0
        %2590 = vmatprep.subr.mxu0 0.0
        %2591 = vmatpush1.xpose.msra.mxu0 0.0
        %2592 = vmatprep.subr.mxu0 0.0
        %2593 = vmatpush1.xpose.msra.mxu0 0.0
        %2594 = vmatprep.subr.mxu0 0.0
        %2595 = vmatpush1.xpose.msra.mxu0 0.0
        %2596 = vmatprep.subr.mxu0 0.0
        %2597 = vmatpush1.xpose.msra.mxu0 0.0
        %2598 = vmatprep.subr.mxu0 0.0
        %2599 = vmatpush1.xpose.msra.mxu0 0.0
        %2600 = vmatprep.subr.mxu0 0.0
        %2601 = vmatpush1.xpose.msra.mxu0 0.0
        %2602 = vmatprep.subr.mxu0 0.0
        %2603 = vmatpush1.xpose.msra.mxu0 0.0
        %2604 = vmatprep.subr.mxu0 0.0
        %2605 = vmatpush1.xpose.msra.mxu0 0.0
        %2606 = vmatprep.mubr.f32.mxu0 0.0
        %2607 = vmatmul.mubr.f32.gmra.mrb[0].mxu0 %v2538
        %v2608 = vpop.f32.mrb[0].mxu0
        %v2609 = vadd.f32 0.0, %v2608
        %v2610 = vpop.f32.mrb[0].mxu0
        %2611 = vdwg.mxu0
        %v2612 = vmul.f32 %v2453, 0.35355338
        %v2613 = vmul.f32 %v2531, 0.35355338
        %v2614 = vmul.f32 %v2609, 0.35355338
        %v2615 = vadd.f32 %v2612, %v606
        %v2616 = vadd.f32 %v2613, %v606
        %v2617 = vadd.f32 %v2614, %v606
        %v2618 = vsel %vm610, %v2615, -inf
        %2619 = vmax.xlane.f32.xlu0 %v2618
        %v2620 = vpop.xlane.xlu0 %2619
        %v2621 = vsel %vm610, %v2616, -inf
        %2622 = vmax.xlane.f32.xlu0 %v2621
        %v2623 = vpop.xlane.xlu0 %2622
        %v2624 = vsel %vm610, %v2617, -inf
        %2625 = vmax.xlane.f32.xlu0 %v2624
        %v2626 = vpop.xlane.xlu0 %2625
        %v2627 = vsub.f32 %v2615, %v2620
        %v2628 = vsub.f32 %v2616, %v2623
        %v2629 = vsub.f32 %v2617, %v2626
        %v2630 = vmul.f32 %v2627, 1.442695
        %v2631 = vpow.pop %v2630
        %v2632 = vmul.f32 %v2628, 1.442695
        %v2633 = vpow.pop %v2632
        %v2634 = vmul.f32 %v2629, 1.442695
        %v2635 = vpow.pop %v2634
        %v2636 = vsel %vm610, %v2631, 0.0
        %2637 = vadd.xlane.f32.xlu0 %v2636
        %v2638 = vpop.xlane.xlu0 %2637
        %v2639 = vsel %vm610, %v2633, 0.0
        %2640 = vadd.xlane.f32.xlu0 %v2639
        %v2641 = vpop.xlane.xlu0 %2640
        %v2642 = vsel %vm610, %v2635, 0.0
        %2643 = vadd.xlane.f32.xlu0 %v2642
        %v2644 = vpop.xlane.xlu0 %2643
        %v2645 = vrcp.pop %v2638
        %v2646 = vrcp.pop %v2641
        %v2647 = vrcp.pop %v2644
        %v2648 = vmul.f32 %v2631, %v2645
        %v2649 = vmul.f32 %v2633, %v2646
        %v2650 = vmul.f32 %v2635, %v2647
        %2651 = vrot.lane.b32.xlu0 %v588, 40
        %v2652 = vpop.permute.xlu0 %2651
        %v2655 = vsel %vm610, %v2648, 0
        %2657 = vmatprep.subr.mxu0 0.0
        %2658 = vmatpush1.msra.mxu0 %v2652
        %2659 = vmatprep.subr.mxu0 0.0
        %2660 = vmatpush1.msra.mxu0 0.0
        %2661 = vmatprep.subr.mxu0 0.0
        %2662 = vmatpush1.msra.mxu0 0.0
        %2663 = vmatprep.subr.mxu0 0.0
        %2664 = vmatpush1.msra.mxu0 0.0
        %2665 = vmatprep.subr.mxu0 0.0
        %2666 = vmatpush1.msra.mxu0 0.0
        %2667 = vmatprep.subr.mxu0 0.0
        %2668 = vmatpush1.msra.mxu0 0.0
        %2669 = vmatprep.subr.mxu0 0.0
        %2670 = vmatpush1.msra.mxu0 0.0
        %2671 = vmatprep.subr.mxu0 0.0
        %2672 = vmatpush1.msra.mxu0 0.0
        %2673 = vmatprep.subr.mxu0 0.0
        %2674 = vmatpush1.msra.mxu0 0.0
        %2675 = vmatprep.subr.mxu0 0.0
        %2676 = vmatpush1.msra.mxu0 0.0
        %2677 = vmatprep.subr.mxu0 0.0
        %2678 = vmatpush1.msra.mxu0 0.0
        %2679 = vmatprep.subr.mxu0 0.0
        %2680 = vmatpush1.msra.mxu0 0.0
        %2681 = vmatprep.subr.mxu0 0.0
        %2682 = vmatpush1.msra.mxu0 0.0
        %2683 = vmatprep.subr.mxu0 0.0
        %2684 = vmatpush1.msra.mxu0 0.0
        %2685 = vmatprep.subr.mxu0 0.0
        %2686 = vmatpush1.msra.mxu0 0.0
        %2687 = vmatprep.subr.mxu0 0.0
        %2688 = vmatpush1.msra.mxu0 0.0
        %2689 = vmatprep.subr.mxu0 0.0
        %2690 = vmatpush1.msra.mxu0 0.0
        %2691 = vmatprep.subr.mxu0 0.0
        %2692 = vmatpush1.msra.mxu0 0.0
        %2693 = vmatprep.subr.mxu0 0.0
        %2694 = vmatpush1.msra.mxu0 0.0
        %2695 = vmatprep.subr.mxu0 0.0
        %2696 = vmatpush1.msra.mxu0 0.0
        %2697 = vmatprep.subr.mxu0 0.0
        %2698 = vmatpush1.msra.mxu0 0.0
        %2699 = vmatprep.subr.mxu0 0.0
        %2700 = vmatpush1.msra.mxu0 0.0
        %2701 = vmatprep.subr.mxu0 0.0
        %2702 = vmatpush1.msra.mxu0 0.0
        %2703 = vmatprep.subr.mxu0 0.0
        %2704 = vmatpush1.msra.mxu0 0.0
        %2705 = vmatprep.subr.mxu0 0.0
        %2706 = vmatpush1.msra.mxu0 0.0
        %2707 = vmatprep.subr.mxu0 0.0
        %2708 = vmatpush1.msra.mxu0 0.0
        %2709 = vmatprep.subr.mxu0 0.0
        %2710 = vmatpush1.msra.mxu0 0.0
        %2711 = vmatprep.subr.mxu0 0.0
        %2712 = vmatpush1.msra.mxu0 0.0
        %2713 = vmatprep.subr.mxu0 0.0
        %2714 = vmatpush1.msra.mxu0 0.0
        %2715 = vmatprep.subr.mxu0 0.0
        %2716 = vmatpush1.msra.mxu0 0.0
        %2717 = vmatprep.subr.mxu0 0.0
        %2718 = vmatpush1.msra.mxu0 0.0
        %2719 = vmatprep.subr.mxu0 0.0
        %2720 = vmatpush1.msra.mxu0 0.0
        %2721 = vmatprep.mubr.f32.mxu0 0.0
        %2722 = vmatmul.mubr.f32.gmra.mrb[0].mxu0 %v2655
        %v2723 = vpop.f32.mrb[0].mxu0
        %v2724 = vadd.f32 0.0, %v2723
        %v2725 = vpop.f32.mrb[0].mxu0
        %2726 = vdwg.mxu0
        %2727 = vrot.lane.b32.xlu0 %v593, 40
        %v2728 = vpop.permute.xlu0 %2727
        %v2731 = vsel %vm610, %v2649, 0
        %2733 = vmatprep.subr.mxu0 0.0
        %2734 = vmatpush1.msra.mxu0 %v2728
        %2735 = vmatprep.subr.mxu0 0.0
        %2736 = vmatpush1.msra.mxu0 0.0
        %2737 = vmatprep.subr.mxu0 0.0
        %2738 = vmatpush1.msra.mxu0 0.0
        %2739 = vmatprep.subr.mxu0 0.0
        %2740 = vmatpush1.msra.mxu0 0.0
        %2741 = vmatprep.subr.mxu0 0.0
        %2742 = vmatpush1.msra.mxu0 0.0
        %2743 = vmatprep.subr.mxu0 0.0
        %2744 = vmatpush1.msra.mxu0 0.0
        %2745 = vmatprep.subr.mxu0 0.0
        %2746 = vmatpush1.msra.mxu0 0.0
        %2747 = vmatprep.subr.mxu0 0.0
        %2748 = vmatpush1.msra.mxu0 0.0
        %2749 = vmatprep.subr.mxu0 0.0
        %2750 = vmatpush1.msra.mxu0 0.0
        %2751 = vmatprep.subr.mxu0 0.0
        %2752 = vmatpush1.msra.mxu0 0.0
        %2753 = vmatprep.subr.mxu0 0.0
        %2754 = vmatpush1.msra.mxu0 0.0
        %2755 = vmatprep.subr.mxu0 0.0
        %2756 = vmatpush1.msra.mxu0 0.0
        %2757 = vmatprep.subr.mxu0 0.0
        %2758 = vmatpush1.msra.mxu0 0.0
        %2759 = vmatprep.subr.mxu0 0.0
        %2760 = vmatpush1.msra.mxu0 0.0
        %2761 = vmatprep.subr.mxu0 0.0
        %2762 = vmatpush1.msra.mxu0 0.0
        %2763 = vmatprep.subr.mxu0 0.0
        %2764 = vmatpush1.msra.mxu0 0.0
        %2765 = vmatprep.subr.mxu0 0.0
        %2766 = vmatpush1.msra.mxu0 0.0
        %2767 = vmatprep.subr.mxu0 0.0
        %2768 = vmatpush1.msra.mxu0 0.0
        %2769 = vmatprep.subr.mxu0 0.0
        %2770 = vmatpush1.msra.mxu0 0.0
        %2771 = vmatprep.subr.mxu0 0.0
        %2772 = vmatpush1.msra.mxu0 0.0
        %2773 = vmatprep.subr.mxu0 0.0
        %2774 = vmatpush1.msra.mxu0 0.0
        %2775 = vmatprep.subr.mxu0 0.0
        %2776 = vmatpush1.msra.mxu0 0.0
        %2777 = vmatprep.subr.mxu0 0.0
        %2778 = vmatpush1.msra.mxu0 0.0
        %2779 = vmatprep.subr.mxu0 0.0
        %2780 = vmatpush1.msra.mxu0 0.0
        %2781 = vmatprep.subr.mxu0 0.0
        %2782 = vmatpush1.msra.mxu0 0.0
        %2783 = vmatprep.subr.mxu0 0.0
        %2784 = vmatpush1.msra.mxu0 0.0
        %2785 = vmatprep.subr.mxu0 0.0
        %2786 = vmatpush1.msra.mxu0 0.0
        %2787 = vmatprep.subr.mxu0 0.0
        %2788 = vmatpush1.msra.mxu0 0.0
        %2789 = vmatprep.subr.mxu0 0.0
        %2790 = vmatpush1.msra.mxu0 0.0
        %2791 = vmatprep.subr.mxu0 0.0
        %2792 = vmatpush1.msra.mxu0 0.0
        %2793 = vmatprep.subr.mxu0 0.0
        %2794 = vmatpush1.msra.mxu0 0.0
        %2795 = vmatprep.subr.mxu0 0.0
        %2796 = vmatpush1.msra.mxu0 0.0
        %2797 = vmatprep.mubr.f32.mxu0 0.0
        %2798 = vmatmul.mubr.f32.gmra.mrb[0].mxu0 %v2731
        %v2799 = vpop.f32.mrb[0].mxu0
        %v2800 = vadd.f32 0.0, %v2799
        %v2801 = vpop.f32.mrb[0].mxu0
        %2802 = vdwg.mxu0
        %2803 = vrot.lane.b32.xlu0 %v598, 40
        %v2804 = vpop.permute.xlu0 %2803
        %v2807 = vsel %vm610, %v2650, 0
        %2809 = vmatprep.subr.mxu0 0.0
        %2810 = vmatpush1.msra.mxu0 %v2804
        %2811 = vmatprep.subr.mxu0 0.0
        %2812 = vmatpush1.msra.mxu0 0.0
        %2813 = vmatprep.subr.mxu0 0.0
        %2814 = vmatpush1.msra.mxu0 0.0
        %2815 = vmatprep.subr.mxu0 0.0
        %2816 = vmatpush1.msra.mxu0 0.0
        %2817 = vmatprep.subr.mxu0 0.0
        %2818 = vmatpush1.msra.mxu0 0.0
        %2819 = vmatprep.subr.mxu0 0.0
        %2820 = vmatpush1.msra.mxu0 0.0
        %2821 = vmatprep.subr.mxu0 0.0
        %2822 = vmatpush1.msra.mxu0 0.0
        %2823 = vmatprep.subr.mxu0 0.0
        %2824 = vmatpush1.msra.mxu0 0.0
        %2825 = vmatprep.subr.mxu0 0.0
        %2826 = vmatpush1.msra.mxu0 0.0
        %2827 = vmatprep.subr.mxu0 0.0
        %2828 = vmatpush1.msra.mxu0 0.0
        %2829 = vmatprep.subr.mxu0 0.0
        %2830 = vmatpush1.msra.mxu0 0.0
        %2831 = vmatprep.subr.mxu0 0.0
        %2832 = vmatpush1.msra.mxu0 0.0
        %2833 = vmatprep.subr.mxu0 0.0
        %2834 = vmatpush1.msra.mxu0 0.0
        %2835 = vmatprep.subr.mxu0 0.0
        %2836 = vmatpush1.msra.mxu0 0.0
        %2837 = vmatprep.subr.mxu0 0.0
        %2838 = vmatpush1.msra.mxu0 0.0
        %2839 = vmatprep.subr.mxu0 0.0
        %2840 = vmatpush1.msra.mxu0 0.0
        %2841 = vmatprep.subr.mxu0 0.0
        %2842 = vmatpush1.msra.mxu0 0.0
        %2843 = vmatprep.subr.mxu0 0.0
        %2844 = vmatpush1.msra.mxu0 0.0
        %2845 = vmatprep.subr.mxu0 0.0
        %2846 = vmatpush1.msra.mxu0 0.0
        %2847 = vmatprep.subr.mxu0 0.0
        %2848 = vmatpush1.msra.mxu0 0.0
        %2849 = vmatprep.subr.mxu0 0.0
        %2850 = vmatpush1.msra.mxu0 0.0
        %2851 = vmatprep.subr.mxu0 0.0
        %2852 = vmatpush1.msra.mxu0 0.0
        %2853 = vmatprep.subr.mxu0 0.0
        %2854 = vmatpush1.msra.mxu0 0.0
        %2855 = vmatprep.subr.mxu0 0.0
        %2856 = vmatpush1.msra.mxu0 0.0
        %2857 = vmatprep.subr.mxu0 0.0
        %2858 = vmatpush1.msra.mxu0 0.0
        %2859 = vmatprep.subr.mxu0 0.0
        %2860 = vmatpush1.msra.mxu0 0.0
        %2861 = vmatprep.subr.mxu0 0.0
        %2862 = vmatpush1.msra.mxu0 0.0
        %2863 = vmatprep.subr.mxu0 0.0
        %2864 = vmatpush1.msra.mxu0 0.0
        %2865 = vmatprep.subr.mxu0 0.0
        %2866 = vmatpush1.msra.mxu0 0.0
        %2867 = vmatprep.subr.mxu0 0.0
        %2868 = vmatpush1.msra.mxu0 0.0
        %2869 = vmatprep.subr.mxu0 0.0
        %2870 = vmatpush1.msra.mxu0 0.0
        %2871 = vmatprep.subr.mxu0 0.0
        %2872 = vmatpush1.msra.mxu0 0.0
        %2873 = vmatprep.mubr.f32.mxu0 0.0
        %2874 = vmatmul.mubr.f32.gmra.mrb[0].mxu0 %v2807
        %v2875 = vpop.f32.mrb[0].mxu0
        %v2876 = vadd.f32 0.0, %v2875
        %v2877 = vpop.f32.mrb[0].mxu0
        %2878 = vdwg.mxu0
        %v2880 = vsel %vm610, %v2724, 0
        %v2883 = vsel %vm610, %v2800, 0
        %v2886 = vsel %vm610, %v2876, 0
        %2888 = vmatprep.subr.mxu0 0.0
        %2889 = vmatpush1.msra.mxu0 %v425
        %2890 = vmatprep.subr.mxu0 0.0
        %2891 = vmatpush1.msra.mxu0 0.0
        %2892 = vmatprep.subr.mxu0 0.0
        %2893 = vmatpush1.msra.mxu0 0.0
        %2894 = vmatprep.subr.mxu0 0.0
        %2895 = vmatpush1.msra.mxu0 0.0
        %2896 = vmatprep.subr.mxu0 0.0
        %2897 = vmatpush1.msra.mxu0 0.0
        %2898 = vmatprep.subr.mxu0 0.0
        %2899 = vmatpush1.msra.mxu0 0.0
        %2900 = vmatprep.subr.mxu0 0.0
        %2901 = vmatpush1.msra.mxu0 0.0
        %2902 = vmatprep.subr.mxu0 0.0
        %2903 = vmatpush1.msra.mxu0 0.0
        %2904 = vmatprep.subr.mxu0 0.0
        %2905 = vmatpush1.msra.mxu0 0.0
        %2906 = vmatprep.subr.mxu0 0.0
        %2907 = vmatpush1.msra.mxu0 0.0
        %2908 = vmatprep.subr.mxu0 0.0
        %2909 = vmatpush1.msra.mxu0 0.0
        %2910 = vmatprep.subr.mxu0 0.0
        %2911 = vmatpush1.msra.mxu0 0.0
        %2912 = vmatprep.subr.mxu0 0.0
        %2913 = vmatpush1.msra.mxu0 0.0
        %2914 = vmatprep.subr.mxu0 0.0
        %2915 = vmatpush1.msra.mxu0 0.0
        %2916 = vmatprep.subr.mxu0 0.0
        %2917 = vmatpush1.msra.mxu0 0.0
        %2918 = vmatprep.subr.mxu0 0.0
        %2919 = vmatpush1.msra.mxu0 0.0
        %2920 = vmatprep.subr.mxu0 0.0
        %2921 = vmatpush1.msra.mxu0 0.0
        %2922 = vmatprep.subr.mxu0 0.0
        %2923 = vmatpush1.msra.mxu0 0.0
        %2924 = vmatprep.subr.mxu0 0.0
        %2925 = vmatpush1.msra.mxu0 0.0
        %2926 = vmatprep.subr.mxu0 0.0
        %2927 = vmatpush1.msra.mxu0 0.0
        %2928 = vmatprep.subr.mxu0 0.0
        %2929 = vmatpush1.msra.mxu0 0.0
        %2930 = vmatprep.subr.mxu0 0.0
        %2931 = vmatpush1.msra.mxu0 0.0
        %2932 = vmatprep.subr.mxu0 0.0
        %2933 = vmatpush1.msra.mxu0 0.0
        %2934 = vmatprep.subr.mxu0 0.0
        %2935 = vmatpush1.msra.mxu0 0.0
        %2936 = vmatprep.subr.mxu0 0.0
        %2937 = vmatpush1.msra.mxu0 0.0
        %2938 = vmatprep.subr.mxu0 0.0
        %2939 = vmatpush1.msra.mxu0 0.0
        %2940 = vmatprep.subr.mxu0 0.0
        %2941 = vmatpush1.msra.mxu0 0.0
        %2942 = vmatprep.subr.mxu0 0.0
        %2943 = vmatpush1.msra.mxu0 0.0
        %2944 = vmatprep.subr.mxu0 0.0
        %2945 = vmatpush1.msra.mxu0 0.0
        %2946 = vmatprep.subr.mxu0 0.0
        %2947 = vmatpush1.msra.mxu0 0.0
        %2948 = vmatprep.subr.mxu0 0.0
        %2949 = vmatpush1.msra.mxu0 0.0
        %2950 = vmatprep.subr.mxu0 0.0
        %2951 = vmatpush1.msra.mxu0 0.0
        %2952 = vmatprep.mubr.f32.mxu0 0.0
        %2953 = vmatmul.mubr.f32.gmra.mrb[0].mxu0 %v2880
        %v2954 = vpop.f32.mrb[0].mxu0
        %v2955 = vadd.f32 0.0, %v2954
        %v2956 = vpop.f32.mrb[0].mxu0
        %2957 = vmatprep.mubr.f32.mxu0 0.0
        %2958 = vmatmul.mubr.f32.gmra.mrb[0].mxu0 %v2883
        %v2959 = vpop.f32.mrb[0].mxu0
        %v2960 = vadd.f32 0.0, %v2959
        %v2961 = vpop.f32.mrb[0].mxu0
        %2962 = vmatprep.mubr.f32.mxu0 0.0
        %2963 = vmatmul.mubr.f32.gmra.mrb[0].mxu0 %v2886
        %v2964 = vpop.f32.mrb[0].mxu0
        %v2965 = vadd.f32 0.0, %v2964
        %v2966 = vpop.f32.mrb[0].mxu0
        %2967 = vdwg.mxu0
        %v2968 = vadd.f32 %v2375, %v2955
        %v2969 = vadd.f32 %v2376, %v2960
        %v2970 = vadd.f32 %v2377, %v2965
        %v2971 = vadd.f32 %v415, %v2968
        %v2972 = vadd.f32 %v416, %v2969
        %v2973 = vadd.f32 %v417, %v2970
        %v2975 = vlaneseq
        %v2976 = vshrl.u32 %v2975, 7
        %v2977 = vsub.s32 0, %v2976
        %v2978 = vrot.slane %v426, %v2977
        %v2980 = vadd.f32 %v2971, %v2978
        %v2981 = vadd.f32 %v2972, %v2978
        %v2982 = vadd.f32 %v2973, %v2978
        %v2983 = vsel %vm453, %v2980, 0.0
        %2984 = vadd.xlane.f32.xlu0 %v2983
        %v2985 = vpop.xlane.xlu0 %2984
        %v2986 = vsel %vm453, %v2981, 0.0
        %2987 = vadd.xlane.f32.xlu0 %v2986
        %v2988 = vpop.xlane.xlu0 %2987
        %v2989 = vsel %vm453, %v2982, 0.0
        %2990 = vadd.xlane.f32.xlu0 %v2989
        %v2991 = vpop.xlane.xlu0 %2990
        %v2992 = vmul.f32 %v2985, %v463
        %v2993 = vmul.f32 %v2988, %v463
        %v2994 = vmul.f32 %v2991, %v463
        %v2995 = vsub.f32 %v2980, %v2992
        %v2996 = vsub.f32 %v2981, %v2993
        %v2997 = vsub.f32 %v2982, %v2994
        %v2998 = vmul.f32 %v2995, %v2995
        %v2999 = vmul.f32 %v2996, %v2996
        %v3000 = vmul.f32 %v2997, %v2997
        %v3001 = vsel %vm453, %v2998, 0.0
        %3002 = vadd.xlane.f32.xlu0 %v3001
        %v3003 = vpop.xlane.xlu0 %3002
        %v3004 = vsel %vm453, %v2999, 0.0
        %3005 = vadd.xlane.f32.xlu0 %v3004
        %v3006 = vpop.xlane.xlu0 %3005
        %v3007 = vsel %vm453, %v3000, 0.0
        %3008 = vadd.xlane.f32.xlu0 %v3007
        %v3009 = vpop.xlane.xlu0 %3008
        %v3010 = vmul.f32 %v3003, %v463
        %v3011 = vmul.f32 %v3006, %v463
        %v3012 = vmul.f32 %v3009, %v463
        %v3013 = vadd.f32 %v3010, 1e-05
        %v3014 = vadd.f32 %v3011, 1e-05
        %v3015 = vadd.f32 %v3012, 1e-05
        %v3016 = vrsqrt.pop %v3013
        %v3017 = vrsqrt.pop %v3014
        %v3018 = vrsqrt.pop %v3015
        %v3019 = vmul.f32 %v2995, %v3016
        %v3020 = vmul.f32 %v2996, %v3017
        %v3021 = vmul.f32 %v2997, %v3018
        %v3023 = vlaneseq
        %v3024 = vshrl.u32 %v3023, 7
        %v3025 = vsub.s32 0, %v3024
        %v3026 = vrot.slane %v429, %v3025
        %v3028 = vmul.f32 %v3019, %v3026
        %v3029 = vmul.f32 %v3020, %v3026
        %v3030 = vmul.f32 %v3021, %v3026
        %v3032 = vlaneseq
        %v3033 = vshrl.u32 %v3032, 7
        %v3034 = vsub.s32 0, %v3033
        %v3035 = vrot.slane %v430, %v3034
        %v3037 = vadd.f32 %v3028, %v3035
        %v3038 = vadd.f32 %v3029, %v3035
        %v3039 = vadd.f32 %v3030, %v3035
        %v3041 = vlaneseq
        %v3042 = vshrl.u32 %v3041, 7
        %v3043 = vsub.s32 0, %v3042
        %v3044 = vrot.slane %v435, %v3043
        %v3047 = vsel %vm453, %v3037, 0
        %v3050 = vsel %vm453, %v3038, 0
        %v3053 = vsel %vm453, %v3039, 0
        %3055 = vmatprep.subr.mxu0 0.0
        %3056 = vmatpush1.msra.mxu0 %v431
        %3057 = vmatprep.subr.mxu0 0.0
        %3058 = vmatpush1.msra.mxu0 %v432
        %3059 = vmatprep.subr.mxu0 0.0
        %3060 = vmatpush1.msra.mxu0 %v433
        %3061 = vmatprep.subr.mxu0 0.0
        %3062 = vmatpush1.msra.mxu0 %v434
        %3063 = vmatprep.subr.mxu0 0.0
        %3064 = vmatpush1.msra.mxu0 0.0
        %3065 = vmatprep.subr.mxu0 0.0
        %3066 = vmatpush1.msra.mxu0 0.0
        %3067 = vmatprep.subr.mxu0 0.0
        %3068 = vmatpush1.msra.mxu0 0.0
        %3069 = vmatprep.subr.mxu0 0.0
        %3070 = vmatpush1.msra.mxu0 0.0
        %3071 = vmatprep.subr.mxu0 0.0
        %3072 = vmatpush1.msra.mxu0 0.0
        %3073 = vmatprep.subr.mxu0 0.0
        %3074 = vmatpush1.msra.mxu0 0.0
        %3075 = vmatprep.subr.mxu0 0.0
        %3076 = vmatpush1.msra.mxu0 0.0
        %3077 = vmatprep.subr.mxu0 0.0
        %3078 = vmatpush1.msra.mxu0 0.0
        %3079 = vmatprep.subr.mxu0 0.0
        %3080 = vmatpush1.msra.mxu0 0.0
        %3081 = vmatprep.subr.mxu0 0.0
        %3082 = vmatpush1.msra.mxu0 0.0
        %3083 = vmatprep.subr.mxu0 0.0
        %3084 = vmatpush1.msra.mxu0 0.0
        %3085 = vmatprep.subr.mxu0 0.0
        %3086 = vmatpush1.msra.mxu0 0.0
        %3087 = vmatprep.subr.mxu0 0.0
        %3088 = vmatpush1.msra.mxu0 0.0
        %3089 = vmatprep.subr.mxu0 0.0
        %3090 = vmatpush1.msra.mxu0 0.0
        %3091 = vmatprep.subr.mxu0 0.0
        %3092 = vmatpush1.msra.mxu0 0.0
        %3093 = vmatprep.subr.mxu0 0.0
        %3094 = vmatpush1.msra.mxu0 0.0
        %3095 = vmatprep.subr.mxu0 0.0
        %3096 = vmatpush1.msra.mxu0 0.0
        %3097 = vmatprep.subr.mxu0 0.0
        %3098 = vmatpush1.msra.mxu0 0.0
        %3099 = vmatprep.subr.mxu0 0.0
        %3100 = vmatpush1.msra.mxu0 0.0
        %3101 = vmatprep.subr.mxu0 0.0
        %3102 = vmatpush1.msra.mxu0 0.0
        %3103 = vmatprep.subr.mxu0 0.0
        %3104 = vmatpush1.msra.mxu0 0.0
        %3105 = vmatprep.subr.mxu0 0.0
        %3106 = vmatpush1.msra.mxu0 0.0
        %3107 = vmatprep.subr.mxu0 0.0
        %3108 = vmatpush1.msra.mxu0 0.0
        %3109 = vmatprep.subr.mxu0 0.0
        %3110 = vmatpush1.msra.mxu0 0.0
        %3111 = vmatprep.subr.mxu0 0.0
        %3112 = vmatpush1.msra.mxu0 0.0
        %3113 = vmatprep.subr.mxu0 0.0
        %3114 = vmatpush1.msra.mxu0 0.0
        %3115 = vmatprep.subr.mxu0 0.0
        %3116 = vmatpush1.msra.mxu0 0.0
        %3117 = vmatprep.subr.mxu0 0.0
        %3118 = vmatpush1.msra.mxu0 0.0
        %3119 = vmatprep.mubr.f32.mxu0 0.0
        %3120 = vmatmul.mubr.f32.gmra.mrb[0].mxu0 %v3047
        %v3121 = vpop.f32.mrb[0].mxu0
        %v3122 = vadd.f32 %v3044, %v3121
        %v3123 = vpop.f32.mrb[0].mxu0
        %3124 = vmatprep.mubr.f32.mxu0 0.0
        %3125 = vmatmul.mubr.f32.gmra.mrb[0].mxu0 %v3050
        %v3126 = vpop.f32.mrb[0].mxu0
        %v3127 = vadd.f32 %v3044, %v3126
        %v3128 = vpop.f32.mrb[0].mxu0
        %3129 = vmatprep.mubr.f32.mxu0 0.0
        %3130 = vmatmul.mubr.f32.gmra.mrb[0].mxu0 %v3053
        %v3131 = vpop.f32.mrb[0].mxu0
        %v3132 = vadd.f32 %v3044, %v3131
        %v3133 = vpop.f32.mrb[0].mxu0
        %3134 = vdwg.mxu0
        %v3135 = vmax.f32 %v3122, 0.0
        %v3136 = vmax.f32 %v3127, 0.0
        %v3137 = vmax.f32 %v3132, 0.0
        %v3139 = vlaneseq
        %v3140 = vshrl.u32 %v3139, 7
        %v3141 = vsub.s32 0, %v3140
        %v3142 = vrot.slane %v452, %v3141
        %3144 = vmatprep.subr.mxu0 0.0
        %3145 = vmatpush1.msra.mxu0 %v436
        %3146 = vmatprep.subr.mxu0 0.0
        %3147 = vmatpush1.msra.mxu0 %v437
        %3148 = vmatprep.subr.mxu0 0.0
        %3149 = vmatpush1.msra.mxu0 %v438
        %3150 = vmatprep.subr.mxu0 0.0
        %3151 = vmatpush1.msra.mxu0 %v439
        %3152 = vmatprep.subr.mxu0 0.0
        %3153 = vmatpush1.msra.mxu0 %v440
        %3154 = vmatprep.subr.mxu0 0.0
        %3155 = vmatpush1.msra.mxu0 %v441
        %3156 = vmatprep.subr.mxu0 0.0
        %3157 = vmatpush1.msra.mxu0 %v442
        %3158 = vmatprep.subr.mxu0 0.0
        %3159 = vmatpush1.msra.mxu0 %v443
        %3160 = vmatprep.subr.mxu0 0.0
        %3161 = vmatpush1.msra.mxu0 %v444
        %3162 = vmatprep.subr.mxu0 0.0
        %3163 = vmatpush1.msra.mxu0 %v445
        %3164 = vmatprep.subr.mxu0 0.0
        %3165 = vmatpush1.msra.mxu0 %v446
        %3166 = vmatprep.subr.mxu0 0.0
        %3167 = vmatpush1.msra.mxu0 %v447
        %3168 = vmatprep.subr.mxu0 0.0
        %3169 = vmatpush1.msra.mxu0 %v448
        %3170 = vmatprep.subr.mxu0 0.0
        %3171 = vmatpush1.msra.mxu0 %v449
        %3172 = vmatprep.subr.mxu0 0.0
        %3173 = vmatpush1.msra.mxu0 %v450
        %3174 = vmatprep.subr.mxu0 0.0
        %3175 = vmatpush1.msra.mxu0 %v451
        %3176 = vmatprep.subr.mxu0 0.0
        %3177 = vmatpush1.msra.mxu0 0.0
        %3178 = vmatprep.subr.mxu0 0.0
        %3179 = vmatpush1.msra.mxu0 0.0
        %3180 = vmatprep.subr.mxu0 0.0
        %3181 = vmatpush1.msra.mxu0 0.0
        %3182 = vmatprep.subr.mxu0 0.0
        %3183 = vmatpush1.msra.mxu0 0.0
        %3184 = vmatprep.subr.mxu0 0.0
        %3185 = vmatpush1.msra.mxu0 0.0
        %3186 = vmatprep.subr.mxu0 0.0
        %3187 = vmatpush1.msra.mxu0 0.0
        %3188 = vmatprep.subr.mxu0 0.0
        %3189 = vmatpush1.msra.mxu0 0.0
        %3190 = vmatprep.subr.mxu0 0.0
        %3191 = vmatpush1.msra.mxu0 0.0
        %3192 = vmatprep.subr.mxu0 0.0
        %3193 = vmatpush1.msra.mxu0 0.0
        %3194 = vmatprep.subr.mxu0 0.0
        %3195 = vmatpush1.msra.mxu0 0.0
        %3196 = vmatprep.subr.mxu0 0.0
        %3197 = vmatpush1.msra.mxu0 0.0
        %3198 = vmatprep.subr.mxu0 0.0
        %3199 = vmatpush1.msra.mxu0 0.0
        %3200 = vmatprep.subr.mxu0 0.0
        %3201 = vmatpush1.msra.mxu0 0.0
        %3202 = vmatprep.subr.mxu0 0.0
        %3203 = vmatpush1.msra.mxu0 0.0
        %3204 = vmatprep.subr.mxu0 0.0
        %3205 = vmatpush1.msra.mxu0 0.0
        %3206 = vmatprep.subr.mxu0 0.0
        %3207 = vmatpush1.msra.mxu0 0.0
        %3208 = vmatprep.mubr.f32.mxu0 0.0
        %3209 = vmatmul.mubr.f32.gmra.mrb[0].mxu0 %v3135
        %v3210 = vpop.f32.mrb[0].mxu0
        %v3211 = vadd.f32 %v3142, %v3210
        %v3212 = vpop.f32.mrb[0].mxu0
        %3213 = vmatprep.mubr.f32.mxu0 0.0
        %3214 = vmatmul.mubr.f32.gmra.mrb[0].mxu0 %v3136
        %v3215 = vpop.f32.mrb[0].mxu0
        %v3216 = vadd.f32 %v3142, %v3215
        %v3217 = vpop.f32.mrb[0].mxu0
        %3218 = vmatprep.mubr.f32.mxu0 0.0
        %3219 = vmatmul.mubr.f32.gmra.mrb[0].mxu0 %v3137
        %v3220 = vpop.f32.mrb[0].mxu0
        %v3221 = vadd.f32 %v3142, %v3220
        %v3222 = vpop.f32.mrb[0].mxu0
        %3223 = vdwg.mxu0
        %v3224 = vadd.f32 %v2980, %v3211
        %v3225 = vadd.f32 %v2981, %v3216
        %v3226 = vadd.f32 %v2982, %v3221
        %3227 = vst.msk [vmem:[%s407] sm:$0xff] %vm453, %v3224
        %3228 = vst.msk [vmem:[%s407 + $0x8] sm:$0xff] %vm453, %v3225
        %3229 = vst.msk [vmem:[%s407 + $0x10] sm:$0xff] %vm453, %v3226
        %s3230 = sand.u32 %s291, 1
        %s3231 = scalar_lea.sflag [#allocation3], %s3230
        %s3232 = sand.u32 %s291, 1
        %s3233 = smul.addr %s3232, 24
        %s3234 = scalar_lea.vmem [#allocation2], %s3233
        // Predicated region
        $region69: #{tpu_custom_call.1} parent=67 // pred_check
          %p3235 = pneg %p301
        $region70: #{tpu_custom_call.1} parent=67 // pred_check_branch
          %3237 = sbr.rel (%p3235) target = $region72
        $region71: #{tpu_custom_call.1} parent=67 // pred_region
          %s3238 = smul.u32 3, %s26
          %s3240 = ssub.s32 384, 384
          %3241 = vsyncadd %s3231, %s3240
          %s3242 = smul.addr %s3238, 128
          %s3243 = scalar_lea.hbm %s12, %s3242
          %s3244 = sshll.u32 %s3234, 4
          %s3245 = int_to_ptr.vmem [resolvable:$true] %s3244
          %3250 = dma.vmem_to_hbm [thread:$0]  %s3245, 384, %s3243, %s3231, 128, 128, 8
        $region72: #{tpu_custom_call.1} parent=67 // pred_fallthru
          _
      $region68: #{tpu_custom_call.1} parent=5 // pred_fallthru
        _
      %p3251 = scmp.le.s32.totalorder 2, %s21
      // Predicated region
      $region73: #{tpu_custom_call.1} parent=5 // pred_check
        %p3252 = pneg %p3251
      $region74: #{tpu_custom_call.1} parent=5 // pred_check_branch
        %3254 = sbr.rel (%p3252) target = $region76
      $region75: #{tpu_custom_call.1} parent=5 // pred_region
        %s3255 = ssub.s32 %s21, 2
        // Predicated region
        $region77: #{tpu_custom_call.1} parent=75 // pred_check
          %p3256 = pneg %p307
        $region78: #{tpu_custom_call.1} parent=75 // pred_check_branch
          %3258 = sbr.rel (%p3256) target = $region80
        $region79: #{tpu_custom_call.1} parent=75 // pred_region
          %s3259 = sand.u32 %s292, 1
          %s3260 = scalar_lea.sflag [#allocation3], %s3259
          %s3261 = sand.u32 %s292, 1
          %s3262 = smul.addr %s3261, 24
          %s3263 = scalar_lea.vmem [#allocation2], %s3262
          %3264 = dma.done %s3260, 384
        $region80: #{tpu_custom_call.1} parent=75 // pred_fallthru
          _
      $region76: #{tpu_custom_call.1} parent=5 // pred_fallthru
        _
    $region6: #{tpu_custom_call.1} parent=1 // loop_footer
      %s25 = sadd.s32 1, %s21
    $region7: #{tpu_custom_call.1} parent=1 // loop_footer_branch
      %20 = sbr.rel target = $region3
    $region8: #{tpu_custom_call.1} parent=1 // loop_exit
      _
    %3265 = vsyncpa [#allocation3], 1
    %s3266 = scalar_lea.sflag [#allocation3], 1
    %3267 = vsyncpa %s3266, 1

</llo_original>
